<compile_context>
chip_gen: v5e
topology: v5e:2x2
jax: 0.10.0
libtpu: 0.0.40
codegen_flags: <defaults>
</compile_context>

<pallas_src>
import functools

import jax
import jax.numpy as jnp
from jax import lax
from jax.experimental import pallas as pl
from jax.experimental.pallas import tpu as pltpu


FEAT_DIM = 2048                 # classifier input dim is hard-coded to 2048 in the module
CONV0_OUT = 8                   # small synthetic stem width (stand-in)
C_EXT = 16                      # conv channels padded to 16; channel 8 carries the mask
MASK_CH = CONV0_OUT             # = 8
OUTPUT_CLASSES = (168, 11, 7)   # Bengali grapheme_root / vowel / consonant heads


def _round_up(x, m):
    return (x + m - 1) // m * m


# ------------------------------ fused kernel --------------------------------

def _fused_kernel(x_ref, mask_ref, wc_ref, bc_ref, wext_ref, cw_ref, cb_ref,
                  out_ref, *, ts, wp, winlen, n_m, feat_dim):
    """One batch image per grid step; the spatial axis is an in-kernel loop.

    x_ref    : (1, 1, flat_len) flattened zero-padded image (VMEM resident)
    mask_ref : (1, n_m*ts)      0/1 output-validity mask (VMEM resident)
    wc_ref   : (16, 9)  conv0 weights (rows >= 8 zero), bc_ref: (16, 1) conv0 bias
    wext_ref : (16, 2048) bf16  rows 0..7 = proj_w, row 8 = proj_b, rows 9..15 = 0
    cw_ref   : (2048, 256) bf16 fused classifier weights (padded), cb_ref: (1, 256)
    out_ref  : (1, 8, 256) f32  padded logits (8 identical rows)
    """
    wc = wc_ref[...]
    bc = bc_ref[...]
    wext = wext_ref[...]
    # Loop-invariant hoists (computed once before the fori_loop).
    wcols = [wc[:, t:t + 1] for t in range(9)]
    is_mask_row = lax.broadcasted_iota(jnp.int32, (C_EXT, ts), 0) == MASK_CH

    def tile_step(m, acc):
        base = pl.multiple_of(m * ts, 128)
        win = x_ref[0, :, pl.ds(base, winlen)]            # (1, winlen) f32
        mask = mask_ref[:, pl.ds(base, ts)]               # (1, ts) 0/1

        # conv0 (3x3, pad 1) as 9 lane-shifted VPU multiply-adds + bias + ReLU.
        h = jnp.broadcast_to(bc, (C_EXT, ts))
        for t in range(9):
            dy, dx = divmod(t, 3)
            off = dy * wp + dx
            h = h + wcols[t] * win[:, off:off + ts]       # (16,1)*(1,ts)
        h = jnp.maximum(h, 0.0) * mask                    # rows 8..15 stay 0
        # Channel 8 carries the mask: the matmul then adds mask*proj_b, so
        # masked (row-boundary / ragged-tail) positions give exactly 0.
        h_ext = h + jnp.where(is_mask_row, mask, 0.0)     # (16, ts)

        # Flipped projection layout (features on lanes): MXU, bf16 in, f32 acc.
        hT = h_ext.T.astype(jnp.bfloat16)                 # (ts, 16)
        feats = jnp.dot(hT, wext,
                        preferred_element_type=jnp.float32)  # (ts, 2048) f32

        # Running global max-pool: pure-VPU maxima over 8-row slabs.  acc >= 0
        # always (zero init), so this also implements the post-proj ReLU.
        for g in range(ts // 8):
            acc = jnp.maximum(acc, feats[g * 8:(g + 1) * 8, :])
        return acc

    acc = lax.fori_loop(0, n_m, tile_step,
                        jnp.zeros((8, feat_dim), jnp.float32))

    # Epilogue (once per batch): tiny 8->1 sublane max, classifier on the MXU.
    pooled = jnp.max(acc, axis=0, keepdims=True)          # (1, 2048)
    pooled8 = jnp.broadcast_to(pooled, (8, feat_dim)).astype(jnp.bfloat16)
    logits = jnp.dot(pooled8, cw_ref[...],
                     preferred_element_type=jnp.float32) + cb_ref[...]
    out_ref[0] = logits.astype(out_ref.dtype)             # (8, 256) lane-dense


# --------------------------- parameter creation -----------------------------

def init_params(key):
    ks = jax.random.split(key, 6)
    # First Conv2d of the backbone: (C_out, C_in=3, 3, 3). one_channel=True =>
    # weight.mean(1, keepdim=True), exactly as in the PyTorch __init__.
    conv_w3 = jax.random.normal(ks[0], (CONV0_OUT, 3, 3, 3), jnp.float32) * 0.1
    conv_w = conv_w3.mean(axis=1, keepdims=True)                 # (8, 1, 3, 3)
    conv_b = jax.random.normal(ks[1], (CONV0_OUT,), jnp.float32) * 0.01

    # TODO(synk): the full pretrainedmodels backbone body (resnet/se_resnext blocks)
    # is not reproducible here; stood in with a single pointwise projection to 2048.
    proj_w = jax.random.normal(ks[2], (CONV0_OUT, FEAT_DIM), jnp.float32) * 0.05
    proj_b = jax.random.normal(ks[3], (FEAT_DIM,), jnp.float32) * 0.01

    # TODO(synk): MultiLabelLinearClassfier source is not provided; implemented as
    # independent linear heads fused into one (2048, 186) matmul, split per head.
    n_total = sum(OUTPUT_CLASSES)
    cls_w = jax.random.normal(ks[4], (FEAT_DIM, n_total), jnp.float32) * 0.02
    cls_b = jax.random.normal(ks[5], (n_total,), jnp.float32) * 0.01

    return dict(conv_w=conv_w, conv_b=conv_b, proj_w=proj_w, proj_b=proj_b,
                cls_w=cls_w, cls_b=cls_b)


# ------------------------------- forward -----------------------------------

def forward(params, x_nchw, *, tile_spatial=None):
    B, Cin, H, W = x_nchw.shape
    assert Cin == 1, "one_channel=True => single-channel NCHW input"
    Hp, Wp = H + 2, W + 2
    m_out = H * Wp                              # flat output positions (H x padded-W grid)

    # Inner spatial chunk (lanes): multiple of 128.  The grid no longer iterates
    # over it, so 512 keeps the live (ts, 2048) f32 block at 4 MiB.
    ts = tile_spatial if tile_spatial is not None else min(512, _round_up(m_out, 128))
    assert ts % 128 == 0
    n_m = -(-m_out // ts)
    halo_pad = _round_up(2 * Wp + 2, 128)       # max conv tap offset, rounded up
    winlen = ts + halo_pad
    flat_len = n_m * ts + halo_pad

    # Flatten the zero-padded single-channel image. The 9 conv taps become 9 static
    # lane shifts of this flat row; row-boundary and ragged-tail positions are masked.
    xpad = jnp.pad(x_nchw[:, 0], ((0, 0), (1, 1), (1, 1)))       # (B, Hp, Wp)
    xflat = jnp.pad(xpad.reshape(B, Hp * Wp),
                    ((0, 0), (0, flat_len - Hp * Wp))).reshape(B, 1, flat_len)

    q = jnp.arange(n_m * ts, dtype=jnp.int32)
    mask = (((q % Wp) < W) & (q < m_out)).astype(jnp.float32).reshape(1, n_m * ts)

    # Kernel-layout weights (tiny host-side transforms).
    wconv = jnp.zeros((C_EXT, 9), jnp.float32)
    wconv = wconv.at[:CONV0_OUT].set(params["conv_w"].reshape(CONV0_OUT, 9))
    bconv = jnp.zeros((C_EXT, 1), jnp.float32)
    bconv = bconv.at[:CONV0_OUT].set(params["conv_b"].reshape(CONV0_OUT, 1))

    # Extended projection: rows 0..7 = proj_w, row 8 = proj_b (picked up by the
    # mask channel inside the kernel), rows 9..15 = 0.  bf16 for the MXU.
    w_ext = jnp.zeros((C_EXT, FEAT_DIM), jnp.float32)
    w_ext = w_ext.at[:CONV0_OUT].set(params["proj_w"])
    w_ext = w_ext.at[MASK_CH].set(params["proj_b"])
    w_ext = w_ext.astype(jnp.bfloat16)

    n_total = sum(OUTPUT_CLASSES)
    n_pad = _round_up(n_total, 128)                              # lane-dense logits (256)
    cls_w = jnp.pad(params["cls_w"],
                    ((0, 0), (0, n_pad - n_total))).astype(jnp.bfloat16)
    cls_b = jnp.pad(params["cls_b"], (0, n_pad - n_total)).reshape(1, n_pad)

    kernel = functools.partial(_fused_kernel, ts=ts, wp=Wp, winlen=winlen,
                               n_m=n_m, feat_dim=FEAT_DIM)
    # TODO(synk): for B == 1 on v7x (2 TensorCores) the batch-parallel grid leaves
    # one core idle; splitting the in-kernel spatial loop across cores would fix it.
    out = pl.pallas_call(
        kernel,
        out_shape=jax.ShapeDtypeStruct((B, 8, n_pad), jnp.float32),
        grid_spec=pltpu.PrefetchScalarGridSpec(
            num_scalar_prefetch=0,
            grid=(B,),
            in_specs=[
                pl.BlockSpec((1, 1, flat_len), lambda b: (b, 0, 0)),   # image row
                pl.BlockSpec((1, n_m * ts), lambda b: (0, 0)),         # validity mask
                pl.BlockSpec((C_EXT, 9), lambda b: (0, 0)),            # conv0 w (padded)
                pl.BlockSpec((C_EXT, 1), lambda b: (0, 0)),            # conv0 b (padded)
                pl.BlockSpec((C_EXT, FEAT_DIM), lambda b: (0, 0)),     # proj w_ext (bf16)
                pl.BlockSpec((FEAT_DIM, n_pad), lambda b: (0, 0)),     # cls w (bf16, padded)
                pl.BlockSpec((1, n_pad), lambda b: (0, 0)),            # cls b (padded)
            ],
            out_specs=pl.BlockSpec((1, 8, n_pad), lambda b: (b, 0, 0)),
        ),
        compiler_params=pltpu.CompilerParams(
            dimension_semantics=("parallel",),
            vmem_limit_bytes=32 * 1024 * 1024),
    )(xflat, mask, wconv, bconv, w_ext, cls_w, cls_b)

    logits = out[:, 0, :n_total]                                 # (B, 186)
    outs, off = [], 0
    for n in OUTPUT_CLASSES:
        outs.append(logits[:, off:off + n])
        off += n
    return tuple(outs)


# ------------------------------ reference ----------------------------------

def forward_ref(params, x_nchw):
    """Pure-JAX f32 reference; conv0 via lax.conv validates the tap ordering."""
    hp = lax.Precision.HIGHEST
    conv = lax.conv_general_dilated(
        x_nchw, params["conv_w"], window_strides=(1, 1), padding=((1, 1), (1, 1)),
        dimension_numbers=("NCHW", "OIHW", "NCHW"), precision=hp)
    h0 = jnp.maximum(conv + params["conv_b"][None, :, None, None], 0.0)
    feats = jnp.einsum("bchw,cf->bfhw", h0, params["proj_w"], precision=hp)
    feats = jnp.maximum(feats + params["proj_b"][None, :, None, None], 0.0)
    pooled = jnp.max(feats, axis=(2, 3))                         # GlobalMaxPooling
    logits = jnp.dot(pooled, params["cls_w"], precision=hp) + params["cls_b"]
    outs, off = [], 0
    for n in OUTPUT_CLASSES:
        outs.append(logits[:, off:off + n])
        off += n
    return tuple(outs)


# -------------------------------- main --------------------------------------

if __name__ == "__main__":
    key = jax.random.PRNGKey(0)
    k_x, k_p = jax.random.split(key)
    x = jax.random.normal(k_x, (2, 1, 16, 16), jnp.float32)      # NCHW, one channel
    params = init_params(k_p)

    # tile_spatial=128 forces 3 in-kernel spatial iterations so the running-max
    # loop, mask tail and epilogue are all exercised at this toy size.
    fwd = jax.jit(functools.partial(forward, tile_spatial=128))
    outs = jax.block_until_ready(fwd(params, x))

    refs = forward_ref(params, x)
    for o, r in zip(outs, refs):
        assert o.shape == r.shape, (o.shape, r.shape)
        err = float(jnp.max(jnp.abs(o - r)))
        assert err < 5e-3, err                                   # bf16 matmul inputs
    print("KERNEL_OK")
</pallas_src>

<mosaic_0001>
module attributes {stable_mosaic.version = 11 : i64} {
  func.func @_fused_kernel(%arg0: i32, %arg1: memref<1x1x512xf32, #tpu.memory_space<vmem>>, %arg2: memref<1x384xf32, #tpu.memory_space<vmem>>, %arg3: memref<16x9xf32, #tpu.memory_space<vmem>>, %arg4: memref<16x1xf32, #tpu.memory_space<vmem>>, %arg5: memref<16x2048xbf16, #tpu.memory_space<vmem>>, %arg6: memref<2048x256xbf16, #tpu.memory_space<vmem>>, %arg7: memref<1x256xf32, #tpu.memory_space<vmem>>, %arg8: memref<1x8x256xf32, #tpu.memory_space<vmem>>) attributes {dimension_semantics = [#tpu.dimension_semantics<parallel>], iteration_bounds = array<i64: 2>, scalar_prefetch = 0 : i64, scratch_operands = 0 : i64, tpu.core_type = #tpu.core_type<tc>, window_params = [{transform_indices = @transform_0, window_bounds = array<i64: 1, 1, 512>}, {pipeline_mode = #tpu.pipeline_mode<synchronous>, transform_indices = @transform_1, window_bounds = array<i64: 1, 384>}, {pipeline_mode = #tpu.pipeline_mode<synchronous>, transform_indices = @transform_2, window_bounds = array<i64: 16, 9>}, {pipeline_mode = #tpu.pipeline_mode<synchronous>, transform_indices = @transform_3, window_bounds = array<i64: 16, 1>}, {pipeline_mode = #tpu.pipeline_mode<synchronous>, transform_indices = @transform_4, window_bounds = array<i64: 16, 2048>}, {pipeline_mode = #tpu.pipeline_mode<synchronous>, transform_indices = @transform_5, window_bounds = array<i64: 2048, 256>}, {pipeline_mode = #tpu.pipeline_mode<synchronous>, transform_indices = @transform_6, window_bounds = array<i64: 1, 256>}, {transform_indices = @transform_7, window_bounds = array<i64: 1, 8, 256>}]} {
    %c0 = arith.constant 0 : index
    %c0_0 = arith.constant 0 : index
    %0 = vector.load %arg3[%c0, %c0_0] : memref<16x9xf32, #tpu.memory_space<vmem>>, vector<16x9xf32>
    %c0_1 = arith.constant 0 : index
    %c0_2 = arith.constant 0 : index
    %1 = vector.load %arg4[%c0_1, %c0_2] : memref<16x1xf32, #tpu.memory_space<vmem>>, vector<16x1xf32>
    %c0_3 = arith.constant 0 : index
    %c0_4 = arith.constant 0 : index
    %2 = vector.load %arg5[%c0_3, %c0_4] : memref<16x2048xbf16, #tpu.memory_space<vmem>>, vector<16x2048xbf16>
    %3 = vector.extract_strided_slice %0 {offsets = [0, 0], sizes = [16, 1], strides = [1, 1]} : vector<16x9xf32> to vector<16x1xf32>
    %4 = vector.extract_strided_slice %0 {offsets = [0, 1], sizes = [16, 1], strides = [1, 1]} : vector<16x9xf32> to vector<16x1xf32>
    %5 = vector.extract_strided_slice %0 {offsets = [0, 2], sizes = [16, 1], strides = [1, 1]} : vector<16x9xf32> to vector<16x1xf32>
    %6 = vector.extract_strided_slice %0 {offsets = [0, 3], sizes = [16, 1], strides = [1, 1]} : vector<16x9xf32> to vector<16x1xf32>
    %7 = vector.extract_strided_slice %0 {offsets = [0, 4], sizes = [16, 1], strides = [1, 1]} : vector<16x9xf32> to vector<16x1xf32>
    %8 = vector.extract_strided_slice %0 {offsets = [0, 5], sizes = [16, 1], strides = [1, 1]} : vector<16x9xf32> to vector<16x1xf32>
    %9 = vector.extract_strided_slice %0 {offsets = [0, 6], sizes = [16, 1], strides = [1, 1]} : vector<16x9xf32> to vector<16x1xf32>
    %10 = vector.extract_strided_slice %0 {offsets = [0, 7], sizes = [16, 1], strides = [1, 1]} : vector<16x9xf32> to vector<16x1xf32>
    %11 = vector.extract_strided_slice %0 {offsets = [0, 8], sizes = [16, 1], strides = [1, 1]} : vector<16x9xf32> to vector<16x1xf32>
    %12 = tpu.iota {dimensions = array<i32: 0>} : vector<16x128xi32>
    %c8_i32 = arith.constant 8 : i32
    %13 = vector.broadcast %c8_i32 : i32 to vector<16x128xi32>
    %14 = arith.cmpi eq, %12, %13 : vector<16x128xi32>
    %cst = arith.constant 0.000000e+00 : f32
    %15 = vector.broadcast %cst : f32 to vector<8x2048xf32>
    %c0_i32 = arith.constant 0 : i32
    %c3_i32 = arith.constant 3 : i32
    %16 = arith.addi %c0_i32, %c3_i32 : i32
    %c1_i32 = arith.constant 1 : i32
    %17 = scf.for %arg9 = %c0_i32 to %16 step %c1_i32 iter_args(%arg10 = %15) -> (vector<8x2048xf32>)  : i32 {
      %c128_i32 = arith.constant 128 : i32
      %31 = arith.muli %arg9, %c128_i32 : i32
      %32 = tpu.assume_multiple %31, 128 : i32
      %c0_15 = arith.constant 0 : index
      %c0_16 = arith.constant 0 : index
      %33 = arith.index_cast %32 : i32 to index
      %34 = vector.load %arg1[%c0_15, %c0_16, %33] : memref<1x1x512xf32, #tpu.memory_space<vmem>>, vector<1x1x256xf32>
      %35 = vector.shape_cast %34 : vector<1x1x256xf32> to vector<1x256xf32>
      %c0_17 = arith.constant 0 : index
      %36 = arith.index_cast %32 : i32 to index
      %37 = vector.load %arg2[%c0_17, %36] : memref<1x384xf32, #tpu.memory_space<vmem>>, vector<1x128xf32>
      %38 = vector.shape_cast %1 : vector<16x1xf32> to vector<16x1xf32>
      %39 = vector.broadcast %38 : vector<16x1xf32> to vector<16x128xf32>
      %40 = vector.extract_strided_slice %35 {offsets = [0, 0], sizes = [1, 128], strides = [1, 1]} : vector<1x256xf32> to vector<1x128xf32>
      %41 = vector.broadcast %3 : vector<16x1xf32> to vector<16x128xf32>
      %42 = vector.broadcast %40 : vector<1x128xf32> to vector<16x128xf32>
      %43 = arith.mulf %41, %42 : vector<16x128xf32>
      %44 = arith.addf %39, %43 : vector<16x128xf32>
      %45 = vector.extract_strided_slice %35 {offsets = [0, 1], sizes = [1, 128], strides = [1, 1]} : vector<1x256xf32> to vector<1x128xf32>
      %46 = vector.broadcast %4 : vector<16x1xf32> to vector<16x128xf32>
      %47 = vector.broadcast %45 : vector<1x128xf32> to vector<16x128xf32>
      %48 = arith.mulf %46, %47 : vector<16x128xf32>
      %49 = arith.addf %44, %48 : vector<16x128xf32>
      %50 = vector.extract_strided_slice %35 {offsets = [0, 2], sizes = [1, 128], strides = [1, 1]} : vector<1x256xf32> to vector<1x128xf32>
      %51 = vector.broadcast %5 : vector<16x1xf32> to vector<16x128xf32>
      %52 = vector.broadcast %50 : vector<1x128xf32> to vector<16x128xf32>
      %53 = arith.mulf %51, %52 : vector<16x128xf32>
      %54 = arith.addf %49, %53 : vector<16x128xf32>
      %55 = vector.extract_strided_slice %35 {offsets = [0, 18], sizes = [1, 128], strides = [1, 1]} : vector<1x256xf32> to vector<1x128xf32>
      %56 = vector.broadcast %6 : vector<16x1xf32> to vector<16x128xf32>
      %57 = vector.broadcast %55 : vector<1x128xf32> to vector<16x128xf32>
      %58 = arith.mulf %56, %57 : vector<16x128xf32>
      %59 = arith.addf %54, %58 : vector<16x128xf32>
      %60 = vector.extract_strided_slice %35 {offsets = [0, 19], sizes = [1, 128], strides = [1, 1]} : vector<1x256xf32> to vector<1x128xf32>
      %61 = vector.broadcast %7 : vector<16x1xf32> to vector<16x128xf32>
      %62 = vector.broadcast %60 : vector<1x128xf32> to vector<16x128xf32>
      %63 = arith.mulf %61, %62 : vector<16x128xf32>
      %64 = arith.addf %59, %63 : vector<16x128xf32>
      %65 = vector.extract_strided_slice %35 {offsets = [0, 20], sizes = [1, 128], strides = [1, 1]} : vector<1x256xf32> to vector<1x128xf32>
      %66 = vector.broadcast %8 : vector<16x1xf32> to vector<16x128xf32>
      %67 = vector.broadcast %65 : vector<1x128xf32> to vector<16x128xf32>
      %68 = arith.mulf %66, %67 : vector<16x128xf32>
      %69 = arith.addf %64, %68 : vector<16x128xf32>
      %70 = vector.extract_strided_slice %35 {offsets = [0, 36], sizes = [1, 128], strides = [1, 1]} : vector<1x256xf32> to vector<1x128xf32>
      %71 = vector.broadcast %9 : vector<16x1xf32> to vector<16x128xf32>
      %72 = vector.broadcast %70 : vector<1x128xf32> to vector<16x128xf32>
      %73 = arith.mulf %71, %72 : vector<16x128xf32>
      %74 = arith.addf %69, %73 : vector<16x128xf32>
      %75 = vector.extract_strided_slice %35 {offsets = [0, 37], sizes = [1, 128], strides = [1, 1]} : vector<1x256xf32> to vector<1x128xf32>
      %76 = vector.broadcast %10 : vector<16x1xf32> to vector<16x128xf32>
      %77 = vector.broadcast %75 : vector<1x128xf32> to vector<16x128xf32>
      %78 = arith.mulf %76, %77 : vector<16x128xf32>
      %79 = arith.addf %74, %78 : vector<16x128xf32>
      %80 = vector.extract_strided_slice %35 {offsets = [0, 38], sizes = [1, 128], strides = [1, 1]} : vector<1x256xf32> to vector<1x128xf32>
      %81 = vector.broadcast %11 : vector<16x1xf32> to vector<16x128xf32>
      %82 = vector.broadcast %80 : vector<1x128xf32> to vector<16x128xf32>
      %83 = arith.mulf %81, %82 : vector<16x128xf32>
      %84 = arith.addf %79, %83 : vector<16x128xf32>
      %cst_18 = arith.constant 0.000000e+00 : f32
      %85 = vector.broadcast %cst_18 : f32 to vector<16x128xf32>
      %86 = arith.maximumf %84, %85 : vector<16x128xf32>
      %87 = vector.broadcast %37 : vector<1x128xf32> to vector<16x128xf32>
      %88 = arith.mulf %86, %87 : vector<16x128xf32>
      %cst_19 = arith.constant 0.000000e+00 : f32
      %89 = vector.shape_cast %37 : vector<1x128xf32> to vector<1x128xf32>
      %90 = vector.broadcast %89 : vector<1x128xf32> to vector<16x128xf32>
      %91 = vector.broadcast %cst_19 : f32 to vector<16x128xf32>
      %92 = arith.select %14, %90, %91 : vector<16x128xi1>, vector<16x128xf32>
      %93 = arith.addf %88, %92 : vector<16x128xf32>
      %94 = tpu.transpose %93, [1, 0] : vector<16x128xf32> -> vector<128x16xf32>
      %95 = arith.truncf %94 : vector<128x16xf32> to vector<128x16xbf16>
      %cst_20 = arith.constant dense<0.000000e+00> : vector<128x2048xf32>
      %96 = tpu.matmul %95, %2, %cst_20 {dimension_numbers = #tpu.dot_dimension_numbers<[1], [0], [0], [1], [0, 0, 1, 1], [], []>} : vector<128x16xbf16>, vector<16x2048xbf16>, vector<128x2048xf32> -> vector<128x2048xf32>
      %97 = vector.extract_strided_slice %96 {offsets = [0, 0], sizes = [8, 2048], strides = [1, 1]} : vector<128x2048xf32> to vector<8x2048xf32>
      %98 = arith.maximumf %arg10, %97 : vector<8x2048xf32>
      %99 = vector.extract_strided_slice %96 {offsets = [8, 0], sizes = [8, 2048], strides = [1, 1]} : vector<128x2048xf32> to vector<8x2048xf32>
      %100 = arith.maximumf %98, %99 : vector<8x2048xf32>
      %101 = vector.extract_strided_slice %96 {offsets = [16, 0], sizes = [8, 2048], strides = [1, 1]} : vector<128x2048xf32> to vector<8x2048xf32>
      %102 = arith.maximumf %100, %101 : vector<8x2048xf32>
      %103 = vector.extract_strided_slice %96 {offsets = [24, 0], sizes = [8, 2048], strides = [1, 1]} : vector<128x2048xf32> to vector<8x2048xf32>
      %104 = arith.maximumf %102, %103 : vector<8x2048xf32>
      %105 = vector.extract_strided_slice %96 {offsets = [32, 0], sizes = [8, 2048], strides = [1, 1]} : vector<128x2048xf32> to vector<8x2048xf32>
      %106 = arith.maximumf %104, %105 : vector<8x2048xf32>
      %107 = vector.extract_strided_slice %96 {offsets = [40, 0], sizes = [8, 2048], strides = [1, 1]} : vector<128x2048xf32> to vector<8x2048xf32>
      %108 = arith.maximumf %106, %107 : vector<8x2048xf32>
      %109 = vector.extract_strided_slice %96 {offsets = [48, 0], sizes = [8, 2048], strides = [1, 1]} : vector<128x2048xf32> to vector<8x2048xf32>
      %110 = arith.maximumf %108, %109 : vector<8x2048xf32>
      %111 = vector.extract_strided_slice %96 {offsets = [56, 0], sizes = [8, 2048], strides = [1, 1]} : vector<128x2048xf32> to vector<8x2048xf32>
      %112 = arith.maximumf %110, %111 : vector<8x2048xf32>
      %113 = vector.extract_strided_slice %96 {offsets = [64, 0], sizes = [8, 2048], strides = [1, 1]} : vector<128x2048xf32> to vector<8x2048xf32>
      %114 = arith.maximumf %112, %113 : vector<8x2048xf32>
      %115 = vector.extract_strided_slice %96 {offsets = [72, 0], sizes = [8, 2048], strides = [1, 1]} : vector<128x2048xf32> to vector<8x2048xf32>
      %116 = arith.maximumf %114, %115 : vector<8x2048xf32>
      %117 = vector.extract_strided_slice %96 {offsets = [80, 0], sizes = [8, 2048], strides = [1, 1]} : vector<128x2048xf32> to vector<8x2048xf32>
      %118 = arith.maximumf %116, %117 : vector<8x2048xf32>
      %119 = vector.extract_strided_slice %96 {offsets = [88, 0], sizes = [8, 2048], strides = [1, 1]} : vector<128x2048xf32> to vector<8x2048xf32>
      %120 = arith.maximumf %118, %119 : vector<8x2048xf32>
      %121 = vector.extract_strided_slice %96 {offsets = [96, 0], sizes = [8, 2048], strides = [1, 1]} : vector<128x2048xf32> to vector<8x2048xf32>
      %122 = arith.maximumf %120, %121 : vector<8x2048xf32>
      %123 = vector.extract_strided_slice %96 {offsets = [104, 0], sizes = [8, 2048], strides = [1, 1]} : vector<128x2048xf32> to vector<8x2048xf32>
      %124 = arith.maximumf %122, %123 : vector<8x2048xf32>
      %125 = vector.extract_strided_slice %96 {offsets = [112, 0], sizes = [8, 2048], strides = [1, 1]} : vector<128x2048xf32> to vector<8x2048xf32>
      %126 = arith.maximumf %124, %125 : vector<8x2048xf32>
      %127 = vector.extract_strided_slice %96 {offsets = [120, 0], sizes = [8, 2048], strides = [1, 1]} : vector<128x2048xf32> to vector<8x2048xf32>
      %128 = arith.maximumf %126, %127 : vector<8x2048xf32>
      scf.yield %128 : vector<8x2048xf32>
    }
    %c3_i32_5 = arith.constant 3 : i32
    %cst_6 = arith.constant dense<0xFF800000> : vector<2048xf32>
    %18 = vector.multi_reduction <maximumf>, %17, %cst_6 [0] : vector<8x2048xf32> to vector<2048xf32>
    %19 = vector.shape_cast %18 : vector<2048xf32> to vector<1x2048xf32>
    %20 = vector.shape_cast %19 : vector<1x2048xf32> to vector<1x2048xf32>
    %21 = vector.broadcast %20 : vector<1x2048xf32> to vector<8x2048xf32>
    %22 = arith.truncf %21 : vector<8x2048xf32> to vector<8x2048xbf16>
    %c0_7 = arith.constant 0 : index
    %c0_8 = arith.constant 0 : index
    %23 = vector.load %arg6[%c0_7, %c0_8] : memref<2048x256xbf16, #tpu.memory_space<vmem>>, vector<2048x256xbf16>
    %cst_9 = arith.constant dense<0.000000e+00> : vector<8x256xf32>
    %24 = tpu.matmul %22, %23, %cst_9 {dimension_numbers = #tpu.dot_dimension_numbers<[1], [0], [0], [1], [0, 0, 1, 1], [], []>} : vector<8x2048xbf16>, vector<2048x256xbf16>, vector<8x256xf32> -> vector<8x256xf32>
    %c0_10 = arith.constant 0 : index
    %c0_11 = arith.constant 0 : index
    %25 = vector.load %arg7[%c0_10, %c0_11] : memref<1x256xf32, #tpu.memory_space<vmem>>, vector<1x256xf32>
    %26 = vector.broadcast %25 : vector<1x256xf32> to vector<8x256xf32>
    %27 = arith.addf %24, %26 : vector<8x256xf32>
    %c0_12 = arith.constant 0 : index
    %c0_13 = arith.constant 0 : index
    %c0_14 = arith.constant 0 : index
    %28 = vector.load %arg8[%c0_12, %c0_13, %c0_14] : memref<1x8x256xf32, #tpu.memory_space<vmem>>, vector<1x8x256xf32>
    %29 = vector.shape_cast %28 : vector<1x8x256xf32> to vector<8x256xf32>
    %30 = vector.shape_cast %27 : vector<8x256xf32> to vector<1x8x256xf32>
    tpu.vector_store %arg8[%c0_12, %c0_13, %c0_14], %30 {strides = array<i32>} : memref<1x8x256xf32, #tpu.memory_space<vmem>>, vector<1x8x256xf32>,
    return
  }
  func.func @transform_0(%arg0: i32) -> (i32, i32, i32) {
    %c0_i32 = arith.constant 0 : i32
    %c0_i32_0 = arith.constant 0 : i32
    %c0_i32_1 = arith.constant 0 : i32
    return %arg0, %c0_i32, %c0_i32_0 : i32, i32, i32
  }
  func.func @transform_1(%arg0: i32) -> (i32, i32) {
    %c0_i32 = arith.constant 0 : i32
    %c0_i32_0 = arith.constant 0 : i32
    %c0_i32_1 = arith.constant 0 : i32
    return %c0_i32, %c0_i32_0 : i32, i32
  }
  func.func @transform_2(%arg0: i32) -> (i32, i32) {
    %c0_i32 = arith.constant 0 : i32
    %c0_i32_0 = arith.constant 0 : i32
    %c0_i32_1 = arith.constant 0 : i32
    return %c0_i32, %c0_i32_0 : i32, i32
  }
  func.func @transform_3(%arg0: i32) -> (i32, i32) {
    %c0_i32 = arith.constant 0 : i32
    %c0_i32_0 = arith.constant 0 : i32
    %c0_i32_1 = arith.constant 0 : i32
    return %c0_i32, %c0_i32_0 : i32, i32
  }
  func.func @transform_4(%arg0: i32) -> (i32, i32) {
    %c0_i32 = arith.constant 0 : i32
    %c0_i32_0 = arith.constant 0 : i32
    %c0_i32_1 = arith.constant 0 : i32
    return %c0_i32, %c0_i32_0 : i32, i32
  }
  func.func @transform_5(%arg0: i32) -> (i32, i32) {
    %c0_i32 = arith.constant 0 : i32
    %c0_i32_0 = arith.constant 0 : i32
    %c0_i32_1 = arith.constant 0 : i32
    return %c0_i32, %c0_i32_0 : i32, i32
  }
  func.func @transform_6(%arg0: i32) -> (i32, i32) {
    %c0_i32 = arith.constant 0 : i32
    %c0_i32_0 = arith.constant 0 : i32
    %c0_i32_1 = arith.constant 0 : i32
    return %c0_i32, %c0_i32_0 : i32, i32
  }
  func.func @transform_7(%arg0: i32) -> (i32, i32, i32) {
    %c0_i32 = arith.constant 0 : i32
    %c0_i32_0 = arith.constant 0 : i32
    %c0_i32_1 = arith.constant 0 : i32
    return %arg0, %c0_i32, %c0_i32_0 : i32, i32, i32
  }
}

</mosaic_0001>

<llo_original>
// kernel: forward.1
$region0: #{forward.1}
  #allocation0 [shape = 'u32[]', space=smem, size = 0x4, offset = 0x4, fixed_abs, tag = 'smem constant byte address 0x4 - core index']
  #allocation1 [shape = 'u32[72,128]{1,0:T(1,128)}', space=vmem, size = 0x9000, scoped, tag = 'internal scratch']
  %s0 = inlined_call_operand.vmem [shape: f32[2,1,512], index: 0, kind: input, shape index: {}]
  %s1 = inlined_call_operand.vmem [shape: f32[1,384], index: 1, kind: input, shape index: {}]
  %s2 = inlined_call_operand.vmem [shape: f32[16,9], index: 2, kind: input, shape index: {}]
  %s3 = inlined_call_operand.vmem [shape: f32[16,1], index: 3, kind: input, shape index: {}]
  %s4 = inlined_call_operand.vmem [shape: bf16[16,2048], index: 4, kind: input, shape index: {}]
  %s5 = inlined_call_operand.vmem [shape: bf16[2048,256], index: 5, kind: input, shape index: {}]
  %s6 = inlined_call_operand.vmem [shape: f32[1,256], index: 6, kind: input, shape index: {}]
  %s7 = inlined_call_operand.vmem [shape: f32[2,8,256], index: 7, kind: output, shape index: {}]
  %s8 = sld [smem:[#allocation0]]
  $region68: #{forward.1} parent=0
    _
  %s10 = ssub.s32 1, %s8
  %s11 = scalar_select 0, %s10, %s8
  loop: start=0, step=1, limit=4
  $region2: #{forward.1} parent=0 // loop_pre_header
    _
  $region3: #{forward.1} parent=0 // loop_header
    %s13 = sphi 0, %s17
    %p14 = scmp.ge.s32.totalorder %s13, 4
    %s23 = sphi 0, %s25
    %s26 = sphi 0, %s23
    %s27 = sphi 0, %s26
    %s43 = sphi 0, %s27
    %s47 = sphi 0, %s47
    %s49 = sphi 0, %s47
    %s50 = sphi 0, %s49
    %s64 = sphi 0, %s50
    %s68 = sphi 0, %s68
    %s70 = sphi 0, %s68
    %s71 = sphi 0, %s70
    %s85 = sphi 0, %s71
    %s89 = sphi 0, %s89
    %s91 = sphi 0, %s89
    %s92 = sphi 0, %s91
    %s106 = sphi 0, %s92
    %s110 = sphi 0, %s110
    %s112 = sphi 0, %s110
    %s113 = sphi 0, %s112
    %s127 = sphi 0, %s113
    %s131 = sphi 0, %s131
    %s133 = sphi 0, %s131
    %s134 = sphi 0, %s133
    %s148 = sphi 0, %s134
    %s152 = sphi 0, %s152
    %s154 = sphi 0, %s152
    %s155 = sphi 0, %s154
    %s169 = sphi 0, %s155
    %s175 = sphi 0, %s177
    %s178 = sphi 0, %s175
    %s179 = sphi 0, %s178
    %s195 = sphi 0, %s179
  $region4: #{forward.1} parent=0 // loop_header_branch
    %16 = sbr.rel (%p14) target = $region8
  $region5: #{forward.1} parent=0 // loop_body
    %s18 = ssub.s32 %s13, 1
    %s19 = ssub.s32 %s13, 2
    %s20 = sadd.s32 %s13, 1
    %s21 = ssub.s32 %s13, %s20
    %p22 = scmp.eq.s32.totalorder %s21, 0
    %s24 = sadd.s32 %s23, 1
    %s25 = scalar_select %p22, %s23, %s24
    %p28 = pneg %p22
    %p29 = scmp.eq.s32.totalorder %s13, 1
    %p30 = por %p28, %p29
    %p31 = scmp.ne.s32.totalorder %s23, %s26
    %p32 = scmp.eq.s32.totalorder %s13, 0
    %p33 = por %p31, %p32
    %p34 = scmp.ne.s32.totalorder %s23, %s26
    %p35 = scmp.eq.s32.totalorder %s18, 1
    %p36 = por %p34, %p35
    %p37 = scmp.ne.s32.totalorder %s26, %s27
    %p38 = scmp.eq.s32.totalorder %s18, 0
    %p39 = por %p37, %p38
    %p40 = scmp.ne.s32.totalorder %s26, %s27
    %p41 = scmp.eq.s32.totalorder %s19, 1
    %p42 = por %p40, %p41
    %p44 = scmp.ne.s32.totalorder %s27, %s43
    %p45 = scmp.eq.s32.totalorder %s19, 0
    %p46 = por %p44, %p45
    %s48 = sadd.s32 %s47, 1
    %p51 = scmp.eq.s32.totalorder %s13, 1
    %p52 = scmp.ne.s32.totalorder %s47, %s49
    %p53 = scmp.eq.s32.totalorder %s13, 0
    %p54 = por %p52, %p53
    %p55 = scmp.ne.s32.totalorder %s47, %s49
    %p56 = scmp.eq.s32.totalorder %s18, 1
    %p57 = por %p55, %p56
    %p58 = scmp.ne.s32.totalorder %s49, %s50
    %p59 = scmp.eq.s32.totalorder %s18, 0
    %p60 = por %p58, %p59
    %p61 = scmp.ne.s32.totalorder %s49, %s50
    %p62 = scmp.eq.s32.totalorder %s19, 1
    %p63 = por %p61, %p62
    %p65 = scmp.ne.s32.totalorder %s50, %s64
    %p66 = scmp.eq.s32.totalorder %s19, 0
    %p67 = por %p65, %p66
    %s69 = sadd.s32 %s68, 1
    %p72 = scmp.eq.s32.totalorder %s13, 1
    %p73 = scmp.ne.s32.totalorder %s68, %s70
    %p74 = scmp.eq.s32.totalorder %s13, 0
    %p75 = por %p73, %p74
    %p76 = scmp.ne.s32.totalorder %s68, %s70
    %p77 = scmp.eq.s32.totalorder %s18, 1
    %p78 = por %p76, %p77
    %p79 = scmp.ne.s32.totalorder %s70, %s71
    %p80 = scmp.eq.s32.totalorder %s18, 0
    %p81 = por %p79, %p80
    %p82 = scmp.ne.s32.totalorder %s70, %s71
    %p83 = scmp.eq.s32.totalorder %s19, 1
    %p84 = por %p82, %p83
    %p86 = scmp.ne.s32.totalorder %s71, %s85
    %p87 = scmp.eq.s32.totalorder %s19, 0
    %p88 = por %p86, %p87
    %s90 = sadd.s32 %s89, 1
    %p93 = scmp.eq.s32.totalorder %s13, 1
    %p94 = scmp.ne.s32.totalorder %s89, %s91
    %p95 = scmp.eq.s32.totalorder %s13, 0
    %p96 = por %p94, %p95
    %p97 = scmp.ne.s32.totalorder %s89, %s91
    %p98 = scmp.eq.s32.totalorder %s18, 1
    %p99 = por %p97, %p98
    %p100 = scmp.ne.s32.totalorder %s91, %s92
    %p101 = scmp.eq.s32.totalorder %s18, 0
    %p102 = por %p100, %p101
    %p103 = scmp.ne.s32.totalorder %s91, %s92
    %p104 = scmp.eq.s32.totalorder %s19, 1
    %p105 = por %p103, %p104
    %p107 = scmp.ne.s32.totalorder %s92, %s106
    %p108 = scmp.eq.s32.totalorder %s19, 0
    %p109 = por %p107, %p108
    %s111 = sadd.s32 %s110, 1
    %p114 = scmp.eq.s32.totalorder %s13, 1
    %p115 = scmp.ne.s32.totalorder %s110, %s112
    %p116 = scmp.eq.s32.totalorder %s13, 0
    %p117 = por %p115, %p116
    %p118 = scmp.ne.s32.totalorder %s110, %s112
    %p119 = scmp.eq.s32.totalorder %s18, 1
    %p120 = por %p118, %p119
    %p121 = scmp.ne.s32.totalorder %s112, %s113
    %p122 = scmp.eq.s32.totalorder %s18, 0
    %p123 = por %p121, %p122
    %p124 = scmp.ne.s32.totalorder %s112, %s113
    %p125 = scmp.eq.s32.totalorder %s19, 1
    %p126 = por %p124, %p125
    %p128 = scmp.ne.s32.totalorder %s113, %s127
    %p129 = scmp.eq.s32.totalorder %s19, 0
    %p130 = por %p128, %p129
    %s132 = sadd.s32 %s131, 1
    %p135 = scmp.eq.s32.totalorder %s13, 1
    %p136 = scmp.ne.s32.totalorder %s131, %s133
    %p137 = scmp.eq.s32.totalorder %s13, 0
    %p138 = por %p136, %p137
    %p139 = scmp.ne.s32.totalorder %s131, %s133
    %p140 = scmp.eq.s32.totalorder %s18, 1
    %p141 = por %p139, %p140
    %p142 = scmp.ne.s32.totalorder %s133, %s134
    %p143 = scmp.eq.s32.totalorder %s18, 0
    %p144 = por %p142, %p143
    %p145 = scmp.ne.s32.totalorder %s133, %s134
    %p146 = scmp.eq.s32.totalorder %s19, 1
    %p147 = por %p145, %p146
    %p149 = scmp.ne.s32.totalorder %s134, %s148
    %p150 = scmp.eq.s32.totalorder %s19, 0
    %p151 = por %p149, %p150
    %s153 = sadd.s32 %s152, 1
    %p156 = scmp.eq.s32.totalorder %s13, 1
    %p157 = scmp.ne.s32.totalorder %s152, %s154
    %p158 = scmp.eq.s32.totalorder %s13, 0
    %p159 = por %p157, %p158
    %p160 = scmp.ne.s32.totalorder %s152, %s154
    %p161 = scmp.eq.s32.totalorder %s18, 1
    %p162 = por %p160, %p161
    %p163 = scmp.ne.s32.totalorder %s154, %s155
    %p164 = scmp.eq.s32.totalorder %s18, 0
    %p165 = por %p163, %p164
    %p166 = scmp.ne.s32.totalorder %s154, %s155
    %p167 = scmp.eq.s32.totalorder %s19, 1
    %p168 = por %p166, %p167
    %p170 = scmp.ne.s32.totalorder %s155, %s169
    %p171 = scmp.eq.s32.totalorder %s19, 0
    %p172 = por %p170, %p171
    %s173 = ssub.s32 %s13, %s20
    %p174 = scmp.eq.s32.totalorder %s173, 0
    %s176 = sadd.s32 %s175, 1
    %s177 = scalar_select %p174, %s175, %s176
    %p180 = pneg %p174
    %p181 = scmp.eq.s32.totalorder %s13, 1
    %p182 = por %p180, %p181
    %p183 = scmp.ne.s32.totalorder %s175, %s178
    %p184 = scmp.eq.s32.totalorder %s13, 0
    %p185 = por %p183, %p184
    %p186 = scmp.ne.s32.totalorder %s175, %s178
    %p187 = scmp.eq.s32.totalorder %s18, 1
    %p188 = por %p186, %p187
    %p189 = scmp.ne.s32.totalorder %s178, %s179
    %p190 = scmp.eq.s32.totalorder %s18, 0
    %p191 = por %p189, %p190
    %p192 = scmp.ne.s32.totalorder %s178, %s179
    %p193 = scmp.eq.s32.totalorder %s19, 1
    %p194 = por %p192, %p193
    %p196 = scmp.ne.s32.totalorder %s179, %s195
    %p197 = scmp.eq.s32.totalorder %s19, 0
    %p198 = por %p196, %p197
    %p199 = scmp.le.s32.totalorder 1, %s13
    %p200 = scmp.lt.s32.totalorder %s13, 3
    %p201 = pnand %p199, %p200
    %p202 = pneg %p201
    // Predicated region
    $region9: #{forward.1} parent=5 // pred_check
      _
    $region10: #{forward.1} parent=5 // pred_check_branch
      %204 = sbr.rel (%p201) target = $region12
    $region11: #{forward.1} parent=5 // pred_region
      %s205 = ssub.s32 %s13, 1
      // Predicated region
      $region13: #{forward.1} parent=11 // pred_check
        %p206 = pneg %p60
      $region14: #{forward.1} parent=11 // pred_check_branch
        %208 = sbr.rel (%p206) target = $region16
      $region15: #{forward.1} parent=11 // pred_region
        _
      $region16: #{forward.1} parent=11 // pred_fallthru
        _
      // Predicated region
      $region17: #{forward.1} parent=11 // pred_check
        %p209 = pneg %p81
      $region18: #{forward.1} parent=11 // pred_check_branch
        %211 = sbr.rel (%p209) target = $region20
      $region19: #{forward.1} parent=11 // pred_region
        _
      $region20: #{forward.1} parent=11 // pred_fallthru
        _
      // Predicated region
      $region21: #{forward.1} parent=11 // pred_check
        %p212 = pneg %p102
      $region22: #{forward.1} parent=11 // pred_check_branch
        %214 = sbr.rel (%p212) target = $region24
      $region23: #{forward.1} parent=11 // pred_region
        _
      $region24: #{forward.1} parent=11 // pred_fallthru
        _
      // Predicated region
      $region25: #{forward.1} parent=11 // pred_check
        %p215 = pneg %p123
      $region26: #{forward.1} parent=11 // pred_check_branch
        %217 = sbr.rel (%p215) target = $region28
      $region27: #{forward.1} parent=11 // pred_region
        _
      $region28: #{forward.1} parent=11 // pred_fallthru
        _
      // Predicated region
      $region29: #{forward.1} parent=11 // pred_check
        %p218 = pneg %p144
      $region30: #{forward.1} parent=11 // pred_check_branch
        %220 = sbr.rel (%p218) target = $region32
      $region31: #{forward.1} parent=11 // pred_region
        _
      $region32: #{forward.1} parent=11 // pred_fallthru
        _
      // Predicated region
      $region33: #{forward.1} parent=11 // pred_check
        %p221 = pneg %p165
      $region34: #{forward.1} parent=11 // pred_check_branch
        %223 = sbr.rel (%p221) target = $region36
      $region35: #{forward.1} parent=11 // pred_region
        _
      $region36: #{forward.1} parent=11 // pred_fallthru
        _
    $region12: #{forward.1} parent=5 // pred_fallthru
      _
    %p224 = scmp.lt.s32.totalorder %s13, 2
    // Predicated region
    $region37: #{forward.1} parent=5 // pred_check
      %p225 = pneg %p224
    $region38: #{forward.1} parent=5 // pred_check_branch
      %227 = sbr.rel (%p225) target = $region40
    $region39: #{forward.1} parent=5 // pred_region
      // Predicated region
      $region41: #{forward.1} parent=39 // pred_check
        %p228 = pneg %p33
      $region42: #{forward.1} parent=39 // pred_check_branch
        %230 = sbr.rel (%p228) target = $region44
      $region43: #{forward.1} parent=39 // pred_region
        %p231 = scmp.lt.s32.totalorder %s13, 1
        %s232 = scalar_select %p231, %s13, 1
        %s233 = smul.addr %s232, 4
        %s234 = scalar_lea.vmem %s0, %s233
      $region44: #{forward.1} parent=39 // pred_fallthru
        _
    $region40: #{forward.1} parent=5 // pred_fallthru
      _
    %p235 = scmp.le.s32.totalorder 1, %s13
    %p236 = scmp.lt.s32.totalorder %s13, 3
    %p237 = pnand %p235, %p236
    %p238 = pneg %p237
    // Predicated region
    $region45: #{forward.1} parent=5 // pred_check
      _
    $region46: #{forward.1} parent=5 // pred_check_branch
      %240 = sbr.rel (%p237) target = $region48
    $region47: #{forward.1} parent=5 // pred_region
      %s241 = ssub.s32 %s13, 1
      %p242 = scmp.lt.s32.totalorder %s18, 1
      %s243 = scalar_select %p242, %s18, 1
      %s244 = smul.addr %s243, 4
      %s245 = scalar_lea.vmem %s0, %s244
      %p246 = pneg %p39
      %p247 = pneg %p36
      %p248 = pneg %p60
      %p249 = pneg %p57
      %p250 = pneg %p81
      %p251 = pneg %p78
      %p252 = pneg %p102
      %p253 = pneg %p99
      %p254 = pneg %p123
      %p255 = pneg %p120
      %p256 = pneg %p144
      %p257 = pneg %p141
      %p258 = pneg %p165
      %p259 = pneg %p162
      %p260 = pneg %p191
      %p261 = pneg %p188
      %p262 = scmp.lt.s32.totalorder %s18, 1
      %s263 = scalar_select %p262, %s18, 1
      %s264 = smul.addr %s263, 2
      %s265 = smul.addr %s264, 8
      %s266 = scalar_lea.vmem %s7, %s265
      %p267 = scmp.lt.s32.totalorder %s18, 1
      %s268 = scalar_select %p267, %s18, 1
      %s269 = smul.addr %s268, 4
      %s270 = scalar_lea.vmem %s0, %s269
      %p271 = scmp.lt.s32.totalorder %s18, 1
      %s272 = scalar_select %p271, %s18, 1
      %s273 = smul.addr %s272, 2
      %s274 = smul.addr %s273, 8
      %s275 = scalar_lea.vmem %s7, %s274
      %v277 = vld [vmem:[%s2] sm:$0xff]
      %v278 = vld [vmem:[%s2 + $0x8] sm:$0xff]
      %v279 = vld [vmem:[%s3] sm:$0xff]
      %v280 = vld [vmem:[%s3 + $0x8] sm:$0xff]
      %v281 = vld [vmem:[%s4] sm:$0xff]
      %v282 = vld [vmem:[%s4 + $0x8] sm:$0xff]
      %v283 = vld [vmem:[%s4 + $0x10] sm:$0xff]
      %v284 = vld [vmem:[%s4 + $0x18] sm:$0xff]
      %v285 = vld [vmem:[%s4 + $0x20] sm:$0xff]
      %v286 = vld [vmem:[%s4 + $0x28] sm:$0xff]
      %v287 = vld [vmem:[%s4 + $0x30] sm:$0xff]
      %v288 = vld [vmem:[%s4 + $0x38] sm:$0xff]
      %v289 = vld [vmem:[%s4 + $0x40] sm:$0xff]
      %v290 = vld [vmem:[%s4 + $0x48] sm:$0xff]
      %v291 = vld [vmem:[%s4 + $0x50] sm:$0xff]
      %v292 = vld [vmem:[%s4 + $0x58] sm:$0xff]
      %v293 = vld [vmem:[%s4 + $0x60] sm:$0xff]
      %v294 = vld [vmem:[%s4 + $0x68] sm:$0xff]
      %v295 = vld [vmem:[%s4 + $0x70] sm:$0xff]
      %v296 = vld [vmem:[%s4 + $0x78] sm:$0xff]
      %v297 = vlaneseq
      %v298 = vshrl.u32 %v297, 7
      %v299 = vadd.s32 %v298, 8
      %vm300 = vcmp.eq.s32.totalorder %v298, 8
      %vm301 = vcmp.eq.s32.totalorder %v299, 8
      loop: start=0, step=1, limit=3
      $region49: #{forward.1} parent=47 // loop_pre_header
        _
      $region50: #{forward.1} parent=47 // loop_header
        %s303 = sphi 0, %s307
        %p304 = scmp.ge.s32.totalorder %s303, 3
        %v308 = vphi 0.0, %v1788
        %v309 = vphi 0.0, %v1789
        %v310 = vphi 0.0, %v1790
        %v311 = vphi 0.0, %v1791
        %v312 = vphi 0.0, %v1792
        %v313 = vphi 0.0, %v1793
        %v314 = vphi 0.0, %v1794
        %v315 = vphi 0.0, %v1795
        %v316 = vphi 0.0, %v1796
        %v317 = vphi 0.0, %v1797
        %v318 = vphi 0.0, %v1798
        %v319 = vphi 0.0, %v1799
        %v320 = vphi 0.0, %v1800
        %v321 = vphi 0.0, %v1801
        %v322 = vphi 0.0, %v1802
        %v323 = vphi 0.0, %v1803
      $region51: #{forward.1} parent=47 // loop_header_branch
        %306 = sbr.rel (%p304) target = $region55
      $region52: #{forward.1} parent=47 // loop_body
        %s324 = smul.u32 %s303, 128
        %s325 = sshra.s32 %s324, 7
        %s326 = sand.u32 %s324, 127
        %s327 = scalar_lea.vmem %s270, %s325
        %v328 = vld [vmem:[%s327] sm:$0x3]
        %s329 = scalar_lea.vmem %s1, %s325
        %v330 = vld [vmem:[%s329] sm:$0x1]
        %332 = vset.pattern.permute.xlu0 0
        %333 = vperm.xlu0 %332, %v279
        %v334 = vpop.permute.xlu0 %333
        %337 = vset.pattern.permute.xlu0 0
        %338 = vperm.xlu0 %337, %v280
        %v339 = vpop.permute.xlu0 %338
        %342 = vset.pattern.permute.xlu0 0
        %343 = vperm.xlu0 %342, %v277
        %v344 = vpop.permute.xlu0 %343
        %347 = vset.pattern.permute.xlu0 0
        %348 = vperm.xlu0 %347, %v278
        %v349 = vpop.permute.xlu0 %348
        %v352 = vperm.slane %v328, 0
        %v354 = vmul.f32 %v344, %v352
        %v355 = vmul.f32 %v349, %v352
        %v356 = vadd.f32 %v334, %v354
        %v357 = vadd.f32 %v339, %v355
        %358 = vset.pattern.permute.xlu0 1
        %359 = vperm.xlu0 %358, %v277
        %v360 = vpop.permute.xlu0 %359
        %362 = vset.pattern.permute.xlu0 1
        %363 = vperm.xlu0 %362, %v278
        %v364 = vpop.permute.xlu0 %363
        %v366 = vperm.slane %v328, 1
        %v368 = vmul.f32 %v360, %v352
        %v369 = vmul.f32 %v360, %v366
        %v370 = vmul.f32 %v364, %v352
        %v371 = vmul.f32 %v364, %v366
        %376 = vrot.lane.b32.xlu0 %v368, 127
        %v377 = vpop.permute.xlu0 %376
        %378 = vrot.lane.b32.xlu0 %v369, 127
        %v379 = vpop.permute.xlu0 %378
        %380 = vrot.lane.b32.xlu0 %v370, 127
        %v381 = vpop.permute.xlu0 %380
        %382 = vrot.lane.b32.xlu0 %v371, 127
        %v383 = vpop.permute.xlu0 %382
        %vm384 = vcmask 1039360
        %v385 = vsel %vm384, %v377, %v379
        %v386 = vsel %vm384, %v381, %v383
        %v389 = vadd.f32 %v356, %v385
        %v390 = vadd.f32 %v357, %v386
        %391 = vset.pattern.permute.xlu0 2
        %392 = vperm.xlu0 %391, %v277
        %v393 = vpop.permute.xlu0 %392
        %395 = vset.pattern.permute.xlu0 2
        %396 = vperm.xlu0 %395, %v278
        %v397 = vpop.permute.xlu0 %396
        %v399 = vmul.f32 %v393, %v352
        %v400 = vmul.f32 %v393, %v366
        %v401 = vmul.f32 %v397, %v352
        %v402 = vmul.f32 %v397, %v366
        %407 = vrot.lane.b32.xlu0 %v399, 126
        %v408 = vpop.permute.xlu0 %407
        %409 = vrot.lane.b32.xlu0 %v400, 126
        %v410 = vpop.permute.xlu0 %409
        %411 = vrot.lane.b32.xlu0 %v401, 126
        %v412 = vpop.permute.xlu0 %411
        %413 = vrot.lane.b32.xlu0 %v402, 126
        %v414 = vpop.permute.xlu0 %413
        %vm415 = vcmask 1031168
        %v416 = vsel %vm415, %v408, %v410
        %v417 = vsel %vm415, %v412, %v414
        %v420 = vadd.f32 %v389, %v416
        %v421 = vadd.f32 %v390, %v417
        %422 = vset.pattern.permute.xlu0 3
        %423 = vperm.xlu0 %422, %v277
        %v424 = vpop.permute.xlu0 %423
        %426 = vset.pattern.permute.xlu0 3
        %427 = vperm.xlu0 %426, %v278
        %v428 = vpop.permute.xlu0 %427
        %v430 = vmul.f32 %v424, %v352
        %v431 = vmul.f32 %v424, %v366
        %v432 = vmul.f32 %v428, %v352
        %v433 = vmul.f32 %v428, %v366
        %438 = vrot.lane.b32.xlu0 %v430, 110
        %v439 = vpop.permute.xlu0 %438
        %440 = vrot.lane.b32.xlu0 %v431, 110
        %v441 = vpop.permute.xlu0 %440
        %442 = vrot.lane.b32.xlu0 %v432, 110
        %v443 = vpop.permute.xlu0 %442
        %444 = vrot.lane.b32.xlu0 %v433, 110
        %v445 = vpop.permute.xlu0 %444
        %vm446 = vcmask 900096
        %v447 = vsel %vm446, %v439, %v441
        %v448 = vsel %vm446, %v443, %v445
        %v451 = vadd.f32 %v420, %v447
        %v452 = vadd.f32 %v421, %v448
        %453 = vset.pattern.permute.xlu0 4
        %454 = vperm.xlu0 %453, %v277
        %v455 = vpop.permute.xlu0 %454
        %457 = vset.pattern.permute.xlu0 4
        %458 = vperm.xlu0 %457, %v278
        %v459 = vpop.permute.xlu0 %458
        %v461 = vmul.f32 %v455, %v352
        %v462 = vmul.f32 %v455, %v366
        %v463 = vmul.f32 %v459, %v352
        %v464 = vmul.f32 %v459, %v366
        %469 = vrot.lane.b32.xlu0 %v461, 109
        %v470 = vpop.permute.xlu0 %469
        %471 = vrot.lane.b32.xlu0 %v462, 109
        %v472 = vpop.permute.xlu0 %471
        %473 = vrot.lane.b32.xlu0 %v463, 109
        %v474 = vpop.permute.xlu0 %473
        %475 = vrot.lane.b32.xlu0 %v464, 109
        %v476 = vpop.permute.xlu0 %475
        %vm477 = vcmask 891904
        %v478 = vsel %vm477, %v470, %v472
        %v479 = vsel %vm477, %v474, %v476
        %v482 = vadd.f32 %v451, %v478
        %v483 = vadd.f32 %v452, %v479
        %484 = vset.pattern.permute.xlu0 5
        %485 = vperm.xlu0 %484, %v277
        %v486 = vpop.permute.xlu0 %485
        %488 = vset.pattern.permute.xlu0 5
        %489 = vperm.xlu0 %488, %v278
        %v490 = vpop.permute.xlu0 %489
        %v492 = vmul.f32 %v486, %v352
        %v493 = vmul.f32 %v486, %v366
        %v494 = vmul.f32 %v490, %v352
        %v495 = vmul.f32 %v490, %v366
        %500 = vrot.lane.b32.xlu0 %v492, 108
        %v501 = vpop.permute.xlu0 %500
        %502 = vrot.lane.b32.xlu0 %v493, 108
        %v503 = vpop.permute.xlu0 %502
        %504 = vrot.lane.b32.xlu0 %v494, 108
        %v505 = vpop.permute.xlu0 %504
        %506 = vrot.lane.b32.xlu0 %v495, 108
        %v507 = vpop.permute.xlu0 %506
        %vm508 = vcmask 883712
        %v509 = vsel %vm508, %v501, %v503
        %v510 = vsel %vm508, %v505, %v507
        %v513 = vadd.f32 %v482, %v509
        %v514 = vadd.f32 %v483, %v510
        %515 = vset.pattern.permute.xlu0 6
        %516 = vperm.xlu0 %515, %v277
        %v517 = vpop.permute.xlu0 %516
        %519 = vset.pattern.permute.xlu0 6
        %520 = vperm.xlu0 %519, %v278
        %v521 = vpop.permute.xlu0 %520
        %v523 = vmul.f32 %v517, %v352
        %v524 = vmul.f32 %v517, %v366
        %v525 = vmul.f32 %v521, %v352
        %v526 = vmul.f32 %v521, %v366
        %531 = vrot.lane.b32.xlu0 %v523, 92
        %v532 = vpop.permute.xlu0 %531
        %533 = vrot.lane.b32.xlu0 %v524, 92
        %v534 = vpop.permute.xlu0 %533
        %535 = vrot.lane.b32.xlu0 %v525, 92
        %v536 = vpop.permute.xlu0 %535
        %537 = vrot.lane.b32.xlu0 %v526, 92
        %v538 = vpop.permute.xlu0 %537
        %vm539 = vcmask 752640
        %v540 = vsel %vm539, %v532, %v534
        %v541 = vsel %vm539, %v536, %v538
        %v544 = vadd.f32 %v513, %v540
        %v545 = vadd.f32 %v514, %v541
        %546 = vset.pattern.permute.xlu0 7
        %547 = vperm.xlu0 %546, %v277
        %v548 = vpop.permute.xlu0 %547
        %550 = vset.pattern.permute.xlu0 7
        %551 = vperm.xlu0 %550, %v278
        %v552 = vpop.permute.xlu0 %551
        %v554 = vmul.f32 %v548, %v352
        %v555 = vmul.f32 %v548, %v366
        %v556 = vmul.f32 %v552, %v352
        %v557 = vmul.f32 %v552, %v366
        %562 = vrot.lane.b32.xlu0 %v554, 91
        %v563 = vpop.permute.xlu0 %562
        %564 = vrot.lane.b32.xlu0 %v555, 91
        %v565 = vpop.permute.xlu0 %564
        %566 = vrot.lane.b32.xlu0 %v556, 91
        %v567 = vpop.permute.xlu0 %566
        %568 = vrot.lane.b32.xlu0 %v557, 91
        %v569 = vpop.permute.xlu0 %568
        %vm570 = vcmask 744448
        %v571 = vsel %vm570, %v563, %v565
        %v572 = vsel %vm570, %v567, %v569
        %v575 = vadd.f32 %v544, %v571
        %v576 = vadd.f32 %v545, %v572
        %577 = vset.pattern.permute.xlu0 8
        %578 = vperm.xlu0 %577, %v277
        %v579 = vpop.permute.xlu0 %578
        %581 = vset.pattern.permute.xlu0 8
        %582 = vperm.xlu0 %581, %v278
        %v583 = vpop.permute.xlu0 %582
        %v585 = vmul.f32 %v579, %v352
        %v586 = vmul.f32 %v579, %v366
        %v587 = vmul.f32 %v583, %v352
        %v588 = vmul.f32 %v583, %v366
        %593 = vrot.lane.b32.xlu0 %v585, 90
        %v594 = vpop.permute.xlu0 %593
        %595 = vrot.lane.b32.xlu0 %v586, 90
        %v596 = vpop.permute.xlu0 %595
        %597 = vrot.lane.b32.xlu0 %v587, 90
        %v598 = vpop.permute.xlu0 %597
        %599 = vrot.lane.b32.xlu0 %v588, 90
        %v600 = vpop.permute.xlu0 %599
        %vm601 = vcmask 736256
        %v602 = vsel %vm601, %v594, %v596
        %v603 = vsel %vm601, %v598, %v600
        %v606 = vadd.f32 %v575, %v602
        %v607 = vadd.f32 %v576, %v603
        %v608 = vmax.f32 %v606, 0.0
        %v609 = vmax.f32 %v607, 0.0
        %v611 = vperm.slane %v330, 0
        %v613 = vmul.f32 %v608, %v611
        %v614 = vmul.f32 %v609, %v611
        %v615 = vsel %vm300, %v611, 0.0
        %v616 = vsel %vm301, %v611, 0.0
        %v617 = vadd.f32 %v613, %v615
        %v618 = vadd.f32 %v614, %v616
        %619 = vxpose.xlu0.b32.start [1/16] %v617, 128
        %620 = vxpose.xlu0.b32.cont [2/16] %v618, 128
        %621 = vxpose.xlu0.b32.cont [3/16] 0.0, 128
        %622 = vxpose.xlu0.b32.cont [4/16] 0.0, 128
        %623 = vxpose.xlu0.b32.cont [5/16] 0.0, 128
        %624 = vxpose.xlu0.b32.cont [6/16] 0.0, 128
        %625 = vxpose.xlu0.b32.cont [7/16] 0.0, 128
        %626 = vxpose.xlu0.b32.cont [8/16] 0.0, 128
        %627 = vxpose.xlu0.b32.cont [9/16] 0.0, 128
        %628 = vxpose.xlu0.b32.cont [10/16] 0.0, 128
        %629 = vxpose.xlu0.b32.cont [11/16] 0.0, 128
        %630 = vxpose.xlu0.b32.cont [12/16] 0.0, 128
        %631 = vxpose.xlu0.b32.cont [13/16] 0.0, 128
        %632 = vxpose.xlu0.b32.cont [14/16] 0.0, 128
        %633 = vxpose.xlu0.b32.cont [15/16] 0.0, 128
        %634 = vxpose.xlu0.b32.end [16/16] 0.0, 128
        %v635 = vpop.trf.xlu0
        %v636 = vpop.trf.xlu0
        %v637 = vpop.trf.xlu0
        %v638 = vpop.trf.xlu0
        %v639 = vpop.trf.xlu0
        %v640 = vpop.trf.xlu0
        %v641 = vpop.trf.xlu0
        %v642 = vpop.trf.xlu0
        %v643 = vpop.trf.xlu0
        %v644 = vpop.trf.xlu0
        %v645 = vpop.trf.xlu0
        %v646 = vpop.trf.xlu0
        %v647 = vpop.trf.xlu0
        %v648 = vpop.trf.xlu0
        %v649 = vpop.trf.xlu0
        %v650 = vpop.trf.xlu0
        %v651 = vpack.c.bf16 %v636, %v635
        %v652 = vpack.c.bf16 %v638, %v637
        %v653 = vpack.c.bf16 %v640, %v639
        %v654 = vpack.c.bf16 %v642, %v641
        %v655 = vpack.c.bf16 %v644, %v643
        %v656 = vpack.c.bf16 %v646, %v645
        %v657 = vpack.c.bf16 %v648, %v647
        %v658 = vpack.c.bf16 %v650, %v649
        %v675 = vunpack.c.l.b16 %v281
        %v676 = vunpack.c.h.b16 %v281
        %v677 = vunpack.c.l.b16 %v282
        %v678 = vunpack.c.h.b16 %v282
        %v679 = vunpack.c.l.b16 %v283
        %v680 = vunpack.c.h.b16 %v283
        %v681 = vunpack.c.l.b16 %v284
        %v682 = vunpack.c.h.b16 %v284
        %v683 = vunpack.c.l.b16 %v285
        %v684 = vunpack.c.h.b16 %v285
        %v685 = vunpack.c.l.b16 %v286
        %v686 = vunpack.c.h.b16 %v286
        %v687 = vunpack.c.l.b16 %v287
        %v688 = vunpack.c.h.b16 %v287
        %v689 = vunpack.c.l.b16 %v288
        %v690 = vunpack.c.h.b16 %v288
        %v691 = vunpack.c.l.b16 %v289
        %v692 = vunpack.c.h.b16 %v289
        %v693 = vunpack.c.l.b16 %v290
        %v694 = vunpack.c.h.b16 %v290
        %v695 = vunpack.c.l.b16 %v291
        %v696 = vunpack.c.h.b16 %v291
        %v697 = vunpack.c.l.b16 %v292
        %v698 = vunpack.c.h.b16 %v292
        %v699 = vunpack.c.l.b16 %v293
        %v700 = vunpack.c.h.b16 %v293
        %v701 = vunpack.c.l.b16 %v294
        %v702 = vunpack.c.h.b16 %v294
        %v703 = vunpack.c.l.b16 %v295
        %v704 = vunpack.c.h.b16 %v295
        %v705 = vunpack.c.l.b16 %v296
        %v706 = vunpack.c.h.b16 %v296
        %v707 = vpack.c.b16 %v691, %v675
        %v708 = vpack.c.b16 %v692, %v676
        %v709 = vpack.c.b16 %v693, %v677
        %v710 = vpack.c.b16 %v694, %v678
        %v711 = vpack.c.b16 %v695, %v679
        %v712 = vpack.c.b16 %v696, %v680
        %v713 = vpack.c.b16 %v697, %v681
        %v714 = vpack.c.b16 %v698, %v682
        %v715 = vpack.c.b16 %v699, %v683
        %v716 = vpack.c.b16 %v700, %v684
        %v717 = vpack.c.b16 %v701, %v685
        %v718 = vpack.c.b16 %v702, %v686
        %v719 = vpack.c.b16 %v703, %v687
        %v720 = vpack.c.b16 %v704, %v688
        %v721 = vpack.c.b16 %v705, %v689
        %v722 = vpack.c.b16 %v706, %v690
        %vm739 = vcmask 130048
        %v741 = vsel %vm739, %v651, 0
        %v744 = vsel %vm739, %v652, 0
        %v747 = vsel %vm739, %v653, 0
        %v750 = vsel %vm739, %v654, 0
        %v753 = vsel %vm739, %v655, 0
        %v756 = vsel %vm739, %v656, 0
        %v759 = vsel %vm739, %v657, 0
        %v762 = vsel %vm739, %v658, 0
        %764 = vmatpush.bf16.msra.mxu0 0
        %765 = vmatpush.bf16.msra.mxu0 0
        %766 = vmatpush.bf16.msra.mxu0 0
        %767 = vmatpush.bf16.msra.mxu0 0
        %768 = vmatpush.bf16.msra.mxu0 0
        %769 = vmatpush.bf16.msra.mxu0 0
        %770 = vmatpush.bf16.msra.mxu0 0
        %771 = vmatpush.bf16.msra.mxu0 %v707
        %772 = vmatmul.bf16.gmra.mxu0 %v741
        %v773 = vpop.f32.mrf.mxu0
        %v774 = vadd.f32 0.0, %v773
        %v775 = vpop.f32.mrf.mxu0
        %v776 = vadd.f32 0.0, %v775
        %777 = vmatmul.bf16.gmra.mxu0 %v744
        %v778 = vpop.f32.mrf.mxu0
        %v779 = vadd.f32 0.0, %v778
        %v780 = vpop.f32.mrf.mxu0
        %v781 = vadd.f32 0.0, %v780
        %782 = vmatmul.bf16.gmra.mxu0 %v747
        %v783 = vpop.f32.mrf.mxu0
        %v784 = vadd.f32 0.0, %v783
        %v785 = vpop.f32.mrf.mxu0
        %v786 = vadd.f32 0.0, %v785
        %787 = vmatmul.bf16.gmra.mxu0 %v750
        %v788 = vpop.f32.mrf.mxu0
        %v789 = vadd.f32 0.0, %v788
        %v790 = vpop.f32.mrf.mxu0
        %v791 = vadd.f32 0.0, %v790
        %792 = vmatmul.bf16.gmra.mxu0 %v753
        %v793 = vpop.f32.mrf.mxu0
        %v794 = vadd.f32 0.0, %v793
        %v795 = vpop.f32.mrf.mxu0
        %v796 = vadd.f32 0.0, %v795
        %797 = vmatmul.bf16.gmra.mxu0 %v756
        %v798 = vpop.f32.mrf.mxu0
        %v799 = vadd.f32 0.0, %v798
        %v800 = vpop.f32.mrf.mxu0
        %v801 = vadd.f32 0.0, %v800
        %802 = vmatmul.bf16.gmra.mxu0 %v759
        %v803 = vpop.f32.mrf.mxu0
        %v804 = vadd.f32 0.0, %v803
        %v805 = vpop.f32.mrf.mxu0
        %v806 = vadd.f32 0.0, %v805
        %807 = vmatmul.bf16.gmra.mxu0 %v762
        %v808 = vpop.f32.mrf.mxu0
        %v809 = vadd.f32 0.0, %v808
        %v810 = vpop.f32.mrf.mxu0
        %v811 = vadd.f32 0.0, %v810
        %812 = vdwg.mxu0
        %813 = vmatpush.bf16.msra.mxu0 0
        %814 = vmatpush.bf16.msra.mxu0 0
        %815 = vmatpush.bf16.msra.mxu0 0
        %816 = vmatpush.bf16.msra.mxu0 0
        %817 = vmatpush.bf16.msra.mxu0 0
        %818 = vmatpush.bf16.msra.mxu0 0
        %819 = vmatpush.bf16.msra.mxu0 0
        %820 = vmatpush.bf16.msra.mxu0 %v708
        %821 = vmatmul.bf16.gmra.mxu0 %v741
        %v822 = vpop.f32.mrf.mxu0
        %v823 = vadd.f32 0.0, %v822
        %v824 = vpop.f32.mrf.mxu0
        %v825 = vadd.f32 0.0, %v824
        %826 = vmatmul.bf16.gmra.mxu0 %v744
        %v827 = vpop.f32.mrf.mxu0
        %v828 = vadd.f32 0.0, %v827
        %v829 = vpop.f32.mrf.mxu0
        %v830 = vadd.f32 0.0, %v829
        %831 = vmatmul.bf16.gmra.mxu0 %v747
        %v832 = vpop.f32.mrf.mxu0
        %v833 = vadd.f32 0.0, %v832
        %v834 = vpop.f32.mrf.mxu0
        %v835 = vadd.f32 0.0, %v834
        %836 = vmatmul.bf16.gmra.mxu0 %v750
        %v837 = vpop.f32.mrf.mxu0
        %v838 = vadd.f32 0.0, %v837
        %v839 = vpop.f32.mrf.mxu0
        %v840 = vadd.f32 0.0, %v839
        %841 = vmatmul.bf16.gmra.mxu0 %v753
        %v842 = vpop.f32.mrf.mxu0
        %v843 = vadd.f32 0.0, %v842
        %v844 = vpop.f32.mrf.mxu0
        %v845 = vadd.f32 0.0, %v844
        %846 = vmatmul.bf16.gmra.mxu0 %v756
        %v847 = vpop.f32.mrf.mxu0
        %v848 = vadd.f32 0.0, %v847
        %v849 = vpop.f32.mrf.mxu0
        %v850 = vadd.f32 0.0, %v849
        %851 = vmatmul.bf16.gmra.mxu0 %v759
        %v852 = vpop.f32.mrf.mxu0
        %v853 = vadd.f32 0.0, %v852
        %v854 = vpop.f32.mrf.mxu0
        %v855 = vadd.f32 0.0, %v854
        %856 = vmatmul.bf16.gmra.mxu0 %v762
        %v857 = vpop.f32.mrf.mxu0
        %v858 = vadd.f32 0.0, %v857
        %v859 = vpop.f32.mrf.mxu0
        %v860 = vadd.f32 0.0, %v859
        %861 = vdwg.mxu0
        %862 = vmatpush.bf16.msra.mxu0 0
        %863 = vmatpush.bf16.msra.mxu0 0
        %864 = vmatpush.bf16.msra.mxu0 0
        %865 = vmatpush.bf16.msra.mxu0 0
        %866 = vmatpush.bf16.msra.mxu0 0
        %867 = vmatpush.bf16.msra.mxu0 0
        %868 = vmatpush.bf16.msra.mxu0 0
        %869 = vmatpush.bf16.msra.mxu0 %v709
        %870 = vmatmul.bf16.gmra.mxu0 %v741
        %v871 = vpop.f32.mrf.mxu0
        %v872 = vadd.f32 0.0, %v871
        %v873 = vpop.f32.mrf.mxu0
        %v874 = vadd.f32 0.0, %v873
        %875 = vmatmul.bf16.gmra.mxu0 %v744
        %v876 = vpop.f32.mrf.mxu0
        %v877 = vadd.f32 0.0, %v876
        %v878 = vpop.f32.mrf.mxu0
        %v879 = vadd.f32 0.0, %v878
        %880 = vmatmul.bf16.gmra.mxu0 %v747
        %v881 = vpop.f32.mrf.mxu0
        %v882 = vadd.f32 0.0, %v881
        %v883 = vpop.f32.mrf.mxu0
        %v884 = vadd.f32 0.0, %v883
        %885 = vmatmul.bf16.gmra.mxu0 %v750
        %v886 = vpop.f32.mrf.mxu0
        %v887 = vadd.f32 0.0, %v886
        %v888 = vpop.f32.mrf.mxu0
        %v889 = vadd.f32 0.0, %v888
        %890 = vmatmul.bf16.gmra.mxu0 %v753
        %v891 = vpop.f32.mrf.mxu0
        %v892 = vadd.f32 0.0, %v891
        %v893 = vpop.f32.mrf.mxu0
        %v894 = vadd.f32 0.0, %v893
        %895 = vmatmul.bf16.gmra.mxu0 %v756
        %v896 = vpop.f32.mrf.mxu0
        %v897 = vadd.f32 0.0, %v896
        %v898 = vpop.f32.mrf.mxu0
        %v899 = vadd.f32 0.0, %v898
        %900 = vmatmul.bf16.gmra.mxu0 %v759
        %v901 = vpop.f32.mrf.mxu0
        %v902 = vadd.f32 0.0, %v901
        %v903 = vpop.f32.mrf.mxu0
        %v904 = vadd.f32 0.0, %v903
        %905 = vmatmul.bf16.gmra.mxu0 %v762
        %v906 = vpop.f32.mrf.mxu0
        %v907 = vadd.f32 0.0, %v906
        %v908 = vpop.f32.mrf.mxu0
        %v909 = vadd.f32 0.0, %v908
        %910 = vdwg.mxu0
        %911 = vmatpush.bf16.msra.mxu0 0
        %912 = vmatpush.bf16.msra.mxu0 0
        %913 = vmatpush.bf16.msra.mxu0 0
        %914 = vmatpush.bf16.msra.mxu0 0
        %915 = vmatpush.bf16.msra.mxu0 0
        %916 = vmatpush.bf16.msra.mxu0 0
        %917 = vmatpush.bf16.msra.mxu0 0
        %918 = vmatpush.bf16.msra.mxu0 %v710
        %919 = vmatmul.bf16.gmra.mxu0 %v741
        %v920 = vpop.f32.mrf.mxu0
        %v921 = vadd.f32 0.0, %v920
        %v922 = vpop.f32.mrf.mxu0
        %v923 = vadd.f32 0.0, %v922
        %924 = vmatmul.bf16.gmra.mxu0 %v744
        %v925 = vpop.f32.mrf.mxu0
        %v926 = vadd.f32 0.0, %v925
        %v927 = vpop.f32.mrf.mxu0
        %v928 = vadd.f32 0.0, %v927
        %929 = vmatmul.bf16.gmra.mxu0 %v747
        %v930 = vpop.f32.mrf.mxu0
        %v931 = vadd.f32 0.0, %v930
        %v932 = vpop.f32.mrf.mxu0
        %v933 = vadd.f32 0.0, %v932
        %934 = vmatmul.bf16.gmra.mxu0 %v750
        %v935 = vpop.f32.mrf.mxu0
        %v936 = vadd.f32 0.0, %v935
        %v937 = vpop.f32.mrf.mxu0
        %v938 = vadd.f32 0.0, %v937
        %939 = vmatmul.bf16.gmra.mxu0 %v753
        %v940 = vpop.f32.mrf.mxu0
        %v941 = vadd.f32 0.0, %v940
        %v942 = vpop.f32.mrf.mxu0
        %v943 = vadd.f32 0.0, %v942
        %944 = vmatmul.bf16.gmra.mxu0 %v756
        %v945 = vpop.f32.mrf.mxu0
        %v946 = vadd.f32 0.0, %v945
        %v947 = vpop.f32.mrf.mxu0
        %v948 = vadd.f32 0.0, %v947
        %949 = vmatmul.bf16.gmra.mxu0 %v759
        %v950 = vpop.f32.mrf.mxu0
        %v951 = vadd.f32 0.0, %v950
        %v952 = vpop.f32.mrf.mxu0
        %v953 = vadd.f32 0.0, %v952
        %954 = vmatmul.bf16.gmra.mxu0 %v762
        %v955 = vpop.f32.mrf.mxu0
        %v956 = vadd.f32 0.0, %v955
        %v957 = vpop.f32.mrf.mxu0
        %v958 = vadd.f32 0.0, %v957
        %959 = vdwg.mxu0
        %960 = vmatpush.bf16.msra.mxu0 0
        %961 = vmatpush.bf16.msra.mxu0 0
        %962 = vmatpush.bf16.msra.mxu0 0
        %963 = vmatpush.bf16.msra.mxu0 0
        %964 = vmatpush.bf16.msra.mxu0 0
        %965 = vmatpush.bf16.msra.mxu0 0
        %966 = vmatpush.bf16.msra.mxu0 0
        %967 = vmatpush.bf16.msra.mxu0 %v711
        %968 = vmatmul.bf16.gmra.mxu0 %v741
        %v969 = vpop.f32.mrf.mxu0
        %v970 = vadd.f32 0.0, %v969
        %v971 = vpop.f32.mrf.mxu0
        %v972 = vadd.f32 0.0, %v971
        %973 = vmatmul.bf16.gmra.mxu0 %v744
        %v974 = vpop.f32.mrf.mxu0
        %v975 = vadd.f32 0.0, %v974
        %v976 = vpop.f32.mrf.mxu0
        %v977 = vadd.f32 0.0, %v976
        %978 = vmatmul.bf16.gmra.mxu0 %v747
        %v979 = vpop.f32.mrf.mxu0
        %v980 = vadd.f32 0.0, %v979
        %v981 = vpop.f32.mrf.mxu0
        %v982 = vadd.f32 0.0, %v981
        %983 = vmatmul.bf16.gmra.mxu0 %v750
        %v984 = vpop.f32.mrf.mxu0
        %v985 = vadd.f32 0.0, %v984
        %v986 = vpop.f32.mrf.mxu0
        %v987 = vadd.f32 0.0, %v986
        %988 = vmatmul.bf16.gmra.mxu0 %v753
        %v989 = vpop.f32.mrf.mxu0
        %v990 = vadd.f32 0.0, %v989
        %v991 = vpop.f32.mrf.mxu0
        %v992 = vadd.f32 0.0, %v991
        %993 = vmatmul.bf16.gmra.mxu0 %v756
        %v994 = vpop.f32.mrf.mxu0
        %v995 = vadd.f32 0.0, %v994
        %v996 = vpop.f32.mrf.mxu0
        %v997 = vadd.f32 0.0, %v996
        %998 = vmatmul.bf16.gmra.mxu0 %v759
        %v999 = vpop.f32.mrf.mxu0
        %v1000 = vadd.f32 0.0, %v999
        %v1001 = vpop.f32.mrf.mxu0
        %v1002 = vadd.f32 0.0, %v1001
        %1003 = vmatmul.bf16.gmra.mxu0 %v762
        %v1004 = vpop.f32.mrf.mxu0
        %v1005 = vadd.f32 0.0, %v1004
        %v1006 = vpop.f32.mrf.mxu0
        %v1007 = vadd.f32 0.0, %v1006
        %1008 = vdwg.mxu0
        %1009 = vmatpush.bf16.msra.mxu0 0
        %1010 = vmatpush.bf16.msra.mxu0 0
        %1011 = vmatpush.bf16.msra.mxu0 0
        %1012 = vmatpush.bf16.msra.mxu0 0
        %1013 = vmatpush.bf16.msra.mxu0 0
        %1014 = vmatpush.bf16.msra.mxu0 0
        %1015 = vmatpush.bf16.msra.mxu0 0
        %1016 = vmatpush.bf16.msra.mxu0 %v712
        %1017 = vmatmul.bf16.gmra.mxu0 %v741
        %v1018 = vpop.f32.mrf.mxu0
        %v1019 = vadd.f32 0.0, %v1018
        %v1020 = vpop.f32.mrf.mxu0
        %v1021 = vadd.f32 0.0, %v1020
        %1022 = vmatmul.bf16.gmra.mxu0 %v744
        %v1023 = vpop.f32.mrf.mxu0
        %v1024 = vadd.f32 0.0, %v1023
        %v1025 = vpop.f32.mrf.mxu0
        %v1026 = vadd.f32 0.0, %v1025
        %1027 = vmatmul.bf16.gmra.mxu0 %v747
        %v1028 = vpop.f32.mrf.mxu0
        %v1029 = vadd.f32 0.0, %v1028
        %v1030 = vpop.f32.mrf.mxu0
        %v1031 = vadd.f32 0.0, %v1030
        %1032 = vmatmul.bf16.gmra.mxu0 %v750
        %v1033 = vpop.f32.mrf.mxu0
        %v1034 = vadd.f32 0.0, %v1033
        %v1035 = vpop.f32.mrf.mxu0
        %v1036 = vadd.f32 0.0, %v1035
        %1037 = vmatmul.bf16.gmra.mxu0 %v753
        %v1038 = vpop.f32.mrf.mxu0
        %v1039 = vadd.f32 0.0, %v1038
        %v1040 = vpop.f32.mrf.mxu0
        %v1041 = vadd.f32 0.0, %v1040
        %1042 = vmatmul.bf16.gmra.mxu0 %v756
        %v1043 = vpop.f32.mrf.mxu0
        %v1044 = vadd.f32 0.0, %v1043
        %v1045 = vpop.f32.mrf.mxu0
        %v1046 = vadd.f32 0.0, %v1045
        %1047 = vmatmul.bf16.gmra.mxu0 %v759
        %v1048 = vpop.f32.mrf.mxu0
        %v1049 = vadd.f32 0.0, %v1048
        %v1050 = vpop.f32.mrf.mxu0
        %v1051 = vadd.f32 0.0, %v1050
        %1052 = vmatmul.bf16.gmra.mxu0 %v762
        %v1053 = vpop.f32.mrf.mxu0
        %v1054 = vadd.f32 0.0, %v1053
        %v1055 = vpop.f32.mrf.mxu0
        %v1056 = vadd.f32 0.0, %v1055
        %1057 = vdwg.mxu0
        %1058 = vmatpush.bf16.msra.mxu0 0
        %1059 = vmatpush.bf16.msra.mxu0 0
        %1060 = vmatpush.bf16.msra.mxu0 0
        %1061 = vmatpush.bf16.msra.mxu0 0
        %1062 = vmatpush.bf16.msra.mxu0 0
        %1063 = vmatpush.bf16.msra.mxu0 0
        %1064 = vmatpush.bf16.msra.mxu0 0
        %1065 = vmatpush.bf16.msra.mxu0 %v713
        %1066 = vmatmul.bf16.gmra.mxu0 %v741
        %v1067 = vpop.f32.mrf.mxu0
        %v1068 = vadd.f32 0.0, %v1067
        %v1069 = vpop.f32.mrf.mxu0
        %v1070 = vadd.f32 0.0, %v1069
        %1071 = vmatmul.bf16.gmra.mxu0 %v744
        %v1072 = vpop.f32.mrf.mxu0
        %v1073 = vadd.f32 0.0, %v1072
        %v1074 = vpop.f32.mrf.mxu0
        %v1075 = vadd.f32 0.0, %v1074
        %1076 = vmatmul.bf16.gmra.mxu0 %v747
        %v1077 = vpop.f32.mrf.mxu0
        %v1078 = vadd.f32 0.0, %v1077
        %v1079 = vpop.f32.mrf.mxu0
        %v1080 = vadd.f32 0.0, %v1079
        %1081 = vmatmul.bf16.gmra.mxu0 %v750
        %v1082 = vpop.f32.mrf.mxu0
        %v1083 = vadd.f32 0.0, %v1082
        %v1084 = vpop.f32.mrf.mxu0
        %v1085 = vadd.f32 0.0, %v1084
        %1086 = vmatmul.bf16.gmra.mxu0 %v753
        %v1087 = vpop.f32.mrf.mxu0
        %v1088 = vadd.f32 0.0, %v1087
        %v1089 = vpop.f32.mrf.mxu0
        %v1090 = vadd.f32 0.0, %v1089
        %1091 = vmatmul.bf16.gmra.mxu0 %v756
        %v1092 = vpop.f32.mrf.mxu0
        %v1093 = vadd.f32 0.0, %v1092
        %v1094 = vpop.f32.mrf.mxu0
        %v1095 = vadd.f32 0.0, %v1094
        %1096 = vmatmul.bf16.gmra.mxu0 %v759
        %v1097 = vpop.f32.mrf.mxu0
        %v1098 = vadd.f32 0.0, %v1097
        %v1099 = vpop.f32.mrf.mxu0
        %v1100 = vadd.f32 0.0, %v1099
        %1101 = vmatmul.bf16.gmra.mxu0 %v762
        %v1102 = vpop.f32.mrf.mxu0
        %v1103 = vadd.f32 0.0, %v1102
        %v1104 = vpop.f32.mrf.mxu0
        %v1105 = vadd.f32 0.0, %v1104
        %1106 = vdwg.mxu0
        %1107 = vmatpush.bf16.msra.mxu0 0
        %1108 = vmatpush.bf16.msra.mxu0 0
        %1109 = vmatpush.bf16.msra.mxu0 0
        %1110 = vmatpush.bf16.msra.mxu0 0
        %1111 = vmatpush.bf16.msra.mxu0 0
        %1112 = vmatpush.bf16.msra.mxu0 0
        %1113 = vmatpush.bf16.msra.mxu0 0
        %1114 = vmatpush.bf16.msra.mxu0 %v714
        %1115 = vmatmul.bf16.gmra.mxu0 %v741
        %v1116 = vpop.f32.mrf.mxu0
        %v1117 = vadd.f32 0.0, %v1116
        %v1118 = vpop.f32.mrf.mxu0
        %v1119 = vadd.f32 0.0, %v1118
        %1120 = vmatmul.bf16.gmra.mxu0 %v744
        %v1121 = vpop.f32.mrf.mxu0
        %v1122 = vadd.f32 0.0, %v1121
        %v1123 = vpop.f32.mrf.mxu0
        %v1124 = vadd.f32 0.0, %v1123
        %1125 = vmatmul.bf16.gmra.mxu0 %v747
        %v1126 = vpop.f32.mrf.mxu0
        %v1127 = vadd.f32 0.0, %v1126
        %v1128 = vpop.f32.mrf.mxu0
        %v1129 = vadd.f32 0.0, %v1128
        %1130 = vmatmul.bf16.gmra.mxu0 %v750
        %v1131 = vpop.f32.mrf.mxu0
        %v1132 = vadd.f32 0.0, %v1131
        %v1133 = vpop.f32.mrf.mxu0
        %v1134 = vadd.f32 0.0, %v1133
        %1135 = vmatmul.bf16.gmra.mxu0 %v753
        %v1136 = vpop.f32.mrf.mxu0
        %v1137 = vadd.f32 0.0, %v1136
        %v1138 = vpop.f32.mrf.mxu0
        %v1139 = vadd.f32 0.0, %v1138
        %1140 = vmatmul.bf16.gmra.mxu0 %v756
        %v1141 = vpop.f32.mrf.mxu0
        %v1142 = vadd.f32 0.0, %v1141
        %v1143 = vpop.f32.mrf.mxu0
        %v1144 = vadd.f32 0.0, %v1143
        %1145 = vmatmul.bf16.gmra.mxu0 %v759
        %v1146 = vpop.f32.mrf.mxu0
        %v1147 = vadd.f32 0.0, %v1146
        %v1148 = vpop.f32.mrf.mxu0
        %v1149 = vadd.f32 0.0, %v1148
        %1150 = vmatmul.bf16.gmra.mxu0 %v762
        %v1151 = vpop.f32.mrf.mxu0
        %v1152 = vadd.f32 0.0, %v1151
        %v1153 = vpop.f32.mrf.mxu0
        %v1154 = vadd.f32 0.0, %v1153
        %1155 = vdwg.mxu0
        %1156 = vmatpush.bf16.msra.mxu0 0
        %1157 = vmatpush.bf16.msra.mxu0 0
        %1158 = vmatpush.bf16.msra.mxu0 0
        %1159 = vmatpush.bf16.msra.mxu0 0
        %1160 = vmatpush.bf16.msra.mxu0 0
        %1161 = vmatpush.bf16.msra.mxu0 0
        %1162 = vmatpush.bf16.msra.mxu0 0
        %1163 = vmatpush.bf16.msra.mxu0 %v715
        %1164 = vmatmul.bf16.gmra.mxu0 %v741
        %v1165 = vpop.f32.mrf.mxu0
        %v1166 = vadd.f32 0.0, %v1165
        %v1167 = vpop.f32.mrf.mxu0
        %v1168 = vadd.f32 0.0, %v1167
        %1169 = vmatmul.bf16.gmra.mxu0 %v744
        %v1170 = vpop.f32.mrf.mxu0
        %v1171 = vadd.f32 0.0, %v1170
        %v1172 = vpop.f32.mrf.mxu0
        %v1173 = vadd.f32 0.0, %v1172
        %1174 = vmatmul.bf16.gmra.mxu0 %v747
        %v1175 = vpop.f32.mrf.mxu0
        %v1176 = vadd.f32 0.0, %v1175
        %v1177 = vpop.f32.mrf.mxu0
        %v1178 = vadd.f32 0.0, %v1177
        %1179 = vmatmul.bf16.gmra.mxu0 %v750
        %v1180 = vpop.f32.mrf.mxu0
        %v1181 = vadd.f32 0.0, %v1180
        %v1182 = vpop.f32.mrf.mxu0
        %v1183 = vadd.f32 0.0, %v1182
        %1184 = vmatmul.bf16.gmra.mxu0 %v753
        %v1185 = vpop.f32.mrf.mxu0
        %v1186 = vadd.f32 0.0, %v1185
        %v1187 = vpop.f32.mrf.mxu0
        %v1188 = vadd.f32 0.0, %v1187
        %1189 = vmatmul.bf16.gmra.mxu0 %v756
        %v1190 = vpop.f32.mrf.mxu0
        %v1191 = vadd.f32 0.0, %v1190
        %v1192 = vpop.f32.mrf.mxu0
        %v1193 = vadd.f32 0.0, %v1192
        %1194 = vmatmul.bf16.gmra.mxu0 %v759
        %v1195 = vpop.f32.mrf.mxu0
        %v1196 = vadd.f32 0.0, %v1195
        %v1197 = vpop.f32.mrf.mxu0
        %v1198 = vadd.f32 0.0, %v1197
        %1199 = vmatmul.bf16.gmra.mxu0 %v762
        %v1200 = vpop.f32.mrf.mxu0
        %v1201 = vadd.f32 0.0, %v1200
        %v1202 = vpop.f32.mrf.mxu0
        %v1203 = vadd.f32 0.0, %v1202
        %1204 = vdwg.mxu0
        %1205 = vmatpush.bf16.msra.mxu0 0
        %1206 = vmatpush.bf16.msra.mxu0 0
        %1207 = vmatpush.bf16.msra.mxu0 0
        %1208 = vmatpush.bf16.msra.mxu0 0
        %1209 = vmatpush.bf16.msra.mxu0 0
        %1210 = vmatpush.bf16.msra.mxu0 0
        %1211 = vmatpush.bf16.msra.mxu0 0
        %1212 = vmatpush.bf16.msra.mxu0 %v716
        %1213 = vmatmul.bf16.gmra.mxu0 %v741
        %v1214 = vpop.f32.mrf.mxu0
        %v1215 = vadd.f32 0.0, %v1214
        %v1216 = vpop.f32.mrf.mxu0
        %v1217 = vadd.f32 0.0, %v1216
        %1218 = vmatmul.bf16.gmra.mxu0 %v744
        %v1219 = vpop.f32.mrf.mxu0
        %v1220 = vadd.f32 0.0, %v1219
        %v1221 = vpop.f32.mrf.mxu0
        %v1222 = vadd.f32 0.0, %v1221
        %1223 = vmatmul.bf16.gmra.mxu0 %v747
        %v1224 = vpop.f32.mrf.mxu0
        %v1225 = vadd.f32 0.0, %v1224
        %v1226 = vpop.f32.mrf.mxu0
        %v1227 = vadd.f32 0.0, %v1226
        %1228 = vmatmul.bf16.gmra.mxu0 %v750
        %v1229 = vpop.f32.mrf.mxu0
        %v1230 = vadd.f32 0.0, %v1229
        %v1231 = vpop.f32.mrf.mxu0
        %v1232 = vadd.f32 0.0, %v1231
        %1233 = vmatmul.bf16.gmra.mxu0 %v753
        %v1234 = vpop.f32.mrf.mxu0
        %v1235 = vadd.f32 0.0, %v1234
        %v1236 = vpop.f32.mrf.mxu0
        %v1237 = vadd.f32 0.0, %v1236
        %1238 = vmatmul.bf16.gmra.mxu0 %v756
        %v1239 = vpop.f32.mrf.mxu0
        %v1240 = vadd.f32 0.0, %v1239
        %v1241 = vpop.f32.mrf.mxu0
        %v1242 = vadd.f32 0.0, %v1241
        %1243 = vmatmul.bf16.gmra.mxu0 %v759
        %v1244 = vpop.f32.mrf.mxu0
        %v1245 = vadd.f32 0.0, %v1244
        %v1246 = vpop.f32.mrf.mxu0
        %v1247 = vadd.f32 0.0, %v1246
        %1248 = vmatmul.bf16.gmra.mxu0 %v762
        %v1249 = vpop.f32.mrf.mxu0
        %v1250 = vadd.f32 0.0, %v1249
        %v1251 = vpop.f32.mrf.mxu0
        %v1252 = vadd.f32 0.0, %v1251
        %1253 = vdwg.mxu0
        %1254 = vmatpush.bf16.msra.mxu0 0
        %1255 = vmatpush.bf16.msra.mxu0 0
        %1256 = vmatpush.bf16.msra.mxu0 0
        %1257 = vmatpush.bf16.msra.mxu0 0
        %1258 = vmatpush.bf16.msra.mxu0 0
        %1259 = vmatpush.bf16.msra.mxu0 0
        %1260 = vmatpush.bf16.msra.mxu0 0
        %1261 = vmatpush.bf16.msra.mxu0 %v717
        %1262 = vmatmul.bf16.gmra.mxu0 %v741
        %v1263 = vpop.f32.mrf.mxu0
        %v1264 = vadd.f32 0.0, %v1263
        %v1265 = vpop.f32.mrf.mxu0
        %v1266 = vadd.f32 0.0, %v1265
        %1267 = vmatmul.bf16.gmra.mxu0 %v744
        %v1268 = vpop.f32.mrf.mxu0
        %v1269 = vadd.f32 0.0, %v1268
        %v1270 = vpop.f32.mrf.mxu0
        %v1271 = vadd.f32 0.0, %v1270
        %1272 = vmatmul.bf16.gmra.mxu0 %v747
        %v1273 = vpop.f32.mrf.mxu0
        %v1274 = vadd.f32 0.0, %v1273
        %v1275 = vpop.f32.mrf.mxu0
        %v1276 = vadd.f32 0.0, %v1275
        %1277 = vmatmul.bf16.gmra.mxu0 %v750
        %v1278 = vpop.f32.mrf.mxu0
        %v1279 = vadd.f32 0.0, %v1278
        %v1280 = vpop.f32.mrf.mxu0
        %v1281 = vadd.f32 0.0, %v1280
        %1282 = vmatmul.bf16.gmra.mxu0 %v753
        %v1283 = vpop.f32.mrf.mxu0
        %v1284 = vadd.f32 0.0, %v1283
        %v1285 = vpop.f32.mrf.mxu0
        %v1286 = vadd.f32 0.0, %v1285
        %1287 = vmatmul.bf16.gmra.mxu0 %v756
        %v1288 = vpop.f32.mrf.mxu0
        %v1289 = vadd.f32 0.0, %v1288
        %v1290 = vpop.f32.mrf.mxu0
        %v1291 = vadd.f32 0.0, %v1290
        %1292 = vmatmul.bf16.gmra.mxu0 %v759
        %v1293 = vpop.f32.mrf.mxu0
        %v1294 = vadd.f32 0.0, %v1293
        %v1295 = vpop.f32.mrf.mxu0
        %v1296 = vadd.f32 0.0, %v1295
        %1297 = vmatmul.bf16.gmra.mxu0 %v762
        %v1298 = vpop.f32.mrf.mxu0
        %v1299 = vadd.f32 0.0, %v1298
        %v1300 = vpop.f32.mrf.mxu0
        %v1301 = vadd.f32 0.0, %v1300
        %1302 = vdwg.mxu0
        %1303 = vmatpush.bf16.msra.mxu0 0
        %1304 = vmatpush.bf16.msra.mxu0 0
        %1305 = vmatpush.bf16.msra.mxu0 0
        %1306 = vmatpush.bf16.msra.mxu0 0
        %1307 = vmatpush.bf16.msra.mxu0 0
        %1308 = vmatpush.bf16.msra.mxu0 0
        %1309 = vmatpush.bf16.msra.mxu0 0
        %1310 = vmatpush.bf16.msra.mxu0 %v718
        %1311 = vmatmul.bf16.gmra.mxu0 %v741
        %v1312 = vpop.f32.mrf.mxu0
        %v1313 = vadd.f32 0.0, %v1312
        %v1314 = vpop.f32.mrf.mxu0
        %v1315 = vadd.f32 0.0, %v1314
        %1316 = vmatmul.bf16.gmra.mxu0 %v744
        %v1317 = vpop.f32.mrf.mxu0
        %v1318 = vadd.f32 0.0, %v1317
        %v1319 = vpop.f32.mrf.mxu0
        %v1320 = vadd.f32 0.0, %v1319
        %1321 = vmatmul.bf16.gmra.mxu0 %v747
        %v1322 = vpop.f32.mrf.mxu0
        %v1323 = vadd.f32 0.0, %v1322
        %v1324 = vpop.f32.mrf.mxu0
        %v1325 = vadd.f32 0.0, %v1324
        %1326 = vmatmul.bf16.gmra.mxu0 %v750
        %v1327 = vpop.f32.mrf.mxu0
        %v1328 = vadd.f32 0.0, %v1327
        %v1329 = vpop.f32.mrf.mxu0
        %v1330 = vadd.f32 0.0, %v1329
        %1331 = vmatmul.bf16.gmra.mxu0 %v753
        %v1332 = vpop.f32.mrf.mxu0
        %v1333 = vadd.f32 0.0, %v1332
        %v1334 = vpop.f32.mrf.mxu0
        %v1335 = vadd.f32 0.0, %v1334
        %1336 = vmatmul.bf16.gmra.mxu0 %v756
        %v1337 = vpop.f32.mrf.mxu0
        %v1338 = vadd.f32 0.0, %v1337
        %v1339 = vpop.f32.mrf.mxu0
        %v1340 = vadd.f32 0.0, %v1339
        %1341 = vmatmul.bf16.gmra.mxu0 %v759
        %v1342 = vpop.f32.mrf.mxu0
        %v1343 = vadd.f32 0.0, %v1342
        %v1344 = vpop.f32.mrf.mxu0
        %v1345 = vadd.f32 0.0, %v1344
        %1346 = vmatmul.bf16.gmra.mxu0 %v762
        %v1347 = vpop.f32.mrf.mxu0
        %v1348 = vadd.f32 0.0, %v1347
        %v1349 = vpop.f32.mrf.mxu0
        %v1350 = vadd.f32 0.0, %v1349
        %1351 = vdwg.mxu0
        %1352 = vmatpush.bf16.msra.mxu0 0
        %1353 = vmatpush.bf16.msra.mxu0 0
        %1354 = vmatpush.bf16.msra.mxu0 0
        %1355 = vmatpush.bf16.msra.mxu0 0
        %1356 = vmatpush.bf16.msra.mxu0 0
        %1357 = vmatpush.bf16.msra.mxu0 0
        %1358 = vmatpush.bf16.msra.mxu0 0
        %1359 = vmatpush.bf16.msra.mxu0 %v719
        %1360 = vmatmul.bf16.gmra.mxu0 %v741
        %v1361 = vpop.f32.mrf.mxu0
        %v1362 = vadd.f32 0.0, %v1361
        %v1363 = vpop.f32.mrf.mxu0
        %v1364 = vadd.f32 0.0, %v1363
        %1365 = vmatmul.bf16.gmra.mxu0 %v744
        %v1366 = vpop.f32.mrf.mxu0
        %v1367 = vadd.f32 0.0, %v1366
        %v1368 = vpop.f32.mrf.mxu0
        %v1369 = vadd.f32 0.0, %v1368
        %1370 = vmatmul.bf16.gmra.mxu0 %v747
        %v1371 = vpop.f32.mrf.mxu0
        %v1372 = vadd.f32 0.0, %v1371
        %v1373 = vpop.f32.mrf.mxu0
        %v1374 = vadd.f32 0.0, %v1373
        %1375 = vmatmul.bf16.gmra.mxu0 %v750
        %v1376 = vpop.f32.mrf.mxu0
        %v1377 = vadd.f32 0.0, %v1376
        %v1378 = vpop.f32.mrf.mxu0
        %v1379 = vadd.f32 0.0, %v1378
        %1380 = vmatmul.bf16.gmra.mxu0 %v753
        %v1381 = vpop.f32.mrf.mxu0
        %v1382 = vadd.f32 0.0, %v1381
        %v1383 = vpop.f32.mrf.mxu0
        %v1384 = vadd.f32 0.0, %v1383
        %1385 = vmatmul.bf16.gmra.mxu0 %v756
        %v1386 = vpop.f32.mrf.mxu0
        %v1387 = vadd.f32 0.0, %v1386
        %v1388 = vpop.f32.mrf.mxu0
        %v1389 = vadd.f32 0.0, %v1388
        %1390 = vmatmul.bf16.gmra.mxu0 %v759
        %v1391 = vpop.f32.mrf.mxu0
        %v1392 = vadd.f32 0.0, %v1391
        %v1393 = vpop.f32.mrf.mxu0
        %v1394 = vadd.f32 0.0, %v1393
        %1395 = vmatmul.bf16.gmra.mxu0 %v762
        %v1396 = vpop.f32.mrf.mxu0
        %v1397 = vadd.f32 0.0, %v1396
        %v1398 = vpop.f32.mrf.mxu0
        %v1399 = vadd.f32 0.0, %v1398
        %1400 = vdwg.mxu0
        %1401 = vmatpush.bf16.msra.mxu0 0
        %1402 = vmatpush.bf16.msra.mxu0 0
        %1403 = vmatpush.bf16.msra.mxu0 0
        %1404 = vmatpush.bf16.msra.mxu0 0
        %1405 = vmatpush.bf16.msra.mxu0 0
        %1406 = vmatpush.bf16.msra.mxu0 0
        %1407 = vmatpush.bf16.msra.mxu0 0
        %1408 = vmatpush.bf16.msra.mxu0 %v720
        %1409 = vmatmul.bf16.gmra.mxu0 %v741
        %v1410 = vpop.f32.mrf.mxu0
        %v1411 = vadd.f32 0.0, %v1410
        %v1412 = vpop.f32.mrf.mxu0
        %v1413 = vadd.f32 0.0, %v1412
        %1414 = vmatmul.bf16.gmra.mxu0 %v744
        %v1415 = vpop.f32.mrf.mxu0
        %v1416 = vadd.f32 0.0, %v1415
        %v1417 = vpop.f32.mrf.mxu0
        %v1418 = vadd.f32 0.0, %v1417
        %1419 = vmatmul.bf16.gmra.mxu0 %v747
        %v1420 = vpop.f32.mrf.mxu0
        %v1421 = vadd.f32 0.0, %v1420
        %v1422 = vpop.f32.mrf.mxu0
        %v1423 = vadd.f32 0.0, %v1422
        %1424 = vmatmul.bf16.gmra.mxu0 %v750
        %v1425 = vpop.f32.mrf.mxu0
        %v1426 = vadd.f32 0.0, %v1425
        %v1427 = vpop.f32.mrf.mxu0
        %v1428 = vadd.f32 0.0, %v1427
        %1429 = vmatmul.bf16.gmra.mxu0 %v753
        %v1430 = vpop.f32.mrf.mxu0
        %v1431 = vadd.f32 0.0, %v1430
        %v1432 = vpop.f32.mrf.mxu0
        %v1433 = vadd.f32 0.0, %v1432
        %1434 = vmatmul.bf16.gmra.mxu0 %v756
        %v1435 = vpop.f32.mrf.mxu0
        %v1436 = vadd.f32 0.0, %v1435
        %v1437 = vpop.f32.mrf.mxu0
        %v1438 = vadd.f32 0.0, %v1437
        %1439 = vmatmul.bf16.gmra.mxu0 %v759
        %v1440 = vpop.f32.mrf.mxu0
        %v1441 = vadd.f32 0.0, %v1440
        %v1442 = vpop.f32.mrf.mxu0
        %v1443 = vadd.f32 0.0, %v1442
        %1444 = vmatmul.bf16.gmra.mxu0 %v762
        %v1445 = vpop.f32.mrf.mxu0
        %v1446 = vadd.f32 0.0, %v1445
        %v1447 = vpop.f32.mrf.mxu0
        %v1448 = vadd.f32 0.0, %v1447
        %1449 = vdwg.mxu0
        %1450 = vmatpush.bf16.msra.mxu0 0
        %1451 = vmatpush.bf16.msra.mxu0 0
        %1452 = vmatpush.bf16.msra.mxu0 0
        %1453 = vmatpush.bf16.msra.mxu0 0
        %1454 = vmatpush.bf16.msra.mxu0 0
        %1455 = vmatpush.bf16.msra.mxu0 0
        %1456 = vmatpush.bf16.msra.mxu0 0
        %1457 = vmatpush.bf16.msra.mxu0 %v721
        %1458 = vmatmul.bf16.gmra.mxu0 %v741
        %v1459 = vpop.f32.mrf.mxu0
        %v1460 = vadd.f32 0.0, %v1459
        %v1461 = vpop.f32.mrf.mxu0
        %v1462 = vadd.f32 0.0, %v1461
        %1463 = vmatmul.bf16.gmra.mxu0 %v744
        %v1464 = vpop.f32.mrf.mxu0
        %v1465 = vadd.f32 0.0, %v1464
        %v1466 = vpop.f32.mrf.mxu0
        %v1467 = vadd.f32 0.0, %v1466
        %1468 = vmatmul.bf16.gmra.mxu0 %v747
        %v1469 = vpop.f32.mrf.mxu0
        %v1470 = vadd.f32 0.0, %v1469
        %v1471 = vpop.f32.mrf.mxu0
        %v1472 = vadd.f32 0.0, %v1471
        %1473 = vmatmul.bf16.gmra.mxu0 %v750
        %v1474 = vpop.f32.mrf.mxu0
        %v1475 = vadd.f32 0.0, %v1474
        %v1476 = vpop.f32.mrf.mxu0
        %v1477 = vadd.f32 0.0, %v1476
        %1478 = vmatmul.bf16.gmra.mxu0 %v753
        %v1479 = vpop.f32.mrf.mxu0
        %v1480 = vadd.f32 0.0, %v1479
        %v1481 = vpop.f32.mrf.mxu0
        %v1482 = vadd.f32 0.0, %v1481
        %1483 = vmatmul.bf16.gmra.mxu0 %v756
        %v1484 = vpop.f32.mrf.mxu0
        %v1485 = vadd.f32 0.0, %v1484
        %v1486 = vpop.f32.mrf.mxu0
        %v1487 = vadd.f32 0.0, %v1486
        %1488 = vmatmul.bf16.gmra.mxu0 %v759
        %v1489 = vpop.f32.mrf.mxu0
        %v1490 = vadd.f32 0.0, %v1489
        %v1491 = vpop.f32.mrf.mxu0
        %v1492 = vadd.f32 0.0, %v1491
        %1493 = vmatmul.bf16.gmra.mxu0 %v762
        %v1494 = vpop.f32.mrf.mxu0
        %v1495 = vadd.f32 0.0, %v1494
        %v1496 = vpop.f32.mrf.mxu0
        %v1497 = vadd.f32 0.0, %v1496
        %1498 = vdwg.mxu0
        %1499 = vmatpush.bf16.msra.mxu0 0
        %1500 = vmatpush.bf16.msra.mxu0 0
        %1501 = vmatpush.bf16.msra.mxu0 0
        %1502 = vmatpush.bf16.msra.mxu0 0
        %1503 = vmatpush.bf16.msra.mxu0 0
        %1504 = vmatpush.bf16.msra.mxu0 0
        %1505 = vmatpush.bf16.msra.mxu0 0
        %1506 = vmatpush.bf16.msra.mxu0 %v722
        %1507 = vmatmul.bf16.gmra.mxu0 %v741
        %v1508 = vpop.f32.mrf.mxu0
        %v1509 = vadd.f32 0.0, %v1508
        %v1510 = vpop.f32.mrf.mxu0
        %v1511 = vadd.f32 0.0, %v1510
        %1512 = vmatmul.bf16.gmra.mxu0 %v744
        %v1513 = vpop.f32.mrf.mxu0
        %v1514 = vadd.f32 0.0, %v1513
        %v1515 = vpop.f32.mrf.mxu0
        %v1516 = vadd.f32 0.0, %v1515
        %1517 = vmatmul.bf16.gmra.mxu0 %v747
        %v1518 = vpop.f32.mrf.mxu0
        %v1519 = vadd.f32 0.0, %v1518
        %v1520 = vpop.f32.mrf.mxu0
        %v1521 = vadd.f32 0.0, %v1520
        %1522 = vmatmul.bf16.gmra.mxu0 %v750
        %v1523 = vpop.f32.mrf.mxu0
        %v1524 = vadd.f32 0.0, %v1523
        %v1525 = vpop.f32.mrf.mxu0
        %v1526 = vadd.f32 0.0, %v1525
        %1527 = vmatmul.bf16.gmra.mxu0 %v753
        %v1528 = vpop.f32.mrf.mxu0
        %v1529 = vadd.f32 0.0, %v1528
        %v1530 = vpop.f32.mrf.mxu0
        %v1531 = vadd.f32 0.0, %v1530
        %1532 = vmatmul.bf16.gmra.mxu0 %v756
        %v1533 = vpop.f32.mrf.mxu0
        %v1534 = vadd.f32 0.0, %v1533
        %v1535 = vpop.f32.mrf.mxu0
        %v1536 = vadd.f32 0.0, %v1535
        %1537 = vmatmul.bf16.gmra.mxu0 %v759
        %v1538 = vpop.f32.mrf.mxu0
        %v1539 = vadd.f32 0.0, %v1538
        %v1540 = vpop.f32.mrf.mxu0
        %v1541 = vadd.f32 0.0, %v1540
        %1542 = vmatmul.bf16.gmra.mxu0 %v762
        %v1543 = vpop.f32.mrf.mxu0
        %v1544 = vadd.f32 0.0, %v1543
        %v1545 = vpop.f32.mrf.mxu0
        %v1546 = vadd.f32 0.0, %v1545
        %1547 = vdwg.mxu0
        %v1548 = vmax.f32 %v308, %v774
        %v1549 = vmax.f32 %v309, %v823
        %v1550 = vmax.f32 %v310, %v872
        %v1551 = vmax.f32 %v311, %v921
        %v1552 = vmax.f32 %v312, %v970
        %v1553 = vmax.f32 %v313, %v1019
        %v1554 = vmax.f32 %v314, %v1068
        %v1555 = vmax.f32 %v315, %v1117
        %v1556 = vmax.f32 %v316, %v1166
        %v1557 = vmax.f32 %v317, %v1215
        %v1558 = vmax.f32 %v318, %v1264
        %v1559 = vmax.f32 %v319, %v1313
        %v1560 = vmax.f32 %v320, %v1362
        %v1561 = vmax.f32 %v321, %v1411
        %v1562 = vmax.f32 %v322, %v1460
        %v1563 = vmax.f32 %v323, %v1509
        %v1564 = vmax.f32 %v1548, %v776
        %v1565 = vmax.f32 %v1549, %v825
        %v1566 = vmax.f32 %v1550, %v874
        %v1567 = vmax.f32 %v1551, %v923
        %v1568 = vmax.f32 %v1552, %v972
        %v1569 = vmax.f32 %v1553, %v1021
        %v1570 = vmax.f32 %v1554, %v1070
        %v1571 = vmax.f32 %v1555, %v1119
        %v1572 = vmax.f32 %v1556, %v1168
        %v1573 = vmax.f32 %v1557, %v1217
        %v1574 = vmax.f32 %v1558, %v1266
        %v1575 = vmax.f32 %v1559, %v1315
        %v1576 = vmax.f32 %v1560, %v1364
        %v1577 = vmax.f32 %v1561, %v1413
        %v1578 = vmax.f32 %v1562, %v1462
        %v1579 = vmax.f32 %v1563, %v1511
        %v1580 = vmax.f32 %v1564, %v779
        %v1581 = vmax.f32 %v1565, %v828
        %v1582 = vmax.f32 %v1566, %v877
        %v1583 = vmax.f32 %v1567, %v926
        %v1584 = vmax.f32 %v1568, %v975
        %v1585 = vmax.f32 %v1569, %v1024
        %v1586 = vmax.f32 %v1570, %v1073
        %v1587 = vmax.f32 %v1571, %v1122
        %v1588 = vmax.f32 %v1572, %v1171
        %v1589 = vmax.f32 %v1573, %v1220
        %v1590 = vmax.f32 %v1574, %v1269
        %v1591 = vmax.f32 %v1575, %v1318
        %v1592 = vmax.f32 %v1576, %v1367
        %v1593 = vmax.f32 %v1577, %v1416
        %v1594 = vmax.f32 %v1578, %v1465
        %v1595 = vmax.f32 %v1579, %v1514
        %v1596 = vmax.f32 %v1580, %v781
        %v1597 = vmax.f32 %v1581, %v830
        %v1598 = vmax.f32 %v1582, %v879
        %v1599 = vmax.f32 %v1583, %v928
        %v1600 = vmax.f32 %v1584, %v977
        %v1601 = vmax.f32 %v1585, %v1026
        %v1602 = vmax.f32 %v1586, %v1075
        %v1603 = vmax.f32 %v1587, %v1124
        %v1604 = vmax.f32 %v1588, %v1173
        %v1605 = vmax.f32 %v1589, %v1222
        %v1606 = vmax.f32 %v1590, %v1271
        %v1607 = vmax.f32 %v1591, %v1320
        %v1608 = vmax.f32 %v1592, %v1369
        %v1609 = vmax.f32 %v1593, %v1418
        %v1610 = vmax.f32 %v1594, %v1467
        %v1611 = vmax.f32 %v1595, %v1516
        %v1612 = vmax.f32 %v1596, %v784
        %v1613 = vmax.f32 %v1597, %v833
        %v1614 = vmax.f32 %v1598, %v882
        %v1615 = vmax.f32 %v1599, %v931
        %v1616 = vmax.f32 %v1600, %v980
        %v1617 = vmax.f32 %v1601, %v1029
        %v1618 = vmax.f32 %v1602, %v1078
        %v1619 = vmax.f32 %v1603, %v1127
        %v1620 = vmax.f32 %v1604, %v1176
        %v1621 = vmax.f32 %v1605, %v1225
        %v1622 = vmax.f32 %v1606, %v1274
        %v1623 = vmax.f32 %v1607, %v1323
        %v1624 = vmax.f32 %v1608, %v1372
        %v1625 = vmax.f32 %v1609, %v1421
        %v1626 = vmax.f32 %v1610, %v1470
        %v1627 = vmax.f32 %v1611, %v1519
        %v1628 = vmax.f32 %v1612, %v786
        %v1629 = vmax.f32 %v1613, %v835
        %v1630 = vmax.f32 %v1614, %v884
        %v1631 = vmax.f32 %v1615, %v933
        %v1632 = vmax.f32 %v1616, %v982
        %v1633 = vmax.f32 %v1617, %v1031
        %v1634 = vmax.f32 %v1618, %v1080
        %v1635 = vmax.f32 %v1619, %v1129
        %v1636 = vmax.f32 %v1620, %v1178
        %v1637 = vmax.f32 %v1621, %v1227
        %v1638 = vmax.f32 %v1622, %v1276
        %v1639 = vmax.f32 %v1623, %v1325
        %v1640 = vmax.f32 %v1624, %v1374
        %v1641 = vmax.f32 %v1625, %v1423
        %v1642 = vmax.f32 %v1626, %v1472
        %v1643 = vmax.f32 %v1627, %v1521
        %v1644 = vmax.f32 %v1628, %v789
        %v1645 = vmax.f32 %v1629, %v838
        %v1646 = vmax.f32 %v1630, %v887
        %v1647 = vmax.f32 %v1631, %v936
        %v1648 = vmax.f32 %v1632, %v985
        %v1649 = vmax.f32 %v1633, %v1034
        %v1650 = vmax.f32 %v1634, %v1083
        %v1651 = vmax.f32 %v1635, %v1132
        %v1652 = vmax.f32 %v1636, %v1181
        %v1653 = vmax.f32 %v1637, %v1230
        %v1654 = vmax.f32 %v1638, %v1279
        %v1655 = vmax.f32 %v1639, %v1328
        %v1656 = vmax.f32 %v1640, %v1377
        %v1657 = vmax.f32 %v1641, %v1426
        %v1658 = vmax.f32 %v1642, %v1475
        %v1659 = vmax.f32 %v1643, %v1524
        %v1660 = vmax.f32 %v1644, %v791
        %v1661 = vmax.f32 %v1645, %v840
        %v1662 = vmax.f32 %v1646, %v889
        %v1663 = vmax.f32 %v1647, %v938
        %v1664 = vmax.f32 %v1648, %v987
        %v1665 = vmax.f32 %v1649, %v1036
        %v1666 = vmax.f32 %v1650, %v1085
        %v1667 = vmax.f32 %v1651, %v1134
        %v1668 = vmax.f32 %v1652, %v1183
        %v1669 = vmax.f32 %v1653, %v1232
        %v1670 = vmax.f32 %v1654, %v1281
        %v1671 = vmax.f32 %v1655, %v1330
        %v1672 = vmax.f32 %v1656, %v1379
        %v1673 = vmax.f32 %v1657, %v1428
        %v1674 = vmax.f32 %v1658, %v1477
        %v1675 = vmax.f32 %v1659, %v1526
        %v1676 = vmax.f32 %v1660, %v794
        %v1677 = vmax.f32 %v1661, %v843
        %v1678 = vmax.f32 %v1662, %v892
        %v1679 = vmax.f32 %v1663, %v941
        %v1680 = vmax.f32 %v1664, %v990
        %v1681 = vmax.f32 %v1665, %v1039
        %v1682 = vmax.f32 %v1666, %v1088
        %v1683 = vmax.f32 %v1667, %v1137
        %v1684 = vmax.f32 %v1668, %v1186
        %v1685 = vmax.f32 %v1669, %v1235
        %v1686 = vmax.f32 %v1670, %v1284
        %v1687 = vmax.f32 %v1671, %v1333
        %v1688 = vmax.f32 %v1672, %v1382
        %v1689 = vmax.f32 %v1673, %v1431
        %v1690 = vmax.f32 %v1674, %v1480
        %v1691 = vmax.f32 %v1675, %v1529
        %v1692 = vmax.f32 %v1676, %v796
        %v1693 = vmax.f32 %v1677, %v845
        %v1694 = vmax.f32 %v1678, %v894
        %v1695 = vmax.f32 %v1679, %v943
        %v1696 = vmax.f32 %v1680, %v992
        %v1697 = vmax.f32 %v1681, %v1041
        %v1698 = vmax.f32 %v1682, %v1090
        %v1699 = vmax.f32 %v1683, %v1139
        %v1700 = vmax.f32 %v1684, %v1188
        %v1701 = vmax.f32 %v1685, %v1237
        %v1702 = vmax.f32 %v1686, %v1286
        %v1703 = vmax.f32 %v1687, %v1335
        %v1704 = vmax.f32 %v1688, %v1384
        %v1705 = vmax.f32 %v1689, %v1433
        %v1706 = vmax.f32 %v1690, %v1482
        %v1707 = vmax.f32 %v1691, %v1531
        %v1708 = vmax.f32 %v1692, %v799
        %v1709 = vmax.f32 %v1693, %v848
        %v1710 = vmax.f32 %v1694, %v897
        %v1711 = vmax.f32 %v1695, %v946
        %v1712 = vmax.f32 %v1696, %v995
        %v1713 = vmax.f32 %v1697, %v1044
        %v1714 = vmax.f32 %v1698, %v1093
        %v1715 = vmax.f32 %v1699, %v1142
        %v1716 = vmax.f32 %v1700, %v1191
        %v1717 = vmax.f32 %v1701, %v1240
        %v1718 = vmax.f32 %v1702, %v1289
        %v1719 = vmax.f32 %v1703, %v1338
        %v1720 = vmax.f32 %v1704, %v1387
        %v1721 = vmax.f32 %v1705, %v1436
        %v1722 = vmax.f32 %v1706, %v1485
        %v1723 = vmax.f32 %v1707, %v1534
        %v1724 = vmax.f32 %v1708, %v801
        %v1725 = vmax.f32 %v1709, %v850
        %v1726 = vmax.f32 %v1710, %v899
        %v1727 = vmax.f32 %v1711, %v948
        %v1728 = vmax.f32 %v1712, %v997
        %v1729 = vmax.f32 %v1713, %v1046
        %v1730 = vmax.f32 %v1714, %v1095
        %v1731 = vmax.f32 %v1715, %v1144
        %v1732 = vmax.f32 %v1716, %v1193
        %v1733 = vmax.f32 %v1717, %v1242
        %v1734 = vmax.f32 %v1718, %v1291
        %v1735 = vmax.f32 %v1719, %v1340
        %v1736 = vmax.f32 %v1720, %v1389
        %v1737 = vmax.f32 %v1721, %v1438
        %v1738 = vmax.f32 %v1722, %v1487
        %v1739 = vmax.f32 %v1723, %v1536
        %v1740 = vmax.f32 %v1724, %v804
        %v1741 = vmax.f32 %v1725, %v853
        %v1742 = vmax.f32 %v1726, %v902
        %v1743 = vmax.f32 %v1727, %v951
        %v1744 = vmax.f32 %v1728, %v1000
        %v1745 = vmax.f32 %v1729, %v1049
        %v1746 = vmax.f32 %v1730, %v1098
        %v1747 = vmax.f32 %v1731, %v1147
        %v1748 = vmax.f32 %v1732, %v1196
        %v1749 = vmax.f32 %v1733, %v1245
        %v1750 = vmax.f32 %v1734, %v1294
        %v1751 = vmax.f32 %v1735, %v1343
        %v1752 = vmax.f32 %v1736, %v1392
        %v1753 = vmax.f32 %v1737, %v1441
        %v1754 = vmax.f32 %v1738, %v1490
        %v1755 = vmax.f32 %v1739, %v1539
        %v1756 = vmax.f32 %v1740, %v806
        %v1757 = vmax.f32 %v1741, %v855
        %v1758 = vmax.f32 %v1742, %v904
        %v1759 = vmax.f32 %v1743, %v953
        %v1760 = vmax.f32 %v1744, %v1002
        %v1761 = vmax.f32 %v1745, %v1051
        %v1762 = vmax.f32 %v1746, %v1100
        %v1763 = vmax.f32 %v1747, %v1149
        %v1764 = vmax.f32 %v1748, %v1198
        %v1765 = vmax.f32 %v1749, %v1247
        %v1766 = vmax.f32 %v1750, %v1296
        %v1767 = vmax.f32 %v1751, %v1345
        %v1768 = vmax.f32 %v1752, %v1394
        %v1769 = vmax.f32 %v1753, %v1443
        %v1770 = vmax.f32 %v1754, %v1492
        %v1771 = vmax.f32 %v1755, %v1541
        %v1772 = vmax.f32 %v1756, %v809
        %v1773 = vmax.f32 %v1757, %v858
        %v1774 = vmax.f32 %v1758, %v907
        %v1775 = vmax.f32 %v1759, %v956
        %v1776 = vmax.f32 %v1760, %v1005
        %v1777 = vmax.f32 %v1761, %v1054
        %v1778 = vmax.f32 %v1762, %v1103
        %v1779 = vmax.f32 %v1763, %v1152
        %v1780 = vmax.f32 %v1764, %v1201
        %v1781 = vmax.f32 %v1765, %v1250
        %v1782 = vmax.f32 %v1766, %v1299
        %v1783 = vmax.f32 %v1767, %v1348
        %v1784 = vmax.f32 %v1768, %v1397
        %v1785 = vmax.f32 %v1769, %v1446
        %v1786 = vmax.f32 %v1770, %v1495
        %v1787 = vmax.f32 %v1771, %v1544
        %v1788 = vmax.f32 %v1772, %v811
        %v1789 = vmax.f32 %v1773, %v860
        %v1790 = vmax.f32 %v1774, %v909
        %v1791 = vmax.f32 %v1775, %v958
        %v1792 = vmax.f32 %v1776, %v1007
        %v1793 = vmax.f32 %v1777, %v1056
        %v1794 = vmax.f32 %v1778, %v1105
        %v1795 = vmax.f32 %v1779, %v1154
        %v1796 = vmax.f32 %v1780, %v1203
        %v1797 = vmax.f32 %v1781, %v1252
        %v1798 = vmax.f32 %v1782, %v1301
        %v1799 = vmax.f32 %v1783, %v1350
        %v1800 = vmax.f32 %v1784, %v1399
        %v1801 = vmax.f32 %v1785, %v1448
        %v1802 = vmax.f32 %v1786, %v1497
        %v1803 = vmax.f32 %v1787, %v1546
      $region53: #{forward.1} parent=47 // loop_footer
        %s307 = sadd.s32 1, %s303
      $region54: #{forward.1} parent=47 // loop_footer_branch
        %302 = sbr.rel target = $region50
      $region55: #{forward.1} parent=47 // loop_exit
        _
      %v1804 = vrot.slane %v308, 4
      %v1805 = vmax.f32 %v308, %v1804
      %v1806 = vrot.slane %v1805, 2
      %v1807 = vmax.f32 %v1805, %v1806
      %v1808 = vrot.slane %v1807, 1
      %v1809 = vmax.f32 %v1807, %v1808
      %v1810 = vrot.slane %v309, 4
      %v1811 = vmax.f32 %v309, %v1810
      %v1812 = vrot.slane %v1811, 2
      %v1813 = vmax.f32 %v1811, %v1812
      %v1814 = vrot.slane %v1813, 1
      %v1815 = vmax.f32 %v1813, %v1814
      %v1816 = vrot.slane %v310, 4
      %v1817 = vmax.f32 %v310, %v1816
      %v1818 = vrot.slane %v1817, 2
      %v1819 = vmax.f32 %v1817, %v1818
      %v1820 = vrot.slane %v1819, 1
      %v1821 = vmax.f32 %v1819, %v1820
      %v1822 = vrot.slane %v311, 4
      %v1823 = vmax.f32 %v311, %v1822
      %v1824 = vrot.slane %v1823, 2
      %v1825 = vmax.f32 %v1823, %v1824
      %v1826 = vrot.slane %v1825, 1
      %v1827 = vmax.f32 %v1825, %v1826
      %v1828 = vrot.slane %v312, 4
      %v1829 = vmax.f32 %v312, %v1828
      %v1830 = vrot.slane %v1829, 2
      %v1831 = vmax.f32 %v1829, %v1830
      %v1832 = vrot.slane %v1831, 1
      %v1833 = vmax.f32 %v1831, %v1832
      %v1834 = vrot.slane %v313, 4
      %v1835 = vmax.f32 %v313, %v1834
      %v1836 = vrot.slane %v1835, 2
      %v1837 = vmax.f32 %v1835, %v1836
      %v1838 = vrot.slane %v1837, 1
      %v1839 = vmax.f32 %v1837, %v1838
      %v1840 = vrot.slane %v314, 4
      %v1841 = vmax.f32 %v314, %v1840
      %v1842 = vrot.slane %v1841, 2
      %v1843 = vmax.f32 %v1841, %v1842
      %v1844 = vrot.slane %v1843, 1
      %v1845 = vmax.f32 %v1843, %v1844
      %v1846 = vrot.slane %v315, 4
      %v1847 = vmax.f32 %v315, %v1846
      %v1848 = vrot.slane %v1847, 2
      %v1849 = vmax.f32 %v1847, %v1848
      %v1850 = vrot.slane %v1849, 1
      %v1851 = vmax.f32 %v1849, %v1850
      %v1852 = vrot.slane %v316, 4
      %v1853 = vmax.f32 %v316, %v1852
      %v1854 = vrot.slane %v1853, 2
      %v1855 = vmax.f32 %v1853, %v1854
      %v1856 = vrot.slane %v1855, 1
      %v1857 = vmax.f32 %v1855, %v1856
      %v1858 = vrot.slane %v317, 4
      %v1859 = vmax.f32 %v317, %v1858
      %v1860 = vrot.slane %v1859, 2
      %v1861 = vmax.f32 %v1859, %v1860
      %v1862 = vrot.slane %v1861, 1
      %v1863 = vmax.f32 %v1861, %v1862
      %v1864 = vrot.slane %v318, 4
      %v1865 = vmax.f32 %v318, %v1864
      %v1866 = vrot.slane %v1865, 2
      %v1867 = vmax.f32 %v1865, %v1866
      %v1868 = vrot.slane %v1867, 1
      %v1869 = vmax.f32 %v1867, %v1868
      %v1870 = vrot.slane %v319, 4
      %v1871 = vmax.f32 %v319, %v1870
      %v1872 = vrot.slane %v1871, 2
      %v1873 = vmax.f32 %v1871, %v1872
      %v1874 = vrot.slane %v1873, 1
      %v1875 = vmax.f32 %v1873, %v1874
      %v1876 = vrot.slane %v320, 4
      %v1877 = vmax.f32 %v320, %v1876
      %v1878 = vrot.slane %v1877, 2
      %v1879 = vmax.f32 %v1877, %v1878
      %v1880 = vrot.slane %v1879, 1
      %v1881 = vmax.f32 %v1879, %v1880
      %v1882 = vrot.slane %v321, 4
      %v1883 = vmax.f32 %v321, %v1882
      %v1884 = vrot.slane %v1883, 2
      %v1885 = vmax.f32 %v1883, %v1884
      %v1886 = vrot.slane %v1885, 1
      %v1887 = vmax.f32 %v1885, %v1886
      %v1888 = vrot.slane %v322, 4
      %v1889 = vmax.f32 %v322, %v1888
      %v1890 = vrot.slane %v1889, 2
      %v1891 = vmax.f32 %v1889, %v1890
      %v1892 = vrot.slane %v1891, 1
      %v1893 = vmax.f32 %v1891, %v1892
      %v1894 = vrot.slane %v323, 4
      %v1895 = vmax.f32 %v323, %v1894
      %v1896 = vrot.slane %v1895, 2
      %v1897 = vmax.f32 %v1895, %v1896
      %v1898 = vrot.slane %v1897, 1
      %v1899 = vmax.f32 %v1897, %v1898
      %v1900 = vpack.c.bf16 %v1809, %v1809
      %v1901 = vpack.c.bf16 %v1815, %v1815
      %v1902 = vpack.c.bf16 %v1821, %v1821
      %v1903 = vpack.c.bf16 %v1827, %v1827
      %v1904 = vpack.c.bf16 %v1833, %v1833
      %v1905 = vpack.c.bf16 %v1839, %v1839
      %v1906 = vpack.c.bf16 %v1845, %v1845
      %v1907 = vpack.c.bf16 %v1851, %v1851
      %v1908 = vpack.c.bf16 %v1857, %v1857
      %v1909 = vpack.c.bf16 %v1863, %v1863
      %v1910 = vpack.c.bf16 %v1869, %v1869
      %v1911 = vpack.c.bf16 %v1875, %v1875
      %v1912 = vpack.c.bf16 %v1881, %v1881
      %v1913 = vpack.c.bf16 %v1887, %v1887
      %v1914 = vpack.c.bf16 %v1893, %v1893
      %v1915 = vpack.c.bf16 %v1899, %v1899
      %v1916 = vld [vmem:[%s5] sm:$0xff]
      %v1917 = vld [vmem:[%s5 + $0x8] sm:$0xff]
      %v1918 = vld [vmem:[%s5 + $0x10] sm:$0xff]
      %v1919 = vld [vmem:[%s5 + $0x18] sm:$0xff]
      %v1920 = vld [vmem:[%s5 + $0x20] sm:$0xff]
      %v1921 = vld [vmem:[%s5 + $0x28] sm:$0xff]
      %v1922 = vld [vmem:[%s5 + $0x30] sm:$0xff]
      %v1923 = vld [vmem:[%s5 + $0x38] sm:$0xff]
      %v1924 = vld [vmem:[%s5 + $0x40] sm:$0xff]
      %v1925 = vld [vmem:[%s5 + $0x48] sm:$0xff]
      %v1926 = vld [vmem:[%s5 + $0x50] sm:$0xff]
      %v1927 = vld [vmem:[%s5 + $0x58] sm:$0xff]
      %v1928 = vld [vmem:[%s5 + $0x60] sm:$0xff]
      %v1929 = vld [vmem:[%s5 + $0x68] sm:$0xff]
      %v1930 = vld [vmem:[%s5 + $0x70] sm:$0xff]
      %v1931 = vld [vmem:[%s5 + $0x78] sm:$0xff]
      %v1932 = vld [vmem:[%s5 + $0x80] sm:$0xff]
      %v1933 = vld [vmem:[%s5 + $0x88] sm:$0xff]
      %v1934 = vld [vmem:[%s5 + $0x90] sm:$0xff]
      %v1935 = vld [vmem:[%s5 + $0x98] sm:$0xff]
      %v1936 = vld [vmem:[%s5 + $0xa0] sm:$0xff]
      %v1937 = vld [vmem:[%s5 + $0xa8] sm:$0xff]
      %v1938 = vld [vmem:[%s5 + $0xb0] sm:$0xff]
      %v1939 = vld [vmem:[%s5 + $0xb8] sm:$0xff]
      %v1940 = vld [vmem:[%s5 + $0xc0] sm:$0xff]
      %v1941 = vld [vmem:[%s5 + $0xc8] sm:$0xff]
      %v1942 = vld [vmem:[%s5 + $0xd0] sm:$0xff]
      %v1943 = vld [vmem:[%s5 + $0xd8] sm:$0xff]
      %v1944 = vld [vmem:[%s5 + $0xe0] sm:$0xff]
      %v1945 = vld [vmem:[%s5 + $0xe8] sm:$0xff]
      %v1946 = vld [vmem:[%s5 + $0xf0] sm:$0xff]
      %v1947 = vld [vmem:[%s5 + $0xf8] sm:$0xff]
      %v1948 = vld [vmem:[%s5 + $0x100] sm:$0xff]
      %v1949 = vld [vmem:[%s5 + $0x108] sm:$0xff]
      %v1950 = vld [vmem:[%s5 + $0x110] sm:$0xff]
      %v1951 = vld [vmem:[%s5 + $0x118] sm:$0xff]
      %v1952 = vld [vmem:[%s5 + $0x120] sm:$0xff]
      %v1953 = vld [vmem:[%s5 + $0x128] sm:$0xff]
      %v1954 = vld [vmem:[%s5 + $0x130] sm:$0xff]
      %v1955 = vld [vmem:[%s5 + $0x138] sm:$0xff]
      %v1956 = vld [vmem:[%s5 + $0x140] sm:$0xff]
      %v1957 = vld [vmem:[%s5 + $0x148] sm:$0xff]
      %v1958 = vld [vmem:[%s5 + $0x150] sm:$0xff]
      %v1959 = vld [vmem:[%s5 + $0x158] sm:$0xff]
      %v1960 = vld [vmem:[%s5 + $0x160] sm:$0xff]
      %v1961 = vld [vmem:[%s5 + $0x168] sm:$0xff]
      %v1962 = vld [vmem:[%s5 + $0x170] sm:$0xff]
      %v1963 = vld [vmem:[%s5 + $0x178] sm:$0xff]
      %v1964 = vld [vmem:[%s5 + $0x180] sm:$0xff]
      %v1965 = vld [vmem:[%s5 + $0x188] sm:$0xff]
      %v1966 = vld [vmem:[%s5 + $0x190] sm:$0xff]
      %v1967 = vld [vmem:[%s5 + $0x198] sm:$0xff]
      %v1968 = vld [vmem:[%s5 + $0x1a0] sm:$0xff]
      %v1969 = vld [vmem:[%s5 + $0x1a8] sm:$0xff]
      %v1970 = vld [vmem:[%s5 + $0x1b0] sm:$0xff]
      %v1971 = vld [vmem:[%s5 + $0x1b8] sm:$0xff]
      %v1972 = vld [vmem:[%s5 + $0x1c0] sm:$0xff]
      %v1973 = vld [vmem:[%s5 + $0x1c8] sm:$0xff]
      %v1974 = vld [vmem:[%s5 + $0x1d0] sm:$0xff]
      %v1975 = vld [vmem:[%s5 + $0x1d8] sm:$0xff]
      %v1976 = vld [vmem:[%s5 + $0x1e0] sm:$0xff]
      %v1977 = vld [vmem:[%s5 + $0x1e8] sm:$0xff]
      %v1978 = vld [vmem:[%s5 + $0x1f0] sm:$0xff]
      %v1979 = vld [vmem:[%s5 + $0x1f8] sm:$0xff]
      %v1980 = vld [vmem:[%s5 + $0x200] sm:$0xff]
      %v1981 = vld [vmem:[%s5 + $0x208] sm:$0xff]
      %v1982 = vld [vmem:[%s5 + $0x210] sm:$0xff]
      %v1983 = vld [vmem:[%s5 + $0x218] sm:$0xff]
      %v1984 = vld [vmem:[%s5 + $0x220] sm:$0xff]
      %v1985 = vld [vmem:[%s5 + $0x228] sm:$0xff]
      %v1986 = vld [vmem:[%s5 + $0x230] sm:$0xff]
      %v1987 = vld [vmem:[%s5 + $0x238] sm:$0xff]
      %v1988 = vld [vmem:[%s5 + $0x240] sm:$0xff]
      %v1989 = vld [vmem:[%s5 + $0x248] sm:$0xff]
      %v1990 = vld [vmem:[%s5 + $0x250] sm:$0xff]
      %v1991 = vld [vmem:[%s5 + $0x258] sm:$0xff]
      %v1992 = vld [vmem:[%s5 + $0x260] sm:$0xff]
      %v1993 = vld [vmem:[%s5 + $0x268] sm:$0xff]
      %v1994 = vld [vmem:[%s5 + $0x270] sm:$0xff]
      %v1995 = vld [vmem:[%s5 + $0x278] sm:$0xff]
      %v1996 = vld [vmem:[%s5 + $0x280] sm:$0xff]
      %v1997 = vld [vmem:[%s5 + $0x288] sm:$0xff]
      %v1998 = vld [vmem:[%s5 + $0x290] sm:$0xff]
      %v1999 = vld [vmem:[%s5 + $0x298] sm:$0xff]
      %v2000 = vld [vmem:[%s5 + $0x2a0] sm:$0xff]
      %v2001 = vld [vmem:[%s5 + $0x2a8] sm:$0xff]
      %v2002 = vld [vmem:[%s5 + $0x2b0] sm:$0xff]
      %v2003 = vld [vmem:[%s5 + $0x2b8] sm:$0xff]
      %v2004 = vld [vmem:[%s5 + $0x2c0] sm:$0xff]
      %v2005 = vld [vmem:[%s5 + $0x2c8] sm:$0xff]
      %v2006 = vld [vmem:[%s5 + $0x2d0] sm:$0xff]
      %v2007 = vld [vmem:[%s5 + $0x2d8] sm:$0xff]
      %v2008 = vld [vmem:[%s5 + $0x2e0] sm:$0xff]
      %v2009 = vld [vmem:[%s5 + $0x2e8] sm:$0xff]
      %v2010 = vld [vmem:[%s5 + $0x2f0] sm:$0xff]
      %v2011 = vld [vmem:[%s5 + $0x2f8] sm:$0xff]
      %v2012 = vld [vmem:[%s5 + $0x300] sm:$0xff]
      %v2013 = vld [vmem:[%s5 + $0x308] sm:$0xff]
      %v2014 = vld [vmem:[%s5 + $0x310] sm:$0xff]
      %v2015 = vld [vmem:[%s5 + $0x318] sm:$0xff]
      %v2016 = vld [vmem:[%s5 + $0x320] sm:$0xff]
      %v2017 = vld [vmem:[%s5 + $0x328] sm:$0xff]
      %v2018 = vld [vmem:[%s5 + $0x330] sm:$0xff]
      %v2019 = vld [vmem:[%s5 + $0x338] sm:$0xff]
      %v2020 = vld [vmem:[%s5 + $0x340] sm:$0xff]
      %v2021 = vld [vmem:[%s5 + $0x348] sm:$0xff]
      %v2022 = vld [vmem:[%s5 + $0x350] sm:$0xff]
      %v2023 = vld [vmem:[%s5 + $0x358] sm:$0xff]
      %v2024 = vld [vmem:[%s5 + $0x360] sm:$0xff]
      %v2025 = vld [vmem:[%s5 + $0x368] sm:$0xff]
      %v2026 = vld [vmem:[%s5 + $0x370] sm:$0xff]
      %v2027 = vld [vmem:[%s5 + $0x378] sm:$0xff]
      %v2028 = vld [vmem:[%s5 + $0x380] sm:$0xff]
      %v2029 = vld [vmem:[%s5 + $0x388] sm:$0xff]
      %v2030 = vld [vmem:[%s5 + $0x390] sm:$0xff]
      %v2031 = vld [vmem:[%s5 + $0x398] sm:$0xff]
      %v2032 = vld [vmem:[%s5 + $0x3a0] sm:$0xff]
      %v2033 = vld [vmem:[%s5 + $0x3a8] sm:$0xff]
      %v2034 = vld [vmem:[%s5 + $0x3b0] sm:$0xff]
      %v2035 = vld [vmem:[%s5 + $0x3b8] sm:$0xff]
      %v2036 = vld [vmem:[%s5 + $0x3c0] sm:$0xff]
      %v2037 = vld [vmem:[%s5 + $0x3c8] sm:$0xff]
      %v2038 = vld [vmem:[%s5 + $0x3d0] sm:$0xff]
      %v2039 = vld [vmem:[%s5 + $0x3d8] sm:$0xff]
      %v2040 = vld [vmem:[%s5 + $0x3e0] sm:$0xff]
      %v2041 = vld [vmem:[%s5 + $0x3e8] sm:$0xff]
      %v2042 = vld [vmem:[%s5 + $0x3f0] sm:$0xff]
      %v2043 = vld [vmem:[%s5 + $0x3f8] sm:$0xff]
      %v2044 = vld [vmem:[%s5 + $0x400] sm:$0xff]
      %v2045 = vld [vmem:[%s5 + $0x408] sm:$0xff]
      %v2046 = vld [vmem:[%s5 + $0x410] sm:$0xff]
      %v2047 = vld [vmem:[%s5 + $0x418] sm:$0xff]
      %v2048 = vld [vmem:[%s5 + $0x420] sm:$0xff]
      %v2049 = vld [vmem:[%s5 + $0x428] sm:$0xff]
      %v2050 = vld [vmem:[%s5 + $0x430] sm:$0xff]
      %v2051 = vld [vmem:[%s5 + $0x438] sm:$0xff]
      %v2052 = vld [vmem:[%s5 + $0x440] sm:$0xff]
      %v2053 = vld [vmem:[%s5 + $0x448] sm:$0xff]
      %v2054 = vld [vmem:[%s5 + $0x450] sm:$0xff]
      %v2055 = vld [vmem:[%s5 + $0x458] sm:$0xff]
      %v2056 = vld [vmem:[%s5 + $0x460] sm:$0xff]
      %v2057 = vld [vmem:[%s5 + $0x468] sm:$0xff]
      %v2058 = vld [vmem:[%s5 + $0x470] sm:$0xff]
      %v2059 = vld [vmem:[%s5 + $0x478] sm:$0xff]
      %v2060 = vld [vmem:[%s5 + $0x480] sm:$0xff]
      %v2061 = vld [vmem:[%s5 + $0x488] sm:$0xff]
      %v2062 = vld [vmem:[%s5 + $0x490] sm:$0xff]
      %v2063 = vld [vmem:[%s5 + $0x498] sm:$0xff]
      %v2064 = vld [vmem:[%s5 + $0x4a0] sm:$0xff]
      %v2065 = vld [vmem:[%s5 + $0x4a8] sm:$0xff]
      %v2066 = vld [vmem:[%s5 + $0x4b0] sm:$0xff]
      %v2067 = vld [vmem:[%s5 + $0x4b8] sm:$0xff]
      %v2068 = vld [vmem:[%s5 + $0x4c0] sm:$0xff]
      %v2069 = vld [vmem:[%s5 + $0x4c8] sm:$0xff]
      %v2070 = vld [vmem:[%s5 + $0x4d0] sm:$0xff]
      %v2071 = vld [vmem:[%s5 + $0x4d8] sm:$0xff]
      %v2072 = vld [vmem:[%s5 + $0x4e0] sm:$0xff]
      %v2073 = vld [vmem:[%s5 + $0x4e8] sm:$0xff]
      %v2074 = vld [vmem:[%s5 + $0x4f0] sm:$0xff]
      %v2075 = vld [vmem:[%s5 + $0x4f8] sm:$0xff]
      %v2076 = vld [vmem:[%s5 + $0x500] sm:$0xff]
      %v2077 = vld [vmem:[%s5 + $0x508] sm:$0xff]
      %v2078 = vld [vmem:[%s5 + $0x510] sm:$0xff]
      %v2079 = vld [vmem:[%s5 + $0x518] sm:$0xff]
      %v2080 = vld [vmem:[%s5 + $0x520] sm:$0xff]
      %v2081 = vld [vmem:[%s5 + $0x528] sm:$0xff]
      %v2082 = vld [vmem:[%s5 + $0x530] sm:$0xff]
      %v2083 = vld [vmem:[%s5 + $0x538] sm:$0xff]
      %v2084 = vld [vmem:[%s5 + $0x540] sm:$0xff]
      %v2085 = vld [vmem:[%s5 + $0x548] sm:$0xff]
      %v2086 = vld [vmem:[%s5 + $0x550] sm:$0xff]
      %v2087 = vld [vmem:[%s5 + $0x558] sm:$0xff]
      %v2088 = vld [vmem:[%s5 + $0x560] sm:$0xff]
      %v2089 = vld [vmem:[%s5 + $0x568] sm:$0xff]
      %v2090 = vld [vmem:[%s5 + $0x570] sm:$0xff]
      %v2091 = vld [vmem:[%s5 + $0x578] sm:$0xff]
      %v2092 = vld [vmem:[%s5 + $0x580] sm:$0xff]
      %v2093 = vld [vmem:[%s5 + $0x588] sm:$0xff]
      %v2094 = vld [vmem:[%s5 + $0x590] sm:$0xff]
      %v2095 = vld [vmem:[%s5 + $0x598] sm:$0xff]
      %v2096 = vld [vmem:[%s5 + $0x5a0] sm:$0xff]
      %v2097 = vld [vmem:[%s5 + $0x5a8] sm:$0xff]
      %v2098 = vld [vmem:[%s5 + $0x5b0] sm:$0xff]
      %v2099 = vld [vmem:[%s5 + $0x5b8] sm:$0xff]
      %v2100 = vld [vmem:[%s5 + $0x5c0] sm:$0xff]
      %v2101 = vld [vmem:[%s5 + $0x5c8] sm:$0xff]
      %v2102 = vld [vmem:[%s5 + $0x5d0] sm:$0xff]
      %v2103 = vld [vmem:[%s5 + $0x5d8] sm:$0xff]
      %v2104 = vld [vmem:[%s5 + $0x5e0] sm:$0xff]
      %v2105 = vld [vmem:[%s5 + $0x5e8] sm:$0xff]
      %v2106 = vld [vmem:[%s5 + $0x5f0] sm:$0xff]
      %v2107 = vld [vmem:[%s5 + $0x5f8] sm:$0xff]
      %v2108 = vld [vmem:[%s5 + $0x600] sm:$0xff]
      %v2109 = vld [vmem:[%s5 + $0x608] sm:$0xff]
      %v2110 = vld [vmem:[%s5 + $0x610] sm:$0xff]
      %v2111 = vld [vmem:[%s5 + $0x618] sm:$0xff]
      %v2112 = vld [vmem:[%s5 + $0x620] sm:$0xff]
      %v2113 = vld [vmem:[%s5 + $0x628] sm:$0xff]
      %v2114 = vld [vmem:[%s5 + $0x630] sm:$0xff]
      %v2115 = vld [vmem:[%s5 + $0x638] sm:$0xff]
      %v2116 = vld [vmem:[%s5 + $0x640] sm:$0xff]
      %v2117 = vld [vmem:[%s5 + $0x648] sm:$0xff]
      %v2118 = vld [vmem:[%s5 + $0x650] sm:$0xff]
      %v2119 = vld [vmem:[%s5 + $0x658] sm:$0xff]
      %v2120 = vld [vmem:[%s5 + $0x660] sm:$0xff]
      %v2121 = vld [vmem:[%s5 + $0x668] sm:$0xff]
      %v2122 = vld [vmem:[%s5 + $0x670] sm:$0xff]
      %v2123 = vld [vmem:[%s5 + $0x678] sm:$0xff]
      %v2124 = vld [vmem:[%s5 + $0x680] sm:$0xff]
      %v2125 = vld [vmem:[%s5 + $0x688] sm:$0xff]
      %v2126 = vld [vmem:[%s5 + $0x690] sm:$0xff]
      %v2127 = vld [vmem:[%s5 + $0x698] sm:$0xff]
      %v2128 = vld [vmem:[%s5 + $0x6a0] sm:$0xff]
      %v2129 = vld [vmem:[%s5 + $0x6a8] sm:$0xff]
      %v2130 = vld [vmem:[%s5 + $0x6b0] sm:$0xff]
      %v2131 = vld [vmem:[%s5 + $0x6b8] sm:$0xff]
      %v2132 = vld [vmem:[%s5 + $0x6c0] sm:$0xff]
      %v2133 = vld [vmem:[%s5 + $0x6c8] sm:$0xff]
      %v2134 = vld [vmem:[%s5 + $0x6d0] sm:$0xff]
      %v2135 = vld [vmem:[%s5 + $0x6d8] sm:$0xff]
      %v2136 = vld [vmem:[%s5 + $0x6e0] sm:$0xff]
      %v2137 = vld [vmem:[%s5 + $0x6e8] sm:$0xff]
      %v2138 = vld [vmem:[%s5 + $0x6f0] sm:$0xff]
      %v2139 = vld [vmem:[%s5 + $0x6f8] sm:$0xff]
      %v2140 = vld [vmem:[%s5 + $0x700] sm:$0xff]
      %v2141 = vld [vmem:[%s5 + $0x708] sm:$0xff]
      %v2142 = vld [vmem:[%s5 + $0x710] sm:$0xff]
      %v2143 = vld [vmem:[%s5 + $0x718] sm:$0xff]
      %v2144 = vld [vmem:[%s5 + $0x720] sm:$0xff]
      %v2145 = vld [vmem:[%s5 + $0x728] sm:$0xff]
      %v2146 = vld [vmem:[%s5 + $0x730] sm:$0xff]
      %v2147 = vld [vmem:[%s5 + $0x738] sm:$0xff]
      %v2148 = vld [vmem:[%s5 + $0x740] sm:$0xff]
      %v2149 = vld [vmem:[%s5 + $0x748] sm:$0xff]
      %v2150 = vld [vmem:[%s5 + $0x750] sm:$0xff]
      %v2151 = vld [vmem:[%s5 + $0x758] sm:$0xff]
      %v2152 = vld [vmem:[%s5 + $0x760] sm:$0xff]
      %v2153 = vld [vmem:[%s5 + $0x768] sm:$0xff]
      %v2154 = vld [vmem:[%s5 + $0x770] sm:$0xff]
      %v2155 = vld [vmem:[%s5 + $0x778] sm:$0xff]
      %v2156 = vld [vmem:[%s5 + $0x780] sm:$0xff]
      %v2157 = vld [vmem:[%s5 + $0x788] sm:$0xff]
      %v2158 = vld [vmem:[%s5 + $0x790] sm:$0xff]
      %v2159 = vld [vmem:[%s5 + $0x798] sm:$0xff]
      %v2160 = vld [vmem:[%s5 + $0x7a0] sm:$0xff]
      %v2161 = vld [vmem:[%s5 + $0x7a8] sm:$0xff]
      %v2162 = vld [vmem:[%s5 + $0x7b0] sm:$0xff]
      %v2163 = vld [vmem:[%s5 + $0x7b8] sm:$0xff]
      %v2164 = vld [vmem:[%s5 + $0x7c0] sm:$0xff]
      %v2165 = vld [vmem:[%s5 + $0x7c8] sm:$0xff]
      %v2166 = vld [vmem:[%s5 + $0x7d0] sm:$0xff]
      %v2167 = vld [vmem:[%s5 + $0x7d8] sm:$0xff]
      %v2168 = vld [vmem:[%s5 + $0x7e0] sm:$0xff]
      %v2169 = vld [vmem:[%s5 + $0x7e8] sm:$0xff]
      %v2170 = vld [vmem:[%s5 + $0x7f0] sm:$0xff]
      %v2171 = vld [vmem:[%s5 + $0x7f8] sm:$0xff]
      %v2172 = vld [vmem:[%s6] sm:$0x3]
      %v2174 = vperm.slane %v2172, 0
      %v2175 = vperm.slane %v2172, 1
      %v2434 = vunpack.c.l.b16 %v1916
      %v2435 = vunpack.c.h.b16 %v1916
      %v2436 = vunpack.c.l.b16 %v1917
      %v2437 = vunpack.c.h.b16 %v1917
      %v2438 = vunpack.c.l.b16 %v1918
      %v2439 = vunpack.c.h.b16 %v1918
      %v2440 = vunpack.c.l.b16 %v1919
      %v2441 = vunpack.c.h.b16 %v1919
      %v2442 = vunpack.c.l.b16 %v1920
      %v2443 = vunpack.c.h.b16 %v1920
      %v2444 = vunpack.c.l.b16 %v1921
      %v2445 = vunpack.c.h.b16 %v1921
      %v2446 = vunpack.c.l.b16 %v1922
      %v2447 = vunpack.c.h.b16 %v1922
      %v2448 = vunpack.c.l.b16 %v1923
      %v2449 = vunpack.c.h.b16 %v1923
      %v2450 = vunpack.c.l.b16 %v1924
      %v2451 = vunpack.c.h.b16 %v1924
      %v2452 = vunpack.c.l.b16 %v1925
      %v2453 = vunpack.c.h.b16 %v1925
      %v2454 = vunpack.c.l.b16 %v1926
      %v2455 = vunpack.c.h.b16 %v1926
      %v2456 = vunpack.c.l.b16 %v1927
      %v2457 = vunpack.c.h.b16 %v1927
      %v2458 = vunpack.c.l.b16 %v1928
      %v2459 = vunpack.c.h.b16 %v1928
      %v2460 = vunpack.c.l.b16 %v1929
      %v2461 = vunpack.c.h.b16 %v1929
      %v2462 = vunpack.c.l.b16 %v1930
      %v2463 = vunpack.c.h.b16 %v1930
      %v2464 = vunpack.c.l.b16 %v1931
      %v2465 = vunpack.c.h.b16 %v1931
      %v2466 = vunpack.c.l.b16 %v1932
      %v2467 = vunpack.c.h.b16 %v1932
      %v2468 = vunpack.c.l.b16 %v1933
      %v2469 = vunpack.c.h.b16 %v1933
      %v2470 = vunpack.c.l.b16 %v1934
      %v2471 = vunpack.c.h.b16 %v1934
      %v2472 = vunpack.c.l.b16 %v1935
      %v2473 = vunpack.c.h.b16 %v1935
      %v2474 = vunpack.c.l.b16 %v1936
      %v2475 = vunpack.c.h.b16 %v1936
      %v2476 = vunpack.c.l.b16 %v1937
      %v2477 = vunpack.c.h.b16 %v1937
      %v2478 = vunpack.c.l.b16 %v1938
      %v2479 = vunpack.c.h.b16 %v1938
      %v2480 = vunpack.c.l.b16 %v1939
      %v2481 = vunpack.c.h.b16 %v1939
      %v2482 = vunpack.c.l.b16 %v1940
      %v2483 = vunpack.c.h.b16 %v1940
      %v2484 = vunpack.c.l.b16 %v1941
      %v2485 = vunpack.c.h.b16 %v1941
      %v2486 = vunpack.c.l.b16 %v1942
      %v2487 = vunpack.c.h.b16 %v1942
      %v2488 = vunpack.c.l.b16 %v1943
      %v2489 = vunpack.c.h.b16 %v1943
      %v2490 = vunpack.c.l.b16 %v1944
      %v2491 = vunpack.c.h.b16 %v1944
      %v2492 = vunpack.c.l.b16 %v1945
      %v2493 = vunpack.c.h.b16 %v1945
      %v2494 = vunpack.c.l.b16 %v1946
      %v2495 = vunpack.c.h.b16 %v1946
      %v2496 = vunpack.c.l.b16 %v1947
      %v2497 = vunpack.c.h.b16 %v1947
      %v2498 = vunpack.c.l.b16 %v1948
      %v2499 = vunpack.c.h.b16 %v1948
      %v2500 = vunpack.c.l.b16 %v1949
      %v2501 = vunpack.c.h.b16 %v1949
      %v2502 = vunpack.c.l.b16 %v1950
      %v2503 = vunpack.c.h.b16 %v1950
      %v2504 = vunpack.c.l.b16 %v1951
      %v2505 = vunpack.c.h.b16 %v1951
      %v2506 = vunpack.c.l.b16 %v1952
      %v2507 = vunpack.c.h.b16 %v1952
      %v2508 = vunpack.c.l.b16 %v1953
      %v2509 = vunpack.c.h.b16 %v1953
      %v2510 = vunpack.c.l.b16 %v1954
      %v2511 = vunpack.c.h.b16 %v1954
      %v2512 = vunpack.c.l.b16 %v1955
      %v2513 = vunpack.c.h.b16 %v1955
      %v2514 = vunpack.c.l.b16 %v1956
      %v2515 = vunpack.c.h.b16 %v1956
      %v2516 = vunpack.c.l.b16 %v1957
      %v2517 = vunpack.c.h.b16 %v1957
      %v2518 = vunpack.c.l.b16 %v1958
      %v2519 = vunpack.c.h.b16 %v1958
      %v2520 = vunpack.c.l.b16 %v1959
      %v2521 = vunpack.c.h.b16 %v1959
      %v2522 = vunpack.c.l.b16 %v1960
      %v2523 = vunpack.c.h.b16 %v1960
      %v2524 = vunpack.c.l.b16 %v1961
      %v2525 = vunpack.c.h.b16 %v1961
      %v2526 = vunpack.c.l.b16 %v1962
      %v2527 = vunpack.c.h.b16 %v1962
      %v2528 = vunpack.c.l.b16 %v1963
      %v2529 = vunpack.c.h.b16 %v1963
      %v2530 = vunpack.c.l.b16 %v1964
      %v2531 = vunpack.c.h.b16 %v1964
      %v2532 = vunpack.c.l.b16 %v1965
      %v2533 = vunpack.c.h.b16 %v1965
      %v2534 = vunpack.c.l.b16 %v1966
      %v2535 = vunpack.c.h.b16 %v1966
      %v2536 = vunpack.c.l.b16 %v1967
      %v2537 = vunpack.c.h.b16 %v1967
      %v2538 = vunpack.c.l.b16 %v1968
      %v2539 = vunpack.c.h.b16 %v1968
      %v2540 = vunpack.c.l.b16 %v1969
      %v2541 = vunpack.c.h.b16 %v1969
      %v2542 = vunpack.c.l.b16 %v1970
      %v2543 = vunpack.c.h.b16 %v1970
      %v2544 = vunpack.c.l.b16 %v1971
      %v2545 = vunpack.c.h.b16 %v1971
      %v2546 = vunpack.c.l.b16 %v1972
      %v2547 = vunpack.c.h.b16 %v1972
      %v2548 = vunpack.c.l.b16 %v1973
      %v2549 = vunpack.c.h.b16 %v1973
      %v2550 = vunpack.c.l.b16 %v1974
      %v2551 = vunpack.c.h.b16 %v1974
      %v2552 = vunpack.c.l.b16 %v1975
      %v2553 = vunpack.c.h.b16 %v1975
      %v2554 = vunpack.c.l.b16 %v1976
      %v2555 = vunpack.c.h.b16 %v1976
      %v2556 = vunpack.c.l.b16 %v1977
      %v2557 = vunpack.c.h.b16 %v1977
      %v2558 = vunpack.c.l.b16 %v1978
      %v2559 = vunpack.c.h.b16 %v1978
      %v2560 = vunpack.c.l.b16 %v1979
      %v2561 = vunpack.c.h.b16 %v1979
      %v2562 = vunpack.c.l.b16 %v1980
      %v2563 = vunpack.c.h.b16 %v1980
      %v2564 = vunpack.c.l.b16 %v1981
      %v2565 = vunpack.c.h.b16 %v1981
      %v2566 = vunpack.c.l.b16 %v1982
      %v2567 = vunpack.c.h.b16 %v1982
      %v2568 = vunpack.c.l.b16 %v1983
      %v2569 = vunpack.c.h.b16 %v1983
      %v2570 = vunpack.c.l.b16 %v1984
      %v2571 = vunpack.c.h.b16 %v1984
      %v2572 = vunpack.c.l.b16 %v1985
      %v2573 = vunpack.c.h.b16 %v1985
      %v2574 = vunpack.c.l.b16 %v1986
      %v2575 = vunpack.c.h.b16 %v1986
      %v2576 = vunpack.c.l.b16 %v1987
      %v2577 = vunpack.c.h.b16 %v1987
      %v2578 = vunpack.c.l.b16 %v1988
      %v2579 = vunpack.c.h.b16 %v1988
      %v2580 = vunpack.c.l.b16 %v1989
      %v2581 = vunpack.c.h.b16 %v1989
      %v2582 = vunpack.c.l.b16 %v1990
      %v2583 = vunpack.c.h.b16 %v1990
      %v2584 = vunpack.c.l.b16 %v1991
      %v2585 = vunpack.c.h.b16 %v1991
      %v2586 = vunpack.c.l.b16 %v1992
      %v2587 = vunpack.c.h.b16 %v1992
      %v2588 = vunpack.c.l.b16 %v1993
      %v2589 = vunpack.c.h.b16 %v1993
      %v2590 = vunpack.c.l.b16 %v1994
      %v2591 = vunpack.c.h.b16 %v1994
      %v2592 = vunpack.c.l.b16 %v1995
      %v2593 = vunpack.c.h.b16 %v1995
      %v2594 = vunpack.c.l.b16 %v1996
      %v2595 = vunpack.c.h.b16 %v1996
      %v2596 = vunpack.c.l.b16 %v1997
      %v2597 = vunpack.c.h.b16 %v1997
      %v2598 = vunpack.c.l.b16 %v1998
      %v2599 = vunpack.c.h.b16 %v1998
      %v2600 = vunpack.c.l.b16 %v1999
      %v2601 = vunpack.c.h.b16 %v1999
      %v2602 = vunpack.c.l.b16 %v2000
      %v2603 = vunpack.c.h.b16 %v2000
      %v2604 = vunpack.c.l.b16 %v2001
      %v2605 = vunpack.c.h.b16 %v2001
      %v2606 = vunpack.c.l.b16 %v2002
      %v2607 = vunpack.c.h.b16 %v2002
      %v2608 = vunpack.c.l.b16 %v2003
      %v2609 = vunpack.c.h.b16 %v2003
      %v2610 = vunpack.c.l.b16 %v2004
      %v2611 = vunpack.c.h.b16 %v2004
      %v2612 = vunpack.c.l.b16 %v2005
      %v2613 = vunpack.c.h.b16 %v2005
      %v2614 = vunpack.c.l.b16 %v2006
      %v2615 = vunpack.c.h.b16 %v2006
      %v2616 = vunpack.c.l.b16 %v2007
      %v2617 = vunpack.c.h.b16 %v2007
      %v2618 = vunpack.c.l.b16 %v2008
      %v2619 = vunpack.c.h.b16 %v2008
      %v2620 = vunpack.c.l.b16 %v2009
      %v2621 = vunpack.c.h.b16 %v2009
      %v2622 = vunpack.c.l.b16 %v2010
      %v2623 = vunpack.c.h.b16 %v2010
      %v2624 = vunpack.c.l.b16 %v2011
      %v2625 = vunpack.c.h.b16 %v2011
      %v2626 = vunpack.c.l.b16 %v2012
      %v2627 = vunpack.c.h.b16 %v2012
      %v2628 = vunpack.c.l.b16 %v2013
      %v2629 = vunpack.c.h.b16 %v2013
      %v2630 = vunpack.c.l.b16 %v2014
      %v2631 = vunpack.c.h.b16 %v2014
      %v2632 = vunpack.c.l.b16 %v2015
      %v2633 = vunpack.c.h.b16 %v2015
      %v2634 = vunpack.c.l.b16 %v2016
      %v2635 = vunpack.c.h.b16 %v2016
      %v2636 = vunpack.c.l.b16 %v2017
      %v2637 = vunpack.c.h.b16 %v2017
      %v2638 = vunpack.c.l.b16 %v2018
      %v2639 = vunpack.c.h.b16 %v2018
      %v2640 = vunpack.c.l.b16 %v2019
      %v2641 = vunpack.c.h.b16 %v2019
      %v2642 = vunpack.c.l.b16 %v2020
      %v2643 = vunpack.c.h.b16 %v2020
      %v2644 = vunpack.c.l.b16 %v2021
      %v2645 = vunpack.c.h.b16 %v2021
      %v2646 = vunpack.c.l.b16 %v2022
      %v2647 = vunpack.c.h.b16 %v2022
      %v2648 = vunpack.c.l.b16 %v2023
      %v2649 = vunpack.c.h.b16 %v2023
      %v2650 = vunpack.c.l.b16 %v2024
      %v2651 = vunpack.c.h.b16 %v2024
      %v2652 = vunpack.c.l.b16 %v2025
      %v2653 = vunpack.c.h.b16 %v2025
      %v2654 = vunpack.c.l.b16 %v2026
      %v2655 = vunpack.c.h.b16 %v2026
      %v2656 = vunpack.c.l.b16 %v2027
      %v2657 = vunpack.c.h.b16 %v2027
      %v2658 = vunpack.c.l.b16 %v2028
      %v2659 = vunpack.c.h.b16 %v2028
      %v2660 = vunpack.c.l.b16 %v2029
      %v2661 = vunpack.c.h.b16 %v2029
      %v2662 = vunpack.c.l.b16 %v2030
      %v2663 = vunpack.c.h.b16 %v2030
      %v2664 = vunpack.c.l.b16 %v2031
      %v2665 = vunpack.c.h.b16 %v2031
      %v2666 = vunpack.c.l.b16 %v2032
      %v2667 = vunpack.c.h.b16 %v2032
      %v2668 = vunpack.c.l.b16 %v2033
      %v2669 = vunpack.c.h.b16 %v2033
      %v2670 = vunpack.c.l.b16 %v2034
      %v2671 = vunpack.c.h.b16 %v2034
      %v2672 = vunpack.c.l.b16 %v2035
      %v2673 = vunpack.c.h.b16 %v2035
      %v2674 = vunpack.c.l.b16 %v2036
      %v2675 = vunpack.c.h.b16 %v2036
      %v2676 = vunpack.c.l.b16 %v2037
      %v2677 = vunpack.c.h.b16 %v2037
      %v2678 = vunpack.c.l.b16 %v2038
      %v2679 = vunpack.c.h.b16 %v2038
      %v2680 = vunpack.c.l.b16 %v2039
      %v2681 = vunpack.c.h.b16 %v2039
      %v2682 = vunpack.c.l.b16 %v2040
      %v2683 = vunpack.c.h.b16 %v2040
      %v2684 = vunpack.c.l.b16 %v2041
      %v2685 = vunpack.c.h.b16 %v2041
      %v2686 = vunpack.c.l.b16 %v2042
      %v2687 = vunpack.c.h.b16 %v2042
      %v2688 = vunpack.c.l.b16 %v2043
      %v2689 = vunpack.c.h.b16 %v2043
      %v2690 = vunpack.c.l.b16 %v2044
      %v2691 = vunpack.c.h.b16 %v2044
      %v2692 = vunpack.c.l.b16 %v2045
      %v2693 = vunpack.c.h.b16 %v2045
      %v2694 = vunpack.c.l.b16 %v2046
      %v2695 = vunpack.c.h.b16 %v2046
      %v2696 = vunpack.c.l.b16 %v2047
      %v2697 = vunpack.c.h.b16 %v2047
      %v2698 = vunpack.c.l.b16 %v2048
      %v2699 = vunpack.c.h.b16 %v2048
      %v2700 = vunpack.c.l.b16 %v2049
      %v2701 = vunpack.c.h.b16 %v2049
      %v2702 = vunpack.c.l.b16 %v2050
      %v2703 = vunpack.c.h.b16 %v2050
      %v2704 = vunpack.c.l.b16 %v2051
      %v2705 = vunpack.c.h.b16 %v2051
      %v2706 = vunpack.c.l.b16 %v2052
      %v2707 = vunpack.c.h.b16 %v2052
      %v2708 = vunpack.c.l.b16 %v2053
      %v2709 = vunpack.c.h.b16 %v2053
      %v2710 = vunpack.c.l.b16 %v2054
      %v2711 = vunpack.c.h.b16 %v2054
      %v2712 = vunpack.c.l.b16 %v2055
      %v2713 = vunpack.c.h.b16 %v2055
      %v2714 = vunpack.c.l.b16 %v2056
      %v2715 = vunpack.c.h.b16 %v2056
      %v2716 = vunpack.c.l.b16 %v2057
      %v2717 = vunpack.c.h.b16 %v2057
      %v2718 = vunpack.c.l.b16 %v2058
      %v2719 = vunpack.c.h.b16 %v2058
      %v2720 = vunpack.c.l.b16 %v2059
      %v2721 = vunpack.c.h.b16 %v2059
      %v2722 = vunpack.c.l.b16 %v2060
      %v2723 = vunpack.c.h.b16 %v2060
      %v2724 = vunpack.c.l.b16 %v2061
      %v2725 = vunpack.c.h.b16 %v2061
      %v2726 = vunpack.c.l.b16 %v2062
      %v2727 = vunpack.c.h.b16 %v2062
      %v2728 = vunpack.c.l.b16 %v2063
      %v2729 = vunpack.c.h.b16 %v2063
      %v2730 = vunpack.c.l.b16 %v2064
      %v2731 = vunpack.c.h.b16 %v2064
      %v2732 = vunpack.c.l.b16 %v2065
      %v2733 = vunpack.c.h.b16 %v2065
      %v2734 = vunpack.c.l.b16 %v2066
      %v2735 = vunpack.c.h.b16 %v2066
      %v2736 = vunpack.c.l.b16 %v2067
      %v2737 = vunpack.c.h.b16 %v2067
      %v2738 = vunpack.c.l.b16 %v2068
      %v2739 = vunpack.c.h.b16 %v2068
      %v2740 = vunpack.c.l.b16 %v2069
      %v2741 = vunpack.c.h.b16 %v2069
      %v2742 = vunpack.c.l.b16 %v2070
      %v2743 = vunpack.c.h.b16 %v2070
      %v2744 = vunpack.c.l.b16 %v2071
      %v2745 = vunpack.c.h.b16 %v2071
      %v2746 = vunpack.c.l.b16 %v2072
      %v2747 = vunpack.c.h.b16 %v2072
      %v2748 = vunpack.c.l.b16 %v2073
      %v2749 = vunpack.c.h.b16 %v2073
      %v2750 = vunpack.c.l.b16 %v2074
      %v2751 = vunpack.c.h.b16 %v2074
      %v2752 = vunpack.c.l.b16 %v2075
      %v2753 = vunpack.c.h.b16 %v2075
      %v2754 = vunpack.c.l.b16 %v2076
      %v2755 = vunpack.c.h.b16 %v2076
      %v2756 = vunpack.c.l.b16 %v2077
      %v2757 = vunpack.c.h.b16 %v2077
      %v2758 = vunpack.c.l.b16 %v2078
      %v2759 = vunpack.c.h.b16 %v2078
      %v2760 = vunpack.c.l.b16 %v2079
      %v2761 = vunpack.c.h.b16 %v2079
      %v2762 = vunpack.c.l.b16 %v2080
      %v2763 = vunpack.c.h.b16 %v2080
      %v2764 = vunpack.c.l.b16 %v2081
      %v2765 = vunpack.c.h.b16 %v2081
      %v2766 = vunpack.c.l.b16 %v2082
      %v2767 = vunpack.c.h.b16 %v2082
      %v2768 = vunpack.c.l.b16 %v2083
      %v2769 = vunpack.c.h.b16 %v2083
      %v2770 = vunpack.c.l.b16 %v2084
      %v2771 = vunpack.c.h.b16 %v2084
      %v2772 = vunpack.c.l.b16 %v2085
      %v2773 = vunpack.c.h.b16 %v2085
      %v2774 = vunpack.c.l.b16 %v2086
      %v2775 = vunpack.c.h.b16 %v2086
      %v2776 = vunpack.c.l.b16 %v2087
      %v2777 = vunpack.c.h.b16 %v2087
      %v2778 = vunpack.c.l.b16 %v2088
      %v2779 = vunpack.c.h.b16 %v2088
      %v2780 = vunpack.c.l.b16 %v2089
      %v2781 = vunpack.c.h.b16 %v2089
      %v2782 = vunpack.c.l.b16 %v2090
      %v2783 = vunpack.c.h.b16 %v2090
      %v2784 = vunpack.c.l.b16 %v2091
      %v2785 = vunpack.c.h.b16 %v2091
      %v2786 = vunpack.c.l.b16 %v2092
      %v2787 = vunpack.c.h.b16 %v2092
      %v2788 = vunpack.c.l.b16 %v2093
      %v2789 = vunpack.c.h.b16 %v2093
      %v2790 = vunpack.c.l.b16 %v2094
      %v2791 = vunpack.c.h.b16 %v2094
      %v2792 = vunpack.c.l.b16 %v2095
      %v2793 = vunpack.c.h.b16 %v2095
      %v2794 = vunpack.c.l.b16 %v2096
      %v2795 = vunpack.c.h.b16 %v2096
      %v2796 = vunpack.c.l.b16 %v2097
      %v2797 = vunpack.c.h.b16 %v2097
      %v2798 = vunpack.c.l.b16 %v2098
      %v2799 = vunpack.c.h.b16 %v2098
      %v2800 = vunpack.c.l.b16 %v2099
      %v2801 = vunpack.c.h.b16 %v2099
      %v2802 = vunpack.c.l.b16 %v2100
      %v2803 = vunpack.c.h.b16 %v2100
      %v2804 = vunpack.c.l.b16 %v2101
      %v2805 = vunpack.c.h.b16 %v2101
      %v2806 = vunpack.c.l.b16 %v2102
      %v2807 = vunpack.c.h.b16 %v2102
      %v2808 = vunpack.c.l.b16 %v2103
      %v2809 = vunpack.c.h.b16 %v2103
      %v2810 = vunpack.c.l.b16 %v2104
      %v2811 = vunpack.c.h.b16 %v2104
      %v2812 = vunpack.c.l.b16 %v2105
      %v2813 = vunpack.c.h.b16 %v2105
      %v2814 = vunpack.c.l.b16 %v2106
      %v2815 = vunpack.c.h.b16 %v2106
      %v2816 = vunpack.c.l.b16 %v2107
      %v2817 = vunpack.c.h.b16 %v2107
      %v2818 = vunpack.c.l.b16 %v2108
      %v2819 = vunpack.c.h.b16 %v2108
      %v2820 = vunpack.c.l.b16 %v2109
      %v2821 = vunpack.c.h.b16 %v2109
      %v2822 = vunpack.c.l.b16 %v2110
      %v2823 = vunpack.c.h.b16 %v2110
      %v2824 = vunpack.c.l.b16 %v2111
      %v2825 = vunpack.c.h.b16 %v2111
      %v2826 = vunpack.c.l.b16 %v2112
      %v2827 = vunpack.c.h.b16 %v2112
      %v2828 = vunpack.c.l.b16 %v2113
      %v2829 = vunpack.c.h.b16 %v2113
      %v2830 = vunpack.c.l.b16 %v2114
      %v2831 = vunpack.c.h.b16 %v2114
      %v2832 = vunpack.c.l.b16 %v2115
      %v2833 = vunpack.c.h.b16 %v2115
      %v2834 = vunpack.c.l.b16 %v2116
      %v2835 = vunpack.c.h.b16 %v2116
      %v2836 = vunpack.c.l.b16 %v2117
      %v2837 = vunpack.c.h.b16 %v2117
      %v2838 = vunpack.c.l.b16 %v2118
      %v2839 = vunpack.c.h.b16 %v2118
      %v2840 = vunpack.c.l.b16 %v2119
      %v2841 = vunpack.c.h.b16 %v2119
      %v2842 = vunpack.c.l.b16 %v2120
      %v2843 = vunpack.c.h.b16 %v2120
      %v2844 = vunpack.c.l.b16 %v2121
      %v2845 = vunpack.c.h.b16 %v2121
      %v2846 = vunpack.c.l.b16 %v2122
      %v2847 = vunpack.c.h.b16 %v2122
      %v2848 = vunpack.c.l.b16 %v2123
      %v2849 = vunpack.c.h.b16 %v2123
      %v2850 = vunpack.c.l.b16 %v2124
      %v2851 = vunpack.c.h.b16 %v2124
      %v2852 = vunpack.c.l.b16 %v2125
      %v2853 = vunpack.c.h.b16 %v2125
      %v2854 = vunpack.c.l.b16 %v2126
      %v2855 = vunpack.c.h.b16 %v2126
      %v2856 = vunpack.c.l.b16 %v2127
      %v2857 = vunpack.c.h.b16 %v2127
      %v2858 = vunpack.c.l.b16 %v2128
      %v2859 = vunpack.c.h.b16 %v2128
      %v2860 = vunpack.c.l.b16 %v2129
      %v2861 = vunpack.c.h.b16 %v2129
      %v2862 = vunpack.c.l.b16 %v2130
      %v2863 = vunpack.c.h.b16 %v2130
      %v2864 = vunpack.c.l.b16 %v2131
      %v2865 = vunpack.c.h.b16 %v2131
      %v2866 = vunpack.c.l.b16 %v2132
      %v2867 = vunpack.c.h.b16 %v2132
      %v2868 = vunpack.c.l.b16 %v2133
      %v2869 = vunpack.c.h.b16 %v2133
      %v2870 = vunpack.c.l.b16 %v2134
      %v2871 = vunpack.c.h.b16 %v2134
      %v2872 = vunpack.c.l.b16 %v2135
      %v2873 = vunpack.c.h.b16 %v2135
      %v2874 = vunpack.c.l.b16 %v2136
      %v2875 = vunpack.c.h.b16 %v2136
      %v2876 = vunpack.c.l.b16 %v2137
      %v2877 = vunpack.c.h.b16 %v2137
      %v2878 = vunpack.c.l.b16 %v2138
      %v2879 = vunpack.c.h.b16 %v2138
      %v2880 = vunpack.c.l.b16 %v2139
      %v2881 = vunpack.c.h.b16 %v2139
      %v2882 = vunpack.c.l.b16 %v2140
      %v2883 = vunpack.c.h.b16 %v2140
      %v2884 = vunpack.c.l.b16 %v2141
      %v2885 = vunpack.c.h.b16 %v2141
      %v2886 = vunpack.c.l.b16 %v2142
      %v2887 = vunpack.c.h.b16 %v2142
      %v2888 = vunpack.c.l.b16 %v2143
      %v2889 = vunpack.c.h.b16 %v2143
      %v2890 = vunpack.c.l.b16 %v2144
      %v2891 = vunpack.c.h.b16 %v2144
      %v2892 = vunpack.c.l.b16 %v2145
      %v2893 = vunpack.c.h.b16 %v2145
      %v2894 = vunpack.c.l.b16 %v2146
      %v2895 = vunpack.c.h.b16 %v2146
      %v2896 = vunpack.c.l.b16 %v2147
      %v2897 = vunpack.c.h.b16 %v2147
      %v2898 = vunpack.c.l.b16 %v2148
      %v2899 = vunpack.c.h.b16 %v2148
      %v2900 = vunpack.c.l.b16 %v2149
      %v2901 = vunpack.c.h.b16 %v2149
      %v2902 = vunpack.c.l.b16 %v2150
      %v2903 = vunpack.c.h.b16 %v2150
      %v2904 = vunpack.c.l.b16 %v2151
      %v2905 = vunpack.c.h.b16 %v2151
      %v2906 = vunpack.c.l.b16 %v2152
      %v2907 = vunpack.c.h.b16 %v2152
      %v2908 = vunpack.c.l.b16 %v2153
      %v2909 = vunpack.c.h.b16 %v2153
      %v2910 = vunpack.c.l.b16 %v2154
      %v2911 = vunpack.c.h.b16 %v2154
      %v2912 = vunpack.c.l.b16 %v2155
      %v2913 = vunpack.c.h.b16 %v2155
      %v2914 = vunpack.c.l.b16 %v2156
      %v2915 = vunpack.c.h.b16 %v2156
      %v2916 = vunpack.c.l.b16 %v2157
      %v2917 = vunpack.c.h.b16 %v2157
      %v2918 = vunpack.c.l.b16 %v2158
      %v2919 = vunpack.c.h.b16 %v2158
      %v2920 = vunpack.c.l.b16 %v2159
      %v2921 = vunpack.c.h.b16 %v2159
      %v2922 = vunpack.c.l.b16 %v2160
      %v2923 = vunpack.c.h.b16 %v2160
      %v2924 = vunpack.c.l.b16 %v2161
      %v2925 = vunpack.c.h.b16 %v2161
      %v2926 = vunpack.c.l.b16 %v2162
      %v2927 = vunpack.c.h.b16 %v2162
      %v2928 = vunpack.c.l.b16 %v2163
      %v2929 = vunpack.c.h.b16 %v2163
      %v2930 = vunpack.c.l.b16 %v2164
      %v2931 = vunpack.c.h.b16 %v2164
      %v2932 = vunpack.c.l.b16 %v2165
      %v2933 = vunpack.c.h.b16 %v2165
      %v2934 = vunpack.c.l.b16 %v2166
      %v2935 = vunpack.c.h.b16 %v2166
      %v2936 = vunpack.c.l.b16 %v2167
      %v2937 = vunpack.c.h.b16 %v2167
      %v2938 = vunpack.c.l.b16 %v2168
      %v2939 = vunpack.c.h.b16 %v2168
      %v2940 = vunpack.c.l.b16 %v2169
      %v2941 = vunpack.c.h.b16 %v2169
      %v2942 = vunpack.c.l.b16 %v2170
      %v2943 = vunpack.c.h.b16 %v2170
      %v2944 = vunpack.c.l.b16 %v2171
      %v2945 = vunpack.c.h.b16 %v2171
      %v2946 = vpack.c.b16 %v2436, %v2434
      %v2947 = vpack.c.b16 %v2437, %v2435
      %v2948 = vpack.c.b16 %v2440, %v2438
      %v2949 = vpack.c.b16 %v2441, %v2439
      %v2950 = vpack.c.b16 %v2444, %v2442
      %v2951 = vpack.c.b16 %v2445, %v2443
      %v2952 = vpack.c.b16 %v2448, %v2446
      %v2953 = vpack.c.b16 %v2449, %v2447
      %v2954 = vpack.c.b16 %v2452, %v2450
      %v2955 = vpack.c.b16 %v2453, %v2451
      %v2956 = vpack.c.b16 %v2456, %v2454
      %v2957 = vpack.c.b16 %v2457, %v2455
      %v2958 = vpack.c.b16 %v2460, %v2458
      %v2959 = vpack.c.b16 %v2461, %v2459
      %v2960 = vpack.c.b16 %v2464, %v2462
      %v2961 = vpack.c.b16 %v2465, %v2463
      %v2962 = vpack.c.b16 %v2468, %v2466
      %v2963 = vpack.c.b16 %v2469, %v2467
      %v2964 = vpack.c.b16 %v2472, %v2470
      %v2965 = vpack.c.b16 %v2473, %v2471
      %v2966 = vpack.c.b16 %v2476, %v2474
      %v2967 = vpack.c.b16 %v2477, %v2475
      %v2968 = vpack.c.b16 %v2480, %v2478
      %v2969 = vpack.c.b16 %v2481, %v2479
      %v2970 = vpack.c.b16 %v2484, %v2482
      %v2971 = vpack.c.b16 %v2485, %v2483
      %v2972 = vpack.c.b16 %v2488, %v2486
      %v2973 = vpack.c.b16 %v2489, %v2487
      %v2974 = vpack.c.b16 %v2492, %v2490
      %v2975 = vpack.c.b16 %v2493, %v2491
      %v2976 = vpack.c.b16 %v2496, %v2494
      %v2977 = vpack.c.b16 %v2497, %v2495
      %v2978 = vpack.c.b16 %v2500, %v2498
      %v2979 = vpack.c.b16 %v2501, %v2499
      %v2980 = vpack.c.b16 %v2504, %v2502
      %v2981 = vpack.c.b16 %v2505, %v2503
      %v2982 = vpack.c.b16 %v2508, %v2506
      %v2983 = vpack.c.b16 %v2509, %v2507
      %v2984 = vpack.c.b16 %v2512, %v2510
      %v2985 = vpack.c.b16 %v2513, %v2511
      %v2986 = vpack.c.b16 %v2516, %v2514
      %v2987 = vpack.c.b16 %v2517, %v2515
      %v2988 = vpack.c.b16 %v2520, %v2518
      %v2989 = vpack.c.b16 %v2521, %v2519
      %v2990 = vpack.c.b16 %v2524, %v2522
      %v2991 = vpack.c.b16 %v2525, %v2523
      %v2992 = vpack.c.b16 %v2528, %v2526
      %v2993 = vpack.c.b16 %v2529, %v2527
      %v2994 = vpack.c.b16 %v2532, %v2530
      %v2995 = vpack.c.b16 %v2533, %v2531
      %v2996 = vpack.c.b16 %v2536, %v2534
      %v2997 = vpack.c.b16 %v2537, %v2535
      %v2998 = vpack.c.b16 %v2540, %v2538
      %v2999 = vpack.c.b16 %v2541, %v2539
      %v3000 = vpack.c.b16 %v2544, %v2542
      %v3001 = vpack.c.b16 %v2545, %v2543
      %v3002 = vpack.c.b16 %v2548, %v2546
      %v3003 = vpack.c.b16 %v2549, %v2547
      %v3004 = vpack.c.b16 %v2552, %v2550
      %v3005 = vpack.c.b16 %v2553, %v2551
      %v3006 = vpack.c.b16 %v2556, %v2554
      %v3007 = vpack.c.b16 %v2557, %v2555
      %v3008 = vpack.c.b16 %v2560, %v2558
      %v3009 = vpack.c.b16 %v2561, %v2559
      %v3010 = vpack.c.b16 %v2564, %v2562
      %v3011 = vpack.c.b16 %v2565, %v2563
      %v3012 = vpack.c.b16 %v2568, %v2566
      %v3013 = vpack.c.b16 %v2569, %v2567
      %v3014 = vpack.c.b16 %v2572, %v2570
      %v3015 = vpack.c.b16 %v2573, %v2571
      %v3016 = vpack.c.b16 %v2576, %v2574
      %v3017 = vpack.c.b16 %v2577, %v2575
      %v3018 = vpack.c.b16 %v2580, %v2578
      %v3019 = vpack.c.b16 %v2581, %v2579
      %v3020 = vpack.c.b16 %v2584, %v2582
      %v3021 = vpack.c.b16 %v2585, %v2583
      %v3022 = vpack.c.b16 %v2588, %v2586
      %v3023 = vpack.c.b16 %v2589, %v2587
      %v3024 = vpack.c.b16 %v2592, %v2590
      %v3025 = vpack.c.b16 %v2593, %v2591
      %v3026 = vpack.c.b16 %v2596, %v2594
      %v3027 = vpack.c.b16 %v2597, %v2595
      %v3028 = vpack.c.b16 %v2600, %v2598
      %v3029 = vpack.c.b16 %v2601, %v2599
      %v3030 = vpack.c.b16 %v2604, %v2602
      %v3031 = vpack.c.b16 %v2605, %v2603
      %v3032 = vpack.c.b16 %v2608, %v2606
      %v3033 = vpack.c.b16 %v2609, %v2607
      %v3034 = vpack.c.b16 %v2612, %v2610
      %v3035 = vpack.c.b16 %v2613, %v2611
      %v3036 = vpack.c.b16 %v2616, %v2614
      %v3037 = vpack.c.b16 %v2617, %v2615
      %v3038 = vpack.c.b16 %v2620, %v2618
      %v3039 = vpack.c.b16 %v2621, %v2619
      %v3040 = vpack.c.b16 %v2624, %v2622
      %v3041 = vpack.c.b16 %v2625, %v2623
      %v3042 = vpack.c.b16 %v2628, %v2626
      %v3043 = vpack.c.b16 %v2629, %v2627
      %v3044 = vpack.c.b16 %v2632, %v2630
      %v3045 = vpack.c.b16 %v2633, %v2631
      %v3046 = vpack.c.b16 %v2636, %v2634
      %v3047 = vpack.c.b16 %v2637, %v2635
      %v3048 = vpack.c.b16 %v2640, %v2638
      %v3049 = vpack.c.b16 %v2641, %v2639
      %v3050 = vpack.c.b16 %v2644, %v2642
      %v3051 = vpack.c.b16 %v2645, %v2643
      %v3052 = vpack.c.b16 %v2648, %v2646
      %v3053 = vpack.c.b16 %v2649, %v2647
      %v3054 = vpack.c.b16 %v2652, %v2650
      %v3055 = vpack.c.b16 %v2653, %v2651
      %v3056 = vpack.c.b16 %v2656, %v2654
      %v3057 = vpack.c.b16 %v2657, %v2655
      %v3058 = vpack.c.b16 %v2660, %v2658
      %v3059 = vpack.c.b16 %v2661, %v2659
      %v3060 = vpack.c.b16 %v2664, %v2662
      %v3061 = vpack.c.b16 %v2665, %v2663
      %v3062 = vpack.c.b16 %v2668, %v2666
      %v3063 = vpack.c.b16 %v2669, %v2667
      %v3064 = vpack.c.b16 %v2672, %v2670
      %v3065 = vpack.c.b16 %v2673, %v2671
      %v3066 = vpack.c.b16 %v2676, %v2674
      %v3067 = vpack.c.b16 %v2677, %v2675
      %v3068 = vpack.c.b16 %v2680, %v2678
      %v3069 = vpack.c.b16 %v2681, %v2679
      %v3070 = vpack.c.b16 %v2684, %v2682
      %v3071 = vpack.c.b16 %v2685, %v2683
      %v3072 = vpack.c.b16 %v2688, %v2686
      %v3073 = vpack.c.b16 %v2689, %v2687
      %v3074 = vpack.c.b16 %v2692, %v2690
      %v3075 = vpack.c.b16 %v2693, %v2691
      %v3076 = vpack.c.b16 %v2696, %v2694
      %v3077 = vpack.c.b16 %v2697, %v2695
      %v3078 = vpack.c.b16 %v2700, %v2698
      %v3079 = vpack.c.b16 %v2701, %v2699
      %v3080 = vpack.c.b16 %v2704, %v2702
      %v3081 = vpack.c.b16 %v2705, %v2703
      %v3082 = vpack.c.b16 %v2708, %v2706
      %v3083 = vpack.c.b16 %v2709, %v2707
      %v3084 = vpack.c.b16 %v2712, %v2710
      %v3085 = vpack.c.b16 %v2713, %v2711
      %v3086 = vpack.c.b16 %v2716, %v2714
      %v3087 = vpack.c.b16 %v2717, %v2715
      %v3088 = vpack.c.b16 %v2720, %v2718
      %v3089 = vpack.c.b16 %v2721, %v2719
      %v3090 = vpack.c.b16 %v2724, %v2722
      %v3091 = vpack.c.b16 %v2725, %v2723
      %v3092 = vpack.c.b16 %v2728, %v2726
      %v3093 = vpack.c.b16 %v2729, %v2727
      %v3094 = vpack.c.b16 %v2732, %v2730
      %v3095 = vpack.c.b16 %v2733, %v2731
      %v3096 = vpack.c.b16 %v2736, %v2734
      %v3097 = vpack.c.b16 %v2737, %v2735
      %v3098 = vpack.c.b16 %v2740, %v2738
      %v3099 = vpack.c.b16 %v2741, %v2739
      %v3100 = vpack.c.b16 %v2744, %v2742
      %v3101 = vpack.c.b16 %v2745, %v2743
      %v3102 = vpack.c.b16 %v2748, %v2746
      %v3103 = vpack.c.b16 %v2749, %v2747
      %v3104 = vpack.c.b16 %v2752, %v2750
      %v3105 = vpack.c.b16 %v2753, %v2751
      %v3106 = vpack.c.b16 %v2756, %v2754
      %v3107 = vpack.c.b16 %v2757, %v2755
      %v3108 = vpack.c.b16 %v2760, %v2758
      %v3109 = vpack.c.b16 %v2761, %v2759
      %v3110 = vpack.c.b16 %v2764, %v2762
      %v3111 = vpack.c.b16 %v2765, %v2763
      %v3112 = vpack.c.b16 %v2768, %v2766
      %v3113 = vpack.c.b16 %v2769, %v2767
      %v3114 = vpack.c.b16 %v2772, %v2770
      %v3115 = vpack.c.b16 %v2773, %v2771
      %v3116 = vpack.c.b16 %v2776, %v2774
      %v3117 = vpack.c.b16 %v2777, %v2775
      %v3118 = vpack.c.b16 %v2780, %v2778
      %v3119 = vpack.c.b16 %v2781, %v2779
      %v3120 = vpack.c.b16 %v2784, %v2782
      %v3121 = vpack.c.b16 %v2785, %v2783
      %v3122 = vpack.c.b16 %v2788, %v2786
      %v3123 = vpack.c.b16 %v2789, %v2787
      %v3124 = vpack.c.b16 %v2792, %v2790
      %v3125 = vpack.c.b16 %v2793, %v2791
      %v3126 = vpack.c.b16 %v2796, %v2794
      %v3127 = vpack.c.b16 %v2797, %v2795
      %v3128 = vpack.c.b16 %v2800, %v2798
      %v3129 = vpack.c.b16 %v2801, %v2799
      %v3130 = vpack.c.b16 %v2804, %v2802
      %v3131 = vpack.c.b16 %v2805, %v2803
      %v3132 = vpack.c.b16 %v2808, %v2806
      %v3133 = vpack.c.b16 %v2809, %v2807
      %v3134 = vpack.c.b16 %v2812, %v2810
      %v3135 = vpack.c.b16 %v2813, %v2811
      %v3136 = vpack.c.b16 %v2816, %v2814
      %v3137 = vpack.c.b16 %v2817, %v2815
      %v3138 = vpack.c.b16 %v2820, %v2818
      %v3139 = vpack.c.b16 %v2821, %v2819
      %v3140 = vpack.c.b16 %v2824, %v2822
      %v3141 = vpack.c.b16 %v2825, %v2823
      %v3142 = vpack.c.b16 %v2828, %v2826
      %v3143 = vpack.c.b16 %v2829, %v2827
      %v3144 = vpack.c.b16 %v2832, %v2830
      %v3145 = vpack.c.b16 %v2833, %v2831
      %v3146 = vpack.c.b16 %v2836, %v2834
      %v3147 = vpack.c.b16 %v2837, %v2835
      %v3148 = vpack.c.b16 %v2840, %v2838
      %v3149 = vpack.c.b16 %v2841, %v2839
      %v3150 = vpack.c.b16 %v2844, %v2842
      %v3151 = vpack.c.b16 %v2845, %v2843
      %v3152 = vpack.c.b16 %v2848, %v2846
      %v3153 = vpack.c.b16 %v2849, %v2847
      %v3154 = vpack.c.b16 %v2852, %v2850
      %v3155 = vpack.c.b16 %v2853, %v2851
      %v3156 = vpack.c.b16 %v2856, %v2854
      %v3157 = vpack.c.b16 %v2857, %v2855
      %v3158 = vpack.c.b16 %v2860, %v2858
      %v3159 = vpack.c.b16 %v2861, %v2859
      %v3160 = vpack.c.b16 %v2864, %v2862
      %v3161 = vpack.c.b16 %v2865, %v2863
      %v3162 = vpack.c.b16 %v2868, %v2866
      %v3163 = vpack.c.b16 %v2869, %v2867
      %v3164 = vpack.c.b16 %v2872, %v2870
      %v3165 = vpack.c.b16 %v2873, %v2871
      %v3166 = vpack.c.b16 %v2876, %v2874
      %v3167 = vpack.c.b16 %v2877, %v2875
      %v3168 = vpack.c.b16 %v2880, %v2878
      %v3169 = vpack.c.b16 %v2881, %v2879
      %v3170 = vpack.c.b16 %v2884, %v2882
      %v3171 = vpack.c.b16 %v2885, %v2883
      %v3172 = vpack.c.b16 %v2888, %v2886
      %v3173 = vpack.c.b16 %v2889, %v2887
      %v3174 = vpack.c.b16 %v2892, %v2890
      %v3175 = vpack.c.b16 %v2893, %v2891
      %v3176 = vpack.c.b16 %v2896, %v2894
      %v3177 = vpack.c.b16 %v2897, %v2895
      %v3178 = vpack.c.b16 %v2900, %v2898
      %v3179 = vpack.c.b16 %v2901, %v2899
      %v3180 = vpack.c.b16 %v2904, %v2902
      %v3181 = vpack.c.b16 %v2905, %v2903
      %v3182 = vpack.c.b16 %v2908, %v2906
      %v3183 = vpack.c.b16 %v2909, %v2907
      %v3184 = vpack.c.b16 %v2912, %v2910
      %v3185 = vpack.c.b16 %v2913, %v2911
      %v3186 = vpack.c.b16 %v2916, %v2914
      %v3187 = vpack.c.b16 %v2917, %v2915
      %v3188 = vpack.c.b16 %v2920, %v2918
      %v3189 = vpack.c.b16 %v2921, %v2919
      %v3190 = vpack.c.b16 %v2924, %v2922
      %v3191 = vpack.c.b16 %v2925, %v2923
      %v3192 = vpack.c.b16 %v2928, %v2926
      %v3193 = vpack.c.b16 %v2929, %v2927
      %v3194 = vpack.c.b16 %v2932, %v2930
      %v3195 = vpack.c.b16 %v2933, %v2931
      %v3196 = vpack.c.b16 %v2936, %v2934
      %v3197 = vpack.c.b16 %v2937, %v2935
      %v3198 = vpack.c.b16 %v2940, %v2938
      %v3199 = vpack.c.b16 %v2941, %v2939
      %v3200 = vpack.c.b16 %v2944, %v2942
      %v3201 = vpack.c.b16 %v2945, %v2943
      %3458 = vmatpush.bf16.msra.mxu0 %v2960
      %3459 = vmatpush.bf16.msra.mxu0 %v2958
      %3460 = vmatpush.bf16.msra.mxu0 %v2956
      %3461 = vmatpush.bf16.msra.mxu0 %v2954
      %3462 = vmatpush.bf16.msra.mxu0 %v2952
      %3463 = vmatpush.bf16.msra.mxu0 %v2950
      %3464 = vmatpush.bf16.msra.mxu0 %v2948
      %3465 = vmatpush.bf16.msra.mxu0 %v2946
      %3466 = vmatmul.bf16.gmra.mxu0 %v1900
      %v3467 = vpop.f32.mrf.mxu0
      %v3468 = vadd.f32 %v2174, %v3467
      %v3469 = vpop.f32.mrf.mxu0
      %3470 = vdwg.mxu0
      %3471 = vmatpush.bf16.msra.mxu0 %v2976
      %3472 = vmatpush.bf16.msra.mxu0 %v2974
      %3473 = vmatpush.bf16.msra.mxu0 %v2972
      %3474 = vmatpush.bf16.msra.mxu0 %v2970
      %3475 = vmatpush.bf16.msra.mxu0 %v2968
      %3476 = vmatpush.bf16.msra.mxu0 %v2966
      %3477 = vmatpush.bf16.msra.mxu0 %v2964
      %3478 = vmatpush.bf16.msra.mxu0 %v2962
      %3479 = vmatmul.bf16.gmra.mxu0 %v1901
      %v3480 = vpop.f32.mrf.mxu0
      %v3481 = vadd.f32 %v3468, %v3480
      %v3482 = vpop.f32.mrf.mxu0
      %3483 = vdwg.mxu0
      %3484 = vmatpush.bf16.msra.mxu0 %v2992
      %3485 = vmatpush.bf16.msra.mxu0 %v2990
      %3486 = vmatpush.bf16.msra.mxu0 %v2988
      %3487 = vmatpush.bf16.msra.mxu0 %v2986
      %3488 = vmatpush.bf16.msra.mxu0 %v2984
      %3489 = vmatpush.bf16.msra.mxu0 %v2982
      %3490 = vmatpush.bf16.msra.mxu0 %v2980
      %3491 = vmatpush.bf16.msra.mxu0 %v2978
      %3492 = vmatmul.bf16.gmra.mxu0 %v1902
      %v3493 = vpop.f32.mrf.mxu0
      %v3494 = vadd.f32 %v3481, %v3493
      %v3495 = vpop.f32.mrf.mxu0
      %3496 = vdwg.mxu0
      %3497 = vmatpush.bf16.msra.mxu0 %v3008
      %3498 = vmatpush.bf16.msra.mxu0 %v3006
      %3499 = vmatpush.bf16.msra.mxu0 %v3004
      %3500 = vmatpush.bf16.msra.mxu0 %v3002
      %3501 = vmatpush.bf16.msra.mxu0 %v3000
      %3502 = vmatpush.bf16.msra.mxu0 %v2998
      %3503 = vmatpush.bf16.msra.mxu0 %v2996
      %3504 = vmatpush.bf16.msra.mxu0 %v2994
      %3505 = vmatmul.bf16.gmra.mxu0 %v1903
      %v3506 = vpop.f32.mrf.mxu0
      %v3507 = vadd.f32 %v3494, %v3506
      %v3508 = vpop.f32.mrf.mxu0
      %3509 = vdwg.mxu0
      %3510 = vmatpush.bf16.msra.mxu0 %v3024
      %3511 = vmatpush.bf16.msra.mxu0 %v3022
      %3512 = vmatpush.bf16.msra.mxu0 %v3020
      %3513 = vmatpush.bf16.msra.mxu0 %v3018
      %3514 = vmatpush.bf16.msra.mxu0 %v3016
      %3515 = vmatpush.bf16.msra.mxu0 %v3014
      %3516 = vmatpush.bf16.msra.mxu0 %v3012
      %3517 = vmatpush.bf16.msra.mxu0 %v3010
      %3518 = vmatmul.bf16.gmra.mxu0 %v1904
      %v3519 = vpop.f32.mrf.mxu0
      %v3520 = vadd.f32 %v3507, %v3519
      %v3521 = vpop.f32.mrf.mxu0
      %3522 = vdwg.mxu0
      %3523 = vmatpush.bf16.msra.mxu0 %v3040
      %3524 = vmatpush.bf16.msra.mxu0 %v3038
      %3525 = vmatpush.bf16.msra.mxu0 %v3036
      %3526 = vmatpush.bf16.msra.mxu0 %v3034
      %3527 = vmatpush.bf16.msra.mxu0 %v3032
      %3528 = vmatpush.bf16.msra.mxu0 %v3030
      %3529 = vmatpush.bf16.msra.mxu0 %v3028
      %3530 = vmatpush.bf16.msra.mxu0 %v3026
      %3531 = vmatmul.bf16.gmra.mxu0 %v1905
      %v3532 = vpop.f32.mrf.mxu0
      %v3533 = vadd.f32 %v3520, %v3532
      %v3534 = vpop.f32.mrf.mxu0
      %3535 = vdwg.mxu0
      %3536 = vmatpush.bf16.msra.mxu0 %v3056
      %3537 = vmatpush.bf16.msra.mxu0 %v3054
      %3538 = vmatpush.bf16.msra.mxu0 %v3052
      %3539 = vmatpush.bf16.msra.mxu0 %v3050
      %3540 = vmatpush.bf16.msra.mxu0 %v3048
      %3541 = vmatpush.bf16.msra.mxu0 %v3046
      %3542 = vmatpush.bf16.msra.mxu0 %v3044
      %3543 = vmatpush.bf16.msra.mxu0 %v3042
      %3544 = vmatmul.bf16.gmra.mxu0 %v1906
      %v3545 = vpop.f32.mrf.mxu0
      %v3546 = vadd.f32 %v3533, %v3545
      %v3547 = vpop.f32.mrf.mxu0
      %3548 = vdwg.mxu0
      %3549 = vmatpush.bf16.msra.mxu0 %v3072
      %3550 = vmatpush.bf16.msra.mxu0 %v3070
      %3551 = vmatpush.bf16.msra.mxu0 %v3068
      %3552 = vmatpush.bf16.msra.mxu0 %v3066
      %3553 = vmatpush.bf16.msra.mxu0 %v3064
      %3554 = vmatpush.bf16.msra.mxu0 %v3062
      %3555 = vmatpush.bf16.msra.mxu0 %v3060
      %3556 = vmatpush.bf16.msra.mxu0 %v3058
      %3557 = vmatmul.bf16.gmra.mxu0 %v1907
      %v3558 = vpop.f32.mrf.mxu0
      %v3559 = vadd.f32 %v3546, %v3558
      %v3560 = vpop.f32.mrf.mxu0
      %3561 = vdwg.mxu0
      %3562 = vmatpush.bf16.msra.mxu0 %v3088
      %3563 = vmatpush.bf16.msra.mxu0 %v3086
      %3564 = vmatpush.bf16.msra.mxu0 %v3084
      %3565 = vmatpush.bf16.msra.mxu0 %v3082
      %3566 = vmatpush.bf16.msra.mxu0 %v3080
      %3567 = vmatpush.bf16.msra.mxu0 %v3078
      %3568 = vmatpush.bf16.msra.mxu0 %v3076
      %3569 = vmatpush.bf16.msra.mxu0 %v3074
      %3570 = vmatmul.bf16.gmra.mxu0 %v1908
      %v3571 = vpop.f32.mrf.mxu0
      %v3572 = vadd.f32 %v3559, %v3571
      %v3573 = vpop.f32.mrf.mxu0
      %3574 = vdwg.mxu0
      %3575 = vmatpush.bf16.msra.mxu0 %v3104
      %3576 = vmatpush.bf16.msra.mxu0 %v3102
      %3577 = vmatpush.bf16.msra.mxu0 %v3100
      %3578 = vmatpush.bf16.msra.mxu0 %v3098
      %3579 = vmatpush.bf16.msra.mxu0 %v3096
      %3580 = vmatpush.bf16.msra.mxu0 %v3094
      %3581 = vmatpush.bf16.msra.mxu0 %v3092
      %3582 = vmatpush.bf16.msra.mxu0 %v3090
      %3583 = vmatmul.bf16.gmra.mxu0 %v1909
      %v3584 = vpop.f32.mrf.mxu0
      %v3585 = vadd.f32 %v3572, %v3584
      %v3586 = vpop.f32.mrf.mxu0
      %3587 = vdwg.mxu0
      %3588 = vmatpush.bf16.msra.mxu0 %v3120
      %3589 = vmatpush.bf16.msra.mxu0 %v3118
      %3590 = vmatpush.bf16.msra.mxu0 %v3116
      %3591 = vmatpush.bf16.msra.mxu0 %v3114
      %3592 = vmatpush.bf16.msra.mxu0 %v3112
      %3593 = vmatpush.bf16.msra.mxu0 %v3110
      %3594 = vmatpush.bf16.msra.mxu0 %v3108
      %3595 = vmatpush.bf16.msra.mxu0 %v3106
      %3596 = vmatmul.bf16.gmra.mxu0 %v1910
      %v3597 = vpop.f32.mrf.mxu0
      %v3598 = vadd.f32 %v3585, %v3597
      %v3599 = vpop.f32.mrf.mxu0
      %3600 = vdwg.mxu0
      %3601 = vmatpush.bf16.msra.mxu0 %v3136
      %3602 = vmatpush.bf16.msra.mxu0 %v3134
      %3603 = vmatpush.bf16.msra.mxu0 %v3132
      %3604 = vmatpush.bf16.msra.mxu0 %v3130
      %3605 = vmatpush.bf16.msra.mxu0 %v3128
      %3606 = vmatpush.bf16.msra.mxu0 %v3126
      %3607 = vmatpush.bf16.msra.mxu0 %v3124
      %3608 = vmatpush.bf16.msra.mxu0 %v3122
      %3609 = vmatmul.bf16.gmra.mxu0 %v1911
      %v3610 = vpop.f32.mrf.mxu0
      %v3611 = vadd.f32 %v3598, %v3610
      %v3612 = vpop.f32.mrf.mxu0
      %3613 = vdwg.mxu0
      %3614 = vmatpush.bf16.msra.mxu0 %v3152
      %3615 = vmatpush.bf16.msra.mxu0 %v3150
      %3616 = vmatpush.bf16.msra.mxu0 %v3148
      %3617 = vmatpush.bf16.msra.mxu0 %v3146
      %3618 = vmatpush.bf16.msra.mxu0 %v3144
      %3619 = vmatpush.bf16.msra.mxu0 %v3142
      %3620 = vmatpush.bf16.msra.mxu0 %v3140
      %3621 = vmatpush.bf16.msra.mxu0 %v3138
      %3622 = vmatmul.bf16.gmra.mxu0 %v1912
      %v3623 = vpop.f32.mrf.mxu0
      %v3624 = vadd.f32 %v3611, %v3623
      %v3625 = vpop.f32.mrf.mxu0
      %3626 = vdwg.mxu0
      %3627 = vmatpush.bf16.msra.mxu0 %v3168
      %3628 = vmatpush.bf16.msra.mxu0 %v3166
      %3629 = vmatpush.bf16.msra.mxu0 %v3164
      %3630 = vmatpush.bf16.msra.mxu0 %v3162
      %3631 = vmatpush.bf16.msra.mxu0 %v3160
      %3632 = vmatpush.bf16.msra.mxu0 %v3158
      %3633 = vmatpush.bf16.msra.mxu0 %v3156
      %3634 = vmatpush.bf16.msra.mxu0 %v3154
      %3635 = vmatmul.bf16.gmra.mxu0 %v1913
      %v3636 = vpop.f32.mrf.mxu0
      %v3637 = vadd.f32 %v3624, %v3636
      %v3638 = vpop.f32.mrf.mxu0
      %3639 = vdwg.mxu0
      %3640 = vmatpush.bf16.msra.mxu0 %v3184
      %3641 = vmatpush.bf16.msra.mxu0 %v3182
      %3642 = vmatpush.bf16.msra.mxu0 %v3180
      %3643 = vmatpush.bf16.msra.mxu0 %v3178
      %3644 = vmatpush.bf16.msra.mxu0 %v3176
      %3645 = vmatpush.bf16.msra.mxu0 %v3174
      %3646 = vmatpush.bf16.msra.mxu0 %v3172
      %3647 = vmatpush.bf16.msra.mxu0 %v3170
      %3648 = vmatmul.bf16.gmra.mxu0 %v1914
      %v3649 = vpop.f32.mrf.mxu0
      %v3650 = vadd.f32 %v3637, %v3649
      %v3651 = vpop.f32.mrf.mxu0
      %3652 = vdwg.mxu0
      %3653 = vmatpush.bf16.msra.mxu0 %v3200
      %3654 = vmatpush.bf16.msra.mxu0 %v3198
      %3655 = vmatpush.bf16.msra.mxu0 %v3196
      %3656 = vmatpush.bf16.msra.mxu0 %v3194
      %3657 = vmatpush.bf16.msra.mxu0 %v3192
      %3658 = vmatpush.bf16.msra.mxu0 %v3190
      %3659 = vmatpush.bf16.msra.mxu0 %v3188
      %3660 = vmatpush.bf16.msra.mxu0 %v3186
      %3661 = vmatmul.bf16.gmra.mxu0 %v1915
      %v3662 = vpop.f32.mrf.mxu0
      %v3663 = vadd.f32 %v3650, %v3662
      %v3664 = vpop.f32.mrf.mxu0
      %3665 = vdwg.mxu0
      %3666 = vmatpush.bf16.msra.mxu0 %v2961
      %3667 = vmatpush.bf16.msra.mxu0 %v2959
      %3668 = vmatpush.bf16.msra.mxu0 %v2957
      %3669 = vmatpush.bf16.msra.mxu0 %v2955
      %3670 = vmatpush.bf16.msra.mxu0 %v2953
      %3671 = vmatpush.bf16.msra.mxu0 %v2951
      %3672 = vmatpush.bf16.msra.mxu0 %v2949
      %3673 = vmatpush.bf16.msra.mxu0 %v2947
      %3674 = vmatmul.bf16.gmra.mxu0 %v1900
      %v3675 = vpop.f32.mrf.mxu0
      %v3676 = vadd.f32 %v2175, %v3675
      %v3677 = vpop.f32.mrf.mxu0
      %3678 = vdwg.mxu0
      %3679 = vmatpush.bf16.msra.mxu0 %v2977
      %3680 = vmatpush.bf16.msra.mxu0 %v2975
      %3681 = vmatpush.bf16.msra.mxu0 %v2973
      %3682 = vmatpush.bf16.msra.mxu0 %v2971
      %3683 = vmatpush.bf16.msra.mxu0 %v2969
      %3684 = vmatpush.bf16.msra.mxu0 %v2967
      %3685 = vmatpush.bf16.msra.mxu0 %v2965
      %3686 = vmatpush.bf16.msra.mxu0 %v2963
      %3687 = vmatmul.bf16.gmra.mxu0 %v1901
      %v3688 = vpop.f32.mrf.mxu0
      %v3689 = vadd.f32 %v3676, %v3688
      %v3690 = vpop.f32.mrf.mxu0
      %3691 = vdwg.mxu0
      %3692 = vmatpush.bf16.msra.mxu0 %v2993
      %3693 = vmatpush.bf16.msra.mxu0 %v2991
      %3694 = vmatpush.bf16.msra.mxu0 %v2989
      %3695 = vmatpush.bf16.msra.mxu0 %v2987
      %3696 = vmatpush.bf16.msra.mxu0 %v2985
      %3697 = vmatpush.bf16.msra.mxu0 %v2983
      %3698 = vmatpush.bf16.msra.mxu0 %v2981
      %3699 = vmatpush.bf16.msra.mxu0 %v2979
      %3700 = vmatmul.bf16.gmra.mxu0 %v1902
      %v3701 = vpop.f32.mrf.mxu0
      %v3702 = vadd.f32 %v3689, %v3701
      %v3703 = vpop.f32.mrf.mxu0
      %3704 = vdwg.mxu0
      %3705 = vmatpush.bf16.msra.mxu0 %v3009
      %3706 = vmatpush.bf16.msra.mxu0 %v3007
      %3707 = vmatpush.bf16.msra.mxu0 %v3005
      %3708 = vmatpush.bf16.msra.mxu0 %v3003
      %3709 = vmatpush.bf16.msra.mxu0 %v3001
      %3710 = vmatpush.bf16.msra.mxu0 %v2999
      %3711 = vmatpush.bf16.msra.mxu0 %v2997
      %3712 = vmatpush.bf16.msra.mxu0 %v2995
      %3713 = vmatmul.bf16.gmra.mxu0 %v1903
      %v3714 = vpop.f32.mrf.mxu0
      %v3715 = vadd.f32 %v3702, %v3714
      %v3716 = vpop.f32.mrf.mxu0
      %3717 = vdwg.mxu0
      %3718 = vmatpush.bf16.msra.mxu0 %v3025
      %3719 = vmatpush.bf16.msra.mxu0 %v3023
      %3720 = vmatpush.bf16.msra.mxu0 %v3021
      %3721 = vmatpush.bf16.msra.mxu0 %v3019
      %3722 = vmatpush.bf16.msra.mxu0 %v3017
      %3723 = vmatpush.bf16.msra.mxu0 %v3015
      %3724 = vmatpush.bf16.msra.mxu0 %v3013
      %3725 = vmatpush.bf16.msra.mxu0 %v3011
      %3726 = vmatmul.bf16.gmra.mxu0 %v1904
      %v3727 = vpop.f32.mrf.mxu0
      %v3728 = vadd.f32 %v3715, %v3727
      %v3729 = vpop.f32.mrf.mxu0
      %3730 = vdwg.mxu0
      %3731 = vmatpush.bf16.msra.mxu0 %v3041
      %3732 = vmatpush.bf16.msra.mxu0 %v3039
      %3733 = vmatpush.bf16.msra.mxu0 %v3037
      %3734 = vmatpush.bf16.msra.mxu0 %v3035
      %3735 = vmatpush.bf16.msra.mxu0 %v3033
      %3736 = vmatpush.bf16.msra.mxu0 %v3031
      %3737 = vmatpush.bf16.msra.mxu0 %v3029
      %3738 = vmatpush.bf16.msra.mxu0 %v3027
      %3739 = vmatmul.bf16.gmra.mxu0 %v1905
      %v3740 = vpop.f32.mrf.mxu0
      %v3741 = vadd.f32 %v3728, %v3740
      %v3742 = vpop.f32.mrf.mxu0
      %3743 = vdwg.mxu0
      %3744 = vmatpush.bf16.msra.mxu0 %v3057
      %3745 = vmatpush.bf16.msra.mxu0 %v3055
      %3746 = vmatpush.bf16.msra.mxu0 %v3053
      %3747 = vmatpush.bf16.msra.mxu0 %v3051
      %3748 = vmatpush.bf16.msra.mxu0 %v3049
      %3749 = vmatpush.bf16.msra.mxu0 %v3047
      %3750 = vmatpush.bf16.msra.mxu0 %v3045
      %3751 = vmatpush.bf16.msra.mxu0 %v3043
      %3752 = vmatmul.bf16.gmra.mxu0 %v1906
      %v3753 = vpop.f32.mrf.mxu0
      %v3754 = vadd.f32 %v3741, %v3753
      %v3755 = vpop.f32.mrf.mxu0
      %3756 = vdwg.mxu0
      %3757 = vmatpush.bf16.msra.mxu0 %v3073
      %3758 = vmatpush.bf16.msra.mxu0 %v3071
      %3759 = vmatpush.bf16.msra.mxu0 %v3069
      %3760 = vmatpush.bf16.msra.mxu0 %v3067
      %3761 = vmatpush.bf16.msra.mxu0 %v3065
      %3762 = vmatpush.bf16.msra.mxu0 %v3063
      %3763 = vmatpush.bf16.msra.mxu0 %v3061
      %3764 = vmatpush.bf16.msra.mxu0 %v3059
      %3765 = vmatmul.bf16.gmra.mxu0 %v1907
      %v3766 = vpop.f32.mrf.mxu0
      %v3767 = vadd.f32 %v3754, %v3766
      %v3768 = vpop.f32.mrf.mxu0
      %3769 = vdwg.mxu0
      %3770 = vmatpush.bf16.msra.mxu0 %v3089
      %3771 = vmatpush.bf16.msra.mxu0 %v3087
      %3772 = vmatpush.bf16.msra.mxu0 %v3085
      %3773 = vmatpush.bf16.msra.mxu0 %v3083
      %3774 = vmatpush.bf16.msra.mxu0 %v3081
      %3775 = vmatpush.bf16.msra.mxu0 %v3079
      %3776 = vmatpush.bf16.msra.mxu0 %v3077
      %3777 = vmatpush.bf16.msra.mxu0 %v3075
      %3778 = vmatmul.bf16.gmra.mxu0 %v1908
      %v3779 = vpop.f32.mrf.mxu0
      %v3780 = vadd.f32 %v3767, %v3779
      %v3781 = vpop.f32.mrf.mxu0
      %3782 = vdwg.mxu0
      %3783 = vmatpush.bf16.msra.mxu0 %v3105
      %3784 = vmatpush.bf16.msra.mxu0 %v3103
      %3785 = vmatpush.bf16.msra.mxu0 %v3101
      %3786 = vmatpush.bf16.msra.mxu0 %v3099
      %3787 = vmatpush.bf16.msra.mxu0 %v3097
      %3788 = vmatpush.bf16.msra.mxu0 %v3095
      %3789 = vmatpush.bf16.msra.mxu0 %v3093
      %3790 = vmatpush.bf16.msra.mxu0 %v3091
      %3791 = vmatmul.bf16.gmra.mxu0 %v1909
      %v3792 = vpop.f32.mrf.mxu0
      %v3793 = vadd.f32 %v3780, %v3792
      %v3794 = vpop.f32.mrf.mxu0
      %3795 = vdwg.mxu0
      %3796 = vmatpush.bf16.msra.mxu0 %v3121
      %3797 = vmatpush.bf16.msra.mxu0 %v3119
      %3798 = vmatpush.bf16.msra.mxu0 %v3117
      %3799 = vmatpush.bf16.msra.mxu0 %v3115
      %3800 = vmatpush.bf16.msra.mxu0 %v3113
      %3801 = vmatpush.bf16.msra.mxu0 %v3111
      %3802 = vmatpush.bf16.msra.mxu0 %v3109
      %3803 = vmatpush.bf16.msra.mxu0 %v3107
      %3804 = vmatmul.bf16.gmra.mxu0 %v1910
      %v3805 = vpop.f32.mrf.mxu0
      %v3806 = vadd.f32 %v3793, %v3805
      %v3807 = vpop.f32.mrf.mxu0
      %3808 = vdwg.mxu0
      %3809 = vmatpush.bf16.msra.mxu0 %v3137
      %3810 = vmatpush.bf16.msra.mxu0 %v3135
      %3811 = vmatpush.bf16.msra.mxu0 %v3133
      %3812 = vmatpush.bf16.msra.mxu0 %v3131
      %3813 = vmatpush.bf16.msra.mxu0 %v3129
      %3814 = vmatpush.bf16.msra.mxu0 %v3127
      %3815 = vmatpush.bf16.msra.mxu0 %v3125
      %3816 = vmatpush.bf16.msra.mxu0 %v3123
      %3817 = vmatmul.bf16.gmra.mxu0 %v1911
      %v3818 = vpop.f32.mrf.mxu0
      %v3819 = vadd.f32 %v3806, %v3818
      %v3820 = vpop.f32.mrf.mxu0
      %3821 = vdwg.mxu0
      %3822 = vmatpush.bf16.msra.mxu0 %v3153
      %3823 = vmatpush.bf16.msra.mxu0 %v3151
      %3824 = vmatpush.bf16.msra.mxu0 %v3149
      %3825 = vmatpush.bf16.msra.mxu0 %v3147
      %3826 = vmatpush.bf16.msra.mxu0 %v3145
      %3827 = vmatpush.bf16.msra.mxu0 %v3143
      %3828 = vmatpush.bf16.msra.mxu0 %v3141
      %3829 = vmatpush.bf16.msra.mxu0 %v3139
      %3830 = vmatmul.bf16.gmra.mxu0 %v1912
      %v3831 = vpop.f32.mrf.mxu0
      %v3832 = vadd.f32 %v3819, %v3831
      %v3833 = vpop.f32.mrf.mxu0
      %3834 = vdwg.mxu0
      %3835 = vmatpush.bf16.msra.mxu0 %v3169
      %3836 = vmatpush.bf16.msra.mxu0 %v3167
      %3837 = vmatpush.bf16.msra.mxu0 %v3165
      %3838 = vmatpush.bf16.msra.mxu0 %v3163
      %3839 = vmatpush.bf16.msra.mxu0 %v3161
      %3840 = vmatpush.bf16.msra.mxu0 %v3159
      %3841 = vmatpush.bf16.msra.mxu0 %v3157
      %3842 = vmatpush.bf16.msra.mxu0 %v3155
      %3843 = vmatmul.bf16.gmra.mxu0 %v1913
      %v3844 = vpop.f32.mrf.mxu0
      %v3845 = vadd.f32 %v3832, %v3844
      %v3846 = vpop.f32.mrf.mxu0
      %3847 = vdwg.mxu0
      %3848 = vmatpush.bf16.msra.mxu0 %v3185
      %3849 = vmatpush.bf16.msra.mxu0 %v3183
      %3850 = vmatpush.bf16.msra.mxu0 %v3181
      %3851 = vmatpush.bf16.msra.mxu0 %v3179
      %3852 = vmatpush.bf16.msra.mxu0 %v3177
      %3853 = vmatpush.bf16.msra.mxu0 %v3175
      %3854 = vmatpush.bf16.msra.mxu0 %v3173
      %3855 = vmatpush.bf16.msra.mxu0 %v3171
      %3856 = vmatmul.bf16.gmra.mxu0 %v1914
      %v3857 = vpop.f32.mrf.mxu0
      %v3858 = vadd.f32 %v3845, %v3857
      %v3859 = vpop.f32.mrf.mxu0
      %3860 = vdwg.mxu0
      %3861 = vmatpush.bf16.msra.mxu0 %v3201
      %3862 = vmatpush.bf16.msra.mxu0 %v3199
      %3863 = vmatpush.bf16.msra.mxu0 %v3197
      %3864 = vmatpush.bf16.msra.mxu0 %v3195
      %3865 = vmatpush.bf16.msra.mxu0 %v3193
      %3866 = vmatpush.bf16.msra.mxu0 %v3191
      %3867 = vmatpush.bf16.msra.mxu0 %v3189
      %3868 = vmatpush.bf16.msra.mxu0 %v3187
      %3869 = vmatmul.bf16.gmra.mxu0 %v1915
      %v3870 = vpop.f32.mrf.mxu0
      %v3871 = vadd.f32 %v3858, %v3870
      %v3872 = vpop.f32.mrf.mxu0
      %3873 = vdwg.mxu0
      %3874 = vst [vmem:[%s275] sm:$0xff] %v3663
      %3875 = vst [vmem:[%s275 + $0x8] sm:$0xff] %v3871
      %p3876 = scmp.lt.s32.totalorder %s18, 1
      %s3877 = scalar_select %p3876, %s18, 1
      %s3878 = smul.addr %s3877, 2
      %s3879 = smul.addr %s3878, 8
      %s3880 = scalar_lea.vmem %s7, %s3879
      // Predicated region
      $region56: #{forward.1} parent=47 // pred_check
        %p3881 = pneg %p188
      $region57: #{forward.1} parent=47 // pred_check_branch
        %3883 = sbr.rel (%p3881) target = $region59
      $region58: #{forward.1} parent=47 // pred_region
        _
      $region59: #{forward.1} parent=47 // pred_fallthru
        _
    $region48: #{forward.1} parent=5 // pred_fallthru
      _
    %p3884 = scmp.le.s32.totalorder 2, %s13
    // Predicated region
    $region60: #{forward.1} parent=5 // pred_check
      %p3885 = pneg %p3884
    $region61: #{forward.1} parent=5 // pred_check_branch
      %3887 = sbr.rel (%p3885) target = $region63
    $region62: #{forward.1} parent=5 // pred_region
      %s3888 = ssub.s32 %s13, 2
      // Predicated region
      $region64: #{forward.1} parent=62 // pred_check
        %p3889 = pneg %p194
      $region65: #{forward.1} parent=62 // pred_check_branch
        %3891 = sbr.rel (%p3889) target = $region67
      $region66: #{forward.1} parent=62 // pred_region
        %p3892 = scmp.lt.s32.totalorder %s19, 1
        %s3893 = scalar_select %p3892, %s19, 1
        %s3894 = smul.addr %s3893, 2
        %s3895 = smul.addr %s3894, 8
        %s3896 = scalar_lea.vmem %s7, %s3895
      $region67: #{forward.1} parent=62 // pred_fallthru
        _
    $region63: #{forward.1} parent=5 // pred_fallthru
      _
  $region6: #{forward.1} parent=0 // loop_footer
    %s17 = sadd.s32 1, %s13
  $region7: #{forward.1} parent=0 // loop_footer_branch
    %12 = sbr.rel target = $region3
  $region8: #{forward.1} parent=0 // loop_exit
    _

</llo_original>
